<compile_context>
chip_gen: v5e
topology: v5e:2x2
jax: 0.10.0
libtpu: 0.0.40
codegen_flags: <defaults>
</compile_context>

<pallas_src>
import math
from functools import partial

import jax
import jax.numpy as jnp
from jax.experimental import pallas as pl
from jax.experimental.pallas import tpu as pltpu


_VMEM_LIMIT = 64 * 1024 * 1024


# ----------------------------- tiled matmul -------------------------------- #

def _matmul_kernel(a_ref, b_ref, o_ref, acc_ref):
    @pl.when(pl.program_id(2) == 0)
    def _():
        acc_ref[...] = jnp.zeros_like(acc_ref)

    acc_ref[...] += jnp.dot(a_ref[...], b_ref[...],
                            preferred_element_type=jnp.float32)

    @pl.when(pl.program_id(2) == pl.num_programs(2) - 1)
    def _():
        o_ref[...] = acc_ref[...].astype(o_ref.dtype)


def _matmul(a, b, out_dtype, tm=256, tn=512, tk=512):
    """(M, K) @ (K, N) -> (M, N) with bf16 operands and fp32 accumulation."""
    M, K = a.shape
    K2, N = b.shape
    assert K == K2
    tm, tn, tk = min(tm, M), min(tn, N), min(tk, K)
    assert M % tm == 0 and N % tn == 0 and K % tk == 0
    return pl.pallas_call(
        _matmul_kernel,
        out_shape=jax.ShapeDtypeStruct((M, N), out_dtype),
        grid=(M // tm, N // tn, K // tk),
        in_specs=[pl.BlockSpec((tm, tk), lambda i, j, k: (i, k)),
                  pl.BlockSpec((tk, tn), lambda i, j, k: (k, j))],
        out_specs=pl.BlockSpec((tm, tn), lambda i, j, k: (i, j)),
        scratch_shapes=[pltpu.VMEM((tm, tn), jnp.float32)],
        compiler_params=pltpu.CompilerParams(
            dimension_semantics=("parallel", "parallel", "arbitrary"),
            vmem_limit_bytes=_VMEM_LIMIT),
    )(a, b)


# ------------------------- one-pass RoPE on Q and K ------------------------- #

def _rope_kernel(qkv_ref, cos_ref, sin_ref, o_ref, *, n_heads, hd, scale):
    """Applies RoPE (halves layout) to one head tile; pre-scales query heads."""
    h = pl.program_id(2)
    x = qkv_ref[0].astype(jnp.float32)              # (tr, hd)
    half = hd // 2
    # partner values for the half-rotation (swap the two halves)
    x_sw = jnp.concatenate([x[:, half:], x[:, :half]], axis=-1)
    rot = x * cos_ref[...] + x_sw * sin_ref[...]

    @pl.when(h < n_heads)
    def _():                                        # query heads: fold in 1/sqrt(hd)
        o_ref[0] = (rot * scale).astype(o_ref.dtype)

    @pl.when(h >= n_heads)
    def _():                                        # key heads
        o_ref[0] = rot.astype(o_ref.dtype)


# -------------------------- flash attention kernel -------------------------- #

def _flash_kernel(q_ref, k_ref, v_ref, o_ref, m_sc, l_sc, acc_sc, *,
                  tq, tk, n_rep, hd):
    qi = pl.program_id(2)
    ki = pl.program_id(3)
    q_start = qi * tq
    k_start = ki * tk

    @pl.when(ki == 0)
    def _():
        m_sc[...] = jnp.full(m_sc.shape, -jnp.inf, m_sc.dtype)
        l_sc[...] = jnp.zeros(l_sc.shape, l_sc.dtype)
        acc_sc[...] = jnp.zeros(acc_sc.shape, acc_sc.dtype)

    def update(apply_mask):
        q_all = q_ref[0]                            # (tq, n_rep*hd) rotated+scaled
        k = k_ref[0]                                # (tk, hd) rotated
        v = v_ref[0]                                # (tk, hd)
        if apply_mask:
            row = q_start + jax.lax.broadcasted_iota(jnp.int32, (tq, tk), 0)
            col = k_start + jax.lax.broadcasted_iota(jnp.int32, (tq, tk), 1)
            keep = row >= col
        for r in range(n_rep):                      # all query heads of this KV group
            sl = slice(r * hd, (r + 1) * hd)
            s = jax.lax.dot_general(q_all[:, sl], k, (((1,), (1,)), ((), ())),
                                    preferred_element_type=jnp.float32)
            if apply_mask:
                s = jnp.where(keep, s, -1e30)       # keep masking in f32
            m_prev = m_sc[r]
            m_new = jnp.maximum(m_prev, jnp.max(s, axis=-1, keepdims=True))
            alpha = jnp.exp(m_prev - m_new)
            # bf16 exp argument: cheaper on the EUP (v6e/v7x); p is cast to
            # bf16 for the P@V MXU matmul anyway.
            p = jnp.exp((s - m_new).astype(jnp.bfloat16))
            l_sc[r] = alpha * l_sc[r] + jnp.sum(p.astype(jnp.float32),
                                                axis=-1, keepdims=True)
            acc_sc[:, sl] = alpha * acc_sc[:, sl] + jnp.dot(
                p, v, preferred_element_type=jnp.float32)
            m_sc[r] = m_new

    # interior tiles: fully below the causal diagonal, no masking work
    @pl.when(q_start >= k_start + tk - 1)
    def _():
        update(apply_mask=False)

    # tiles that cross the causal diagonal
    @pl.when((q_start + tq - 1 >= k_start) & (q_start < k_start + tk - 1))
    def _():
        update(apply_mask=True)

    # fully-masked tiles (q_start + tq - 1 < k_start) fall through: compute is
    # skipped and their K/V DMAs were elided via the clamped index map.

    @pl.when(ki == pl.num_programs(3) - 1)
    def _():
        parts = []
        for r in range(n_rep):
            sl = slice(r * hd, (r + 1) * hd)
            parts.append(acc_sc[:, sl] * (1.0 / l_sc[r]))   # exact reciprocal
        o_ref[0] = jnp.concatenate(parts, axis=-1).astype(o_ref.dtype)


# --------------------------------- wrapper ---------------------------------- #

def attention_forward(x, wq, wk, wv, wo, angles, *, n_heads, n_kv_heads,
                      q_tile=256, kv_tile=256, rope_tile=256):
    """x: (B, S, D); wq/wk/wv/wo are torch-Linear-style (out, in) weights;
    angles: (S, head_dim//2) rotary angles.  Causal (training) attention."""
    B, S, D = x.shape
    assert n_heads % n_kv_heads == 0
    hd = D // n_heads
    n_rep = n_heads // n_kv_heads
    qd = n_heads * hd
    kvd = n_kv_heads * hd
    C = qd + 2 * kvd
    tq = min(q_tile, S)
    tk = min(kv_tile, S)
    tr = min(rope_tile, S)
    assert S % tq == 0 and S % tk == 0 and S % tr == 0 and hd % 2 == 0

    # --- weight prep: bf16 MXU operands; per-head evens-then-odds column
    #     permutation of Wq / Wk so RoPE becomes a half-rotation (the same
    #     permutation on Q and K leaves Q.K^T unchanged). ---
    idx = jnp.arange(hd)
    half_perm = jnp.concatenate([idx[0::2], idx[1::2]])
    colq = (jnp.arange(n_heads)[:, None] * hd + half_perm[None, :]).reshape(-1)
    colk = (jnp.arange(n_kv_heads)[:, None] * hd + half_perm[None, :]).reshape(-1)
    w_qkv = jnp.concatenate([wq.T[:, colq], wk.T[:, colk], wv.T],
                            axis=1).astype(jnp.bfloat16)
    woT = wo.T.astype(jnp.bfloat16)

    # rotary tables in halves layout matching the permuted Q/K columns
    cos = jnp.cos(angles).astype(jnp.float32)
    sin = jnp.sin(angles).astype(jnp.float32)
    cos_cat = jnp.concatenate([cos, cos], axis=-1)        # (S, hd)
    sin_cat = jnp.concatenate([-sin, sin], axis=-1)       # (S, hd)

    # --- 1) fused QKV projection (single pass over x) ---
    x2d = x.reshape(B * S, D).astype(jnp.bfloat16)
    qkv = _matmul(x2d, w_qkv, jnp.bfloat16)               # (B*S, C)
    qkv3 = qkv.reshape(B, S, C)

    # --- 2) RoPE on Q and K applied exactly once (Q also pre-scaled) ---
    n_rope_heads = n_heads + n_kv_heads
    qk_rot = pl.pallas_call(
        partial(_rope_kernel, n_heads=n_heads, hd=hd, scale=1.0 / math.sqrt(hd)),
        out_shape=jax.ShapeDtypeStruct((B, S, qd + kvd), jnp.bfloat16),
        grid=(B, S // tr, n_rope_heads),
        in_specs=[pl.BlockSpec((1, tr, hd), lambda b, si, h: (b, si, h)),
                  pl.BlockSpec((tr, hd), lambda b, si, h: (si, 0)),
                  pl.BlockSpec((tr, hd), lambda b, si, h: (si, 0))],
        out_specs=pl.BlockSpec((1, tr, hd), lambda b, si, h: (b, si, h)),
        compiler_params=pltpu.CompilerParams(
            dimension_semantics=("parallel", "parallel", "parallel"),
            vmem_limit_bytes=_VMEM_LIMIT),
    )(qkv3, cos_cat, sin_cat)

    # --- 3) flash attention: grid over KV groups (GQA reuse), causal skip ---
    def q_map(b, g, qi, ki):
        return (b, qi, g)

    def _last_kv(qi):                      # last kv tile this q tile can see
        return (qi * tq + tq - 1) // tk

    def k_map(b, g, qi, ki):               # clamp => fully-masked tiles reuse
        return (b, jnp.minimum(ki, _last_kv(qi)), n_heads + g)

    def v_map(b, g, qi, ki):
        return (b, jnp.minimum(ki, _last_kv(qi)), n_heads + n_kv_heads + g)

    attn = pl.pallas_call(
        partial(_flash_kernel, tq=tq, tk=tk, n_rep=n_rep, hd=hd),
        out_shape=jax.ShapeDtypeStruct((B, S, qd), jnp.bfloat16),
        grid=(B, n_kv_heads, S // tq, S // tk),
        in_specs=[pl.BlockSpec((1, tq, n_rep * hd), q_map),
                  pl.BlockSpec((1, tk, hd), k_map),
                  pl.BlockSpec((1, tk, hd), v_map)],
        out_specs=pl.BlockSpec((1, tq, n_rep * hd), q_map),
        scratch_shapes=[pltpu.VMEM((n_rep, tq, 1), jnp.float32),   # running max
                        pltpu.VMEM((n_rep, tq, 1), jnp.float32),   # running denom
                        pltpu.VMEM((tq, n_rep * hd), jnp.float32)],  # acc
        compiler_params=pltpu.CompilerParams(
            dimension_semantics=("parallel", "parallel", "parallel", "arbitrary"),
            vmem_limit_bytes=_VMEM_LIMIT),
    )(qk_rot, qk_rot, qkv3)

    # --- 4) output projection ---
    out = _matmul(attn.reshape(B * S, qd), woT, jnp.float32)
    return out.reshape(B, S, D)


# ------------------------------- pure-JAX ref ------------------------------- #

def reference_attention(x, wq, wk, wv, wo, angles, mask, *, n_heads, n_kv_heads):
    """Pure-JAX fp32 mirror of the PyTorch forward (training path)."""
    b, s, d = x.shape
    hd = d // n_heads
    n_rep = n_heads // n_kv_heads
    xq = (x @ wq.T).reshape(b, s, n_heads, hd)
    xk = (x @ wk.T).reshape(b, s, n_kv_heads, hd)
    xv = (x @ wv.T).reshape(b, s, n_kv_heads, hd)

    cos = jnp.cos(angles)[None, :, None, :]
    sin = jnp.sin(angles)[None, :, None, :]

    def rot(t):
        tr, ti = t[..., 0::2], t[..., 1::2]
        return jnp.stack([tr * cos - ti * sin, tr * sin + ti * cos],
                         axis=-1).reshape(t.shape)

    xq, xk = rot(xq), rot(xk)
    keys = jnp.repeat(xk, n_rep, axis=2)      # repeat_interleave over head axis
    values = jnp.repeat(xv, n_rep, axis=2)
    q = xq.transpose(0, 2, 1, 3)
    k = keys.transpose(0, 2, 1, 3)
    v = values.transpose(0, 2, 1, 3)
    scores = q @ k.transpose(0, 1, 3, 2) / math.sqrt(hd) + mask[None, None]
    scores = jax.nn.softmax(scores.astype(jnp.float32), axis=-1)
    out = (scores @ v).transpose(0, 2, 1, 3).reshape(b, s, -1)
    return out @ wo.T


if __name__ == "__main__":
    # Small LLaMA-like config: dim=512, n_heads=4, n_kv_heads=2, head_dim=128
    BSZ, SEQ = 2, 512
    N_HEADS, N_KV_HEADS = 4, 2
    HEAD_DIM = 128
    DIM = N_HEADS * HEAD_DIM
    ROPE_THETA = 500000.0

    key = jax.random.PRNGKey(0)
    kx, kq, kk, kv, ko = jax.random.split(key, 5)
    x = jax.random.normal(kx, (BSZ, SEQ, DIM), dtype=jnp.float32)
    wq = jax.random.normal(kq, (N_HEADS * HEAD_DIM, DIM), dtype=jnp.float32) * 0.02
    wk = jax.random.normal(kk, (N_KV_HEADS * HEAD_DIM, DIM), dtype=jnp.float32) * 0.02
    wv = jax.random.normal(kv, (N_KV_HEADS * HEAD_DIM, DIM), dtype=jnp.float32) * 0.02
    wo = jax.random.normal(ko, (DIM, N_HEADS * HEAD_DIM), dtype=jnp.float32) * 0.02

    # rotary angles (freqs_cis) and the reference's causal mask
    inv_freq = 1.0 / (ROPE_THETA ** (jnp.arange(0, HEAD_DIM, 2, dtype=jnp.float32)
                                     / HEAD_DIM))
    angles = jnp.arange(SEQ, dtype=jnp.float32)[:, None] * inv_freq[None, :]
    mask = jnp.triu(jnp.full((SEQ, SEQ), -1e30, dtype=jnp.float32), k=1)

    out = attention_forward(x, wq, wk, wv, wo, angles,
                            n_heads=N_HEADS, n_kv_heads=N_KV_HEADS)
    out = jax.block_until_ready(out)

    ref = reference_attention(x, wq, wk, wv, wo, angles, mask,
                              n_heads=N_HEADS, n_kv_heads=N_KV_HEADS)
    assert out.shape == (BSZ, SEQ, DIM)
    rel_l2 = float(jnp.linalg.norm(out - ref) / (jnp.linalg.norm(ref) + 1e-6))
    assert rel_l2 < 2e-2, f"mismatch vs reference: rel_l2={rel_l2}"
    print("KERNEL_OK")
</pallas_src>

<mosaic_0001>
module attributes {stable_mosaic.version = 11 : i64} {
  func.func @_matmul_kernel(%arg0: i32, %arg1: i32, %arg2: i32, %arg3: memref<256x512xbf16, #tpu.memory_space<vmem>>, %arg4: memref<512x512xbf16, #tpu.memory_space<vmem>>, %arg5: memref<256x512xbf16, #tpu.memory_space<vmem>>, %arg6: memref<256x512xf32, #tpu.memory_space<vmem>>) attributes {dimension_semantics = [#tpu.dimension_semantics<parallel>, #tpu.dimension_semantics<parallel>, #tpu.dimension_semantics<arbitrary>], iteration_bounds = array<i64: 4, 2, 1>, scalar_prefetch = 0 : i64, scratch_operands = 1 : i64, tpu.core_type = #tpu.core_type<tc>, window_params = [{transform_indices = @transform_0, window_bounds = array<i64: 256, 512>}, {transform_indices = @transform_1, window_bounds = array<i64: 512, 512>}, {transform_indices = @transform_2, window_bounds = array<i64: 256, 512>}]} {
    %c0_i32 = arith.constant 0 : i32
    %0 = arith.cmpi eq, %arg2, %c0_i32 : i32
    %1 = arith.extui %0 : i1 to i32
    %c0_i32_0 = arith.constant 0 : i32
    %2 = arith.cmpi ne, %1, %c0_i32_0 : i32
    scf.if %2 {
      %cst_10 = arith.constant 0.000000e+00 : f32
      %12 = vector.broadcast %cst_10 : f32 to vector<256x512xf32>
      %c0_11 = arith.constant 0 : index
      %c0_12 = arith.constant 0 : index
      %13 = vector.load %arg6[%c0_11, %c0_12] : memref<256x512xf32, #tpu.memory_space<vmem>>, vector<256x512xf32>
      tpu.vector_store %arg6[%c0_11, %c0_12], %12 {strides = array<i32>} : memref<256x512xf32, #tpu.memory_space<vmem>>, vector<256x512xf32>,
    } else {
    }
    %c0 = arith.constant 0 : index
    %c0_1 = arith.constant 0 : index
    %3 = vector.load %arg6[%c0, %c0_1] : memref<256x512xf32, #tpu.memory_space<vmem>>, vector<256x512xf32>
    %c0_2 = arith.constant 0 : index
    %c0_3 = arith.constant 0 : index
    %4 = vector.load %arg3[%c0_2, %c0_3] : memref<256x512xbf16, #tpu.memory_space<vmem>>, vector<256x512xbf16>
    %c0_4 = arith.constant 0 : index
    %c0_5 = arith.constant 0 : index
    %5 = vector.load %arg4[%c0_4, %c0_5] : memref<512x512xbf16, #tpu.memory_space<vmem>>, vector<512x512xbf16>
    %cst = arith.constant dense<0.000000e+00> : vector<256x512xf32>
    %6 = tpu.matmul %4, %5, %cst {dimension_numbers = #tpu.dot_dimension_numbers<[1], [0], [0], [1], [0, 0, 1, 1], [], []>} : vector<256x512xbf16>, vector<512x512xbf16>, vector<256x512xf32> -> vector<256x512xf32>
    %7 = arith.addf %3, %6 : vector<256x512xf32>
    %c0_6 = arith.constant 0 : index
    %c0_7 = arith.constant 0 : index
    %8 = vector.load %arg6[%c0_6, %c0_7] : memref<256x512xf32, #tpu.memory_space<vmem>>, vector<256x512xf32>
    tpu.vector_store %arg6[%c0_6, %c0_7], %7 {strides = array<i32>} : memref<256x512xf32, #tpu.memory_space<vmem>>, vector<256x512xf32>,
    %c0_i32_8 = arith.constant 0 : i32
    %9 = arith.cmpi eq, %arg2, %c0_i32_8 : i32
    %10 = arith.extui %9 : i1 to i32
    %c0_i32_9 = arith.constant 0 : i32
    %11 = arith.cmpi ne, %10, %c0_i32_9 : i32
    scf.if %11 {
      %c0_10 = arith.constant 0 : index
      %c0_11 = arith.constant 0 : index
      %12 = vector.load %arg6[%c0_10, %c0_11] : memref<256x512xf32, #tpu.memory_space<vmem>>, vector<256x512xf32>
      %13 = arith.truncf %12 : vector<256x512xf32> to vector<256x512xbf16>
      %c0_12 = arith.constant 0 : index
      %c0_13 = arith.constant 0 : index
      %14 = vector.load %arg5[%c0_12, %c0_13] : memref<256x512xbf16, #tpu.memory_space<vmem>>, vector<256x512xbf16>
      tpu.vector_store %arg5[%c0_12, %c0_13], %13 {strides = array<i32>} : memref<256x512xbf16, #tpu.memory_space<vmem>>, vector<256x512xbf16>,
    } else {
    }
    return
  }
  func.func @transform_0(%arg0: i32, %arg1: i32, %arg2: i32) -> (i32, i32) {
    %c0_i32 = arith.constant 0 : i32
    return %arg0, %arg2 : i32, i32
  }
  func.func @transform_1(%arg0: i32, %arg1: i32, %arg2: i32) -> (i32, i32) {
    %c0_i32 = arith.constant 0 : i32
    return %arg2, %arg1 : i32, i32
  }
  func.func @transform_2(%arg0: i32, %arg1: i32, %arg2: i32) -> (i32, i32) {
    %c0_i32 = arith.constant 0 : i32
    return %arg0, %arg1 : i32, i32
  }
}

</mosaic_0001>

<llo_original>
// kernel: tpu_custom_call.1
$region0: #{tpu_custom_call.1}
  #allocation0 [shape = 'u32[]', space=smem, size = 0x4, offset = 0x4, fixed_abs, tag = 'smem constant byte address 0x4 - core index']
  #allocation1 [shape = 'u32[72,128]{1,0:T(1,128)}', space=vmem, size = 0x9000, scoped, tag = 'internal scratch']
  #allocation2 [shape = 'f32[256,512]{1,0:T(8,128)}', space=vmem, size = 0x80000, scoped, tag = 'scratch operand']
  %s0 = inlined_call_operand.hbm [shape: bf16[1024,512], index: 0, kind: input, shape index: {}]
  %s1 = inlined_call_operand.hbm [shape: bf16[512,1024], index: 1, kind: input, shape index: {}]
  %s2 = inlined_call_operand.hbm [shape: bf16[1024,1024], index: 2, kind: output, shape index: {}]
  %s3 = sld [smem:[#allocation0]]
  $region57: #{tpu_custom_call.1} parent=0
    _
  %s5 = ssub.s32 1, %s3
  %s6 = scalar_select 0, %s5, %s3
  $region1: #{tpu_custom_call.1} parent=0
    #allocation3 [shape = 'u8[524288]{0}', space=vmem, size = 0x80000, scoped, tag = 'input window, operand 0']
    #allocation4 [shape = 's32[2]{0}', space=sflag, size = 0x8, scoped, tag = 'scoped memory for tpu_custom_call.1']
    #allocation5 [shape = 's32[2]{0}', space=sflag, size = 0x8, scoped, tag = 'scoped memory for tpu_custom_call.1']
    #allocation6 [shape = 'u8[1048576]{0}', space=vmem, size = 0x100000, scoped, tag = 'input window, operand 1']
    #allocation7 [shape = 's32[2]{0}', space=sflag, size = 0x8, scoped, tag = 'scoped memory for tpu_custom_call.1']
    #allocation8 [shape = 'u8[524288]{0}', space=vmem, size = 0x80000, scoped, tag = 'output window, operand 0']
    %7 = vsyncpa [#allocation4], 0
    %s8 = scalar_lea.sflag [#allocation4], 1
    %9 = vsyncpa %s8, 0
    %10 = vsyncpa [#allocation7], 0
    %s11 = scalar_lea.sflag [#allocation7], 1
    %12 = vsyncpa %s11, 0
    %13 = vsyncpa [#allocation5], 0
    %s14 = scalar_lea.sflag [#allocation5], 1
    %15 = vsyncpa %s14, 0
    loop: start=0, step=1, limit=10
    $region2: #{tpu_custom_call.1} parent=1 // loop_pre_header
      _
    $region3: #{tpu_custom_call.1} parent=1 // loop_header
      %s17 = sphi 0, %s21
      %p18 = scmp.ge.s32.totalorder %s17, 10
      %s24 = sphi 0, %s43
      %s25 = sphi 0, %s39
      %s26 = sphi 0, %s35
      %s27 = sphi 0, %s24
      %s28 = sphi 0, %s25
      %s29 = sphi 0, %s26
      %s30 = sphi 0, %s27
      %s31 = sphi 0, %s28
      %s32 = sphi 0, %s29
      %s48 = sphi 0, %s50
      %s51 = sphi 0, %s48
      %s52 = sphi 0, %s51
      %s68 = sphi 0, %s52
      %s76 = sphi 0, %s78
      %s79 = sphi 0, %s76
      %s80 = sphi 0, %s79
      %s96 = sphi 0, %s80
      %s104 = sphi 0, %s106
      %s107 = sphi 0, %s104
      %s108 = sphi 0, %s107
      %s124 = sphi 0, %s108
    $region4: #{tpu_custom_call.1} parent=1 // loop_header_branch
      %20 = sbr.rel (%p18) target = $region8
    $region5: #{tpu_custom_call.1} parent=1 // loop_body
      %s22 = ssub.s32 %s17, 1
      %s23 = ssub.s32 %s17, 2
      %s33 = sadd.s32 1, %s26
      %p34 = scmp.ge.s32.totalorder %s33, 1
      %s35 = scalar_select %p34, 0, %s33
      %s36 = sadd.s32 1, %s25
      %s37 = scalar_select %p34, %s36, %s25
      %p38 = scmp.ge.s32.totalorder %s37, 2
      %s39 = scalar_select %p38, 0, %s37
      %s40 = sadd.s32 1, %s24
      %s41 = scalar_select %p38, %s40, %s24
      %p42 = scmp.ge.s32.totalorder %s41, 4
      %s43 = scalar_select %p42, 0, %s41
      %s44 = ssub.s32 %s24, %s43
      %s45 = ssub.s32 %s26, %s35
      %s46 = sor.u32 %s44, %s45
      %p47 = scmp.eq.s32.totalorder %s46, 0
      %s49 = sadd.s32 %s48, 1
      %s50 = scalar_select %p47, %s48, %s49
      %p53 = pneg %p47
      %p54 = scmp.eq.s32.totalorder %s17, 7
      %p55 = por %p53, %p54
      %p56 = scmp.ne.s32.totalorder %s48, %s51
      %p57 = scmp.eq.s32.totalorder %s17, 0
      %p58 = por %p56, %p57
      %p59 = scmp.ne.s32.totalorder %s48, %s51
      %p60 = scmp.eq.s32.totalorder %s22, 7
      %p61 = por %p59, %p60
      %p62 = scmp.ne.s32.totalorder %s51, %s52
      %p63 = scmp.eq.s32.totalorder %s22, 0
      %p64 = por %p62, %p63
      %p65 = scmp.ne.s32.totalorder %s51, %s52
      %p66 = scmp.eq.s32.totalorder %s23, 7
      %p67 = por %p65, %p66
      %p69 = scmp.ne.s32.totalorder %s52, %s68
      %p70 = scmp.eq.s32.totalorder %s23, 0
      %p71 = por %p69, %p70
      %s72 = ssub.s32 %s26, %s35
      %s73 = ssub.s32 %s25, %s39
      %s74 = sor.u32 %s72, %s73
      %p75 = scmp.eq.s32.totalorder %s74, 0
      %s77 = sadd.s32 %s76, 1
      %s78 = scalar_select %p75, %s76, %s77
      %p81 = pneg %p75
      %p82 = scmp.eq.s32.totalorder %s17, 7
      %p83 = por %p81, %p82
      %p84 = scmp.ne.s32.totalorder %s76, %s79
      %p85 = scmp.eq.s32.totalorder %s17, 0
      %p86 = por %p84, %p85
      %p87 = scmp.ne.s32.totalorder %s76, %s79
      %p88 = scmp.eq.s32.totalorder %s22, 7
      %p89 = por %p87, %p88
      %p90 = scmp.ne.s32.totalorder %s79, %s80
      %p91 = scmp.eq.s32.totalorder %s22, 0
      %p92 = por %p90, %p91
      %p93 = scmp.ne.s32.totalorder %s79, %s80
      %p94 = scmp.eq.s32.totalorder %s23, 7
      %p95 = por %p93, %p94
      %p97 = scmp.ne.s32.totalorder %s80, %s96
      %p98 = scmp.eq.s32.totalorder %s23, 0
      %p99 = por %p97, %p98
      %s100 = ssub.s32 %s24, %s43
      %s101 = ssub.s32 %s25, %s39
      %s102 = sor.u32 %s100, %s101
      %p103 = scmp.eq.s32.totalorder %s102, 0
      %s105 = sadd.s32 %s104, 1
      %s106 = scalar_select %p103, %s104, %s105
      %p109 = pneg %p103
      %p110 = scmp.eq.s32.totalorder %s17, 7
      %p111 = por %p109, %p110
      %p112 = scmp.ne.s32.totalorder %s104, %s107
      %p113 = scmp.eq.s32.totalorder %s17, 0
      %p114 = por %p112, %p113
      %p115 = scmp.ne.s32.totalorder %s104, %s107
      %p116 = scmp.eq.s32.totalorder %s22, 7
      %p117 = por %p115, %p116
      %p118 = scmp.ne.s32.totalorder %s107, %s108
      %p119 = scmp.eq.s32.totalorder %s22, 0
      %p120 = por %p118, %p119
      %p121 = scmp.ne.s32.totalorder %s107, %s108
      %p122 = scmp.eq.s32.totalorder %s23, 7
      %p123 = por %p121, %p122
      %p125 = scmp.ne.s32.totalorder %s108, %s124
      %p126 = scmp.eq.s32.totalorder %s23, 0
      %p127 = por %p125, %p126
      %p128 = scmp.le.s32.totalorder 1, %s17
      %p129 = scmp.lt.s32.totalorder %s17, 9
      %p130 = pnand %p128, %p129
      %p131 = pneg %p130
      // Predicated region
      $region9: #{tpu_custom_call.1} parent=5 // pred_check
        _
      $region10: #{tpu_custom_call.1} parent=5 // pred_check_branch
        %133 = sbr.rel (%p130) target = $region12
      $region11: #{tpu_custom_call.1} parent=5 // pred_region
        %s134 = ssub.s32 %s17, 1
      $region12: #{tpu_custom_call.1} parent=5 // pred_fallthru
        _
      %p135 = scmp.lt.s32.totalorder %s17, 8
      // Predicated region
      $region13: #{tpu_custom_call.1} parent=5 // pred_check
        %p136 = pneg %p135
      $region14: #{tpu_custom_call.1} parent=5 // pred_check_branch
        %138 = sbr.rel (%p136) target = $region16
      $region15: #{tpu_custom_call.1} parent=5 // pred_region
        // Predicated region
        $region17: #{tpu_custom_call.1} parent=15 // pred_check
          %p139 = pneg %p58
        $region18: #{tpu_custom_call.1} parent=15 // pred_check_branch
          %141 = sbr.rel (%p139) target = $region20
        $region19: #{tpu_custom_call.1} parent=15 // pred_region
          %s142 = sand.u32 %s48, 1
          %s143 = scalar_lea.sflag [#allocation4], %s142
          %s144 = sand.u32 %s48, 1
          %s145 = smul.addr %s144, 512
          %s146 = scalar_lea.vmem [#allocation3], %s145
          %s147 = smul.u32 32, %s24
          %s148 = smul.u32 4, %s26
          %150 = vsyncadd %s143, 0
          %s151 = smul.addr %s147, 4
          %s152 = sadd.s32 %s148, %s151
          %s153 = smul.addr %s152, 4
          %s154 = scalar_lea.hbm %s0, %s153
          %s155 = sshll.u32 %s154, 4
          %s156 = int_to_ptr.hbm [resolvable:$true] %s155
          %s157 = sshll.u32 %s146, 4
          %s158 = int_to_ptr.vmem [resolvable:$true] %s157
          %163 = dma.hbm_to_vmem [thread:$0]  %s156, 8192, %s158, %s143, 256, 256, 16
        $region20: #{tpu_custom_call.1} parent=15 // pred_fallthru
          _
        // Predicated region
        $region21: #{tpu_custom_call.1} parent=15 // pred_check
          %p164 = pneg %p86
        $region22: #{tpu_custom_call.1} parent=15 // pred_check_branch
          %166 = sbr.rel (%p164) target = $region24
        $region23: #{tpu_custom_call.1} parent=15 // pred_region
          %s167 = sand.u32 %s76, 1
          %s168 = scalar_lea.sflag [#allocation7], %s167
          %s169 = sand.u32 %s76, 1
          %s170 = smul.addr %s169, 1024
          %s171 = scalar_lea.vmem [#allocation6], %s170
          %s172 = smul.u32 64, %s26
          %s173 = smul.u32 4, %s25
          %175 = vsyncadd %s168, 0
          %s176 = smul.addr %s172, 8
          %s177 = sadd.s32 %s173, %s176
          %s178 = smul.addr %s177, 4
          %s179 = scalar_lea.hbm %s1, %s178
          %s180 = sshll.u32 %s179, 4
          %s181 = int_to_ptr.hbm [resolvable:$true] %s180
          %s182 = sshll.u32 %s171, 4
          %s183 = int_to_ptr.vmem [resolvable:$true] %s182
          %188 = dma.hbm_to_vmem [thread:$0]  %s181, 16384, %s183, %s168, 512, 256, 16
        $region24: #{tpu_custom_call.1} parent=15 // pred_fallthru
          _
      $region16: #{tpu_custom_call.1} parent=5 // pred_fallthru
        _
      %p189 = scmp.le.s32.totalorder 1, %s17
      %p190 = scmp.lt.s32.totalorder %s17, 9
      %p191 = pnand %p189, %p190
      %p192 = pneg %p191
      // Predicated region
      $region25: #{tpu_custom_call.1} parent=5 // pred_check
        _
      $region26: #{tpu_custom_call.1} parent=5 // pred_check_branch
        %194 = sbr.rel (%p191) target = $region28
      $region27: #{tpu_custom_call.1} parent=5 // pred_region
        %s195 = ssub.s32 %s17, 1
        %s196 = sand.u32 %s51, 1
        %s197 = scalar_lea.sflag [#allocation4], %s196
        %s198 = sand.u32 %s51, 1
        %s199 = smul.addr %s198, 512
        %s200 = scalar_lea.vmem [#allocation3], %s199
        // Predicated region
        $region29: #{tpu_custom_call.1} parent=27 // pred_check
          %p201 = pneg %p64
        $region30: #{tpu_custom_call.1} parent=27 // pred_check_branch
          %203 = sbr.rel (%p201) target = $region32
        $region31: #{tpu_custom_call.1} parent=27 // pred_region
          %205 = dma.done %s197, 8192
        $region32: #{tpu_custom_call.1} parent=27 // pred_fallthru
          _
        %s206 = sand.u32 %s79, 1
        %s207 = scalar_lea.sflag [#allocation7], %s206
        %s208 = sand.u32 %s79, 1
        %s209 = smul.addr %s208, 1024
        %s210 = scalar_lea.vmem [#allocation6], %s209
        // Predicated region
        $region33: #{tpu_custom_call.1} parent=27 // pred_check
          %p211 = pneg %p92
        $region34: #{tpu_custom_call.1} parent=27 // pred_check_branch
          %213 = sbr.rel (%p211) target = $region36
        $region35: #{tpu_custom_call.1} parent=27 // pred_region
          %215 = dma.done %s207, 16384
        $region36: #{tpu_custom_call.1} parent=27 // pred_fallthru
          _
        %s216 = sand.u32 %s51, 1
        %s217 = scalar_lea.sflag [#allocation4], %s216
        %s218 = sand.u32 %s51, 1
        %s219 = smul.addr %s218, 512
        %s220 = scalar_lea.vmem [#allocation3], %s219
        %p221 = pneg %p64
        %p222 = pneg %p61
        %s223 = sand.u32 %s79, 1
        %s224 = scalar_lea.sflag [#allocation7], %s223
        %s225 = sand.u32 %s79, 1
        %s226 = smul.addr %s225, 1024
        %s227 = scalar_lea.vmem [#allocation6], %s226
        %p228 = pneg %p92
        %p229 = pneg %p89
        %p230 = pneg %p120
        %p231 = pneg %p117
        %s232 = sand.u32 %s107, 1
        %s233 = scalar_lea.sflag [#allocation5], %s232
        %s234 = sand.u32 %s107, 1
        %s235 = smul.addr %s234, 512
        %s236 = scalar_lea.vmem [#allocation8], %s235
        %s237 = smul.u32 32, %s27
        %s238 = smul.u32 4, %s29
        %s239 = smul.u32 64, %s29
        %s240 = smul.u32 4, %s28
        %s241 = smul.u32 32, %s27
        %s242 = smul.u32 4, %s28
        %p243 = scmp.eq.s32.totalorder %s29, 0
        // Predicated region
        $region37: #{tpu_custom_call.1} parent=27 // pred_check
          %p244 = pneg %p243
        $region38: #{tpu_custom_call.1} parent=27 // pred_check_branch
          %246 = sbr.rel (%p244) target = $region40
        $region39: #{tpu_custom_call.1} parent=27 // pred_region
          %247 = vst [vmem:[#allocation2] sm:$0xff] 0.0
          %248 = vst [vmem:[#allocation2 + $0x8] sm:$0xff] 0.0
          %249 = vst [vmem:[#allocation2 + $0x10] sm:$0xff] 0.0
          %250 = vst [vmem:[#allocation2 + $0x18] sm:$0xff] 0.0
          %251 = vst [vmem:[#allocation2 + $0x20] sm:$0xff] 0.0
          %252 = vst [vmem:[#allocation2 + $0x28] sm:$0xff] 0.0
          %253 = vst [vmem:[#allocation2 + $0x30] sm:$0xff] 0.0
          %254 = vst [vmem:[#allocation2 + $0x38] sm:$0xff] 0.0
          %255 = vst [vmem:[#allocation2 + $0x40] sm:$0xff] 0.0
          %256 = vst [vmem:[#allocation2 + $0x48] sm:$0xff] 0.0
          %257 = vst [vmem:[#allocation2 + $0x50] sm:$0xff] 0.0
          %258 = vst [vmem:[#allocation2 + $0x58] sm:$0xff] 0.0
          %259 = vst [vmem:[#allocation2 + $0x60] sm:$0xff] 0.0
          %260 = vst [vmem:[#allocation2 + $0x68] sm:$0xff] 0.0
          %261 = vst [vmem:[#allocation2 + $0x70] sm:$0xff] 0.0
          %262 = vst [vmem:[#allocation2 + $0x78] sm:$0xff] 0.0
          %263 = vst [vmem:[#allocation2 + $0x80] sm:$0xff] 0.0
          %264 = vst [vmem:[#allocation2 + $0x88] sm:$0xff] 0.0
          %265 = vst [vmem:[#allocation2 + $0x90] sm:$0xff] 0.0
          %266 = vst [vmem:[#allocation2 + $0x98] sm:$0xff] 0.0
          %267 = vst [vmem:[#allocation2 + $0xa0] sm:$0xff] 0.0
          %268 = vst [vmem:[#allocation2 + $0xa8] sm:$0xff] 0.0
          %269 = vst [vmem:[#allocation2 + $0xb0] sm:$0xff] 0.0
          %270 = vst [vmem:[#allocation2 + $0xb8] sm:$0xff] 0.0
          %271 = vst [vmem:[#allocation2 + $0xc0] sm:$0xff] 0.0
          %272 = vst [vmem:[#allocation2 + $0xc8] sm:$0xff] 0.0
          %273 = vst [vmem:[#allocation2 + $0xd0] sm:$0xff] 0.0
          %274 = vst [vmem:[#allocation2 + $0xd8] sm:$0xff] 0.0
          %275 = vst [vmem:[#allocation2 + $0xe0] sm:$0xff] 0.0
          %276 = vst [vmem:[#allocation2 + $0xe8] sm:$0xff] 0.0
          %277 = vst [vmem:[#allocation2 + $0xf0] sm:$0xff] 0.0
          %278 = vst [vmem:[#allocation2 + $0xf8] sm:$0xff] 0.0
          %279 = vst [vmem:[#allocation2 + $0x100] sm:$0xff] 0.0
          %280 = vst [vmem:[#allocation2 + $0x108] sm:$0xff] 0.0
          %281 = vst [vmem:[#allocation2 + $0x110] sm:$0xff] 0.0
          %282 = vst [vmem:[#allocation2 + $0x118] sm:$0xff] 0.0
          %283 = vst [vmem:[#allocation2 + $0x120] sm:$0xff] 0.0
          %284 = vst [vmem:[#allocation2 + $0x128] sm:$0xff] 0.0
          %285 = vst [vmem:[#allocation2 + $0x130] sm:$0xff] 0.0
          %286 = vst [vmem:[#allocation2 + $0x138] sm:$0xff] 0.0
          %287 = vst [vmem:[#allocation2 + $0x140] sm:$0xff] 0.0
          %288 = vst [vmem:[#allocation2 + $0x148] sm:$0xff] 0.0
          %289 = vst [vmem:[#allocation2 + $0x150] sm:$0xff] 0.0
          %290 = vst [vmem:[#allocation2 + $0x158] sm:$0xff] 0.0
          %291 = vst [vmem:[#allocation2 + $0x160] sm:$0xff] 0.0
          %292 = vst [vmem:[#allocation2 + $0x168] sm:$0xff] 0.0
          %293 = vst [vmem:[#allocation2 + $0x170] sm:$0xff] 0.0
          %294 = vst [vmem:[#allocation2 + $0x178] sm:$0xff] 0.0
          %295 = vst [vmem:[#allocation2 + $0x180] sm:$0xff] 0.0
          %296 = vst [vmem:[#allocation2 + $0x188] sm:$0xff] 0.0
          %297 = vst [vmem:[#allocation2 + $0x190] sm:$0xff] 0.0
          %298 = vst [vmem:[#allocation2 + $0x198] sm:$0xff] 0.0
          %299 = vst [vmem:[#allocation2 + $0x1a0] sm:$0xff] 0.0
          %300 = vst [vmem:[#allocation2 + $0x1a8] sm:$0xff] 0.0
          %301 = vst [vmem:[#allocation2 + $0x1b0] sm:$0xff] 0.0
          %302 = vst [vmem:[#allocation2 + $0x1b8] sm:$0xff] 0.0
          %303 = vst [vmem:[#allocation2 + $0x1c0] sm:$0xff] 0.0
          %304 = vst [vmem:[#allocation2 + $0x1c8] sm:$0xff] 0.0
          %305 = vst [vmem:[#allocation2 + $0x1d0] sm:$0xff] 0.0
          %306 = vst [vmem:[#allocation2 + $0x1d8] sm:$0xff] 0.0
          %307 = vst [vmem:[#allocation2 + $0x1e0] sm:$0xff] 0.0
          %308 = vst [vmem:[#allocation2 + $0x1e8] sm:$0xff] 0.0
          %309 = vst [vmem:[#allocation2 + $0x1f0] sm:$0xff] 0.0
          %310 = vst [vmem:[#allocation2 + $0x1f8] sm:$0xff] 0.0
          %311 = vst [vmem:[#allocation2 + $0x200] sm:$0xff] 0.0
          %312 = vst [vmem:[#allocation2 + $0x208] sm:$0xff] 0.0
          %313 = vst [vmem:[#allocation2 + $0x210] sm:$0xff] 0.0
          %314 = vst [vmem:[#allocation2 + $0x218] sm:$0xff] 0.0
          %315 = vst [vmem:[#allocation2 + $0x220] sm:$0xff] 0.0
          %316 = vst [vmem:[#allocation2 + $0x228] sm:$0xff] 0.0
          %317 = vst [vmem:[#allocation2 + $0x230] sm:$0xff] 0.0
          %318 = vst [vmem:[#allocation2 + $0x238] sm:$0xff] 0.0
          %319 = vst [vmem:[#allocation2 + $0x240] sm:$0xff] 0.0
          %320 = vst [vmem:[#allocation2 + $0x248] sm:$0xff] 0.0
          %321 = vst [vmem:[#allocation2 + $0x250] sm:$0xff] 0.0
          %322 = vst [vmem:[#allocation2 + $0x258] sm:$0xff] 0.0
          %323 = vst [vmem:[#allocation2 + $0x260] sm:$0xff] 0.0
          %324 = vst [vmem:[#allocation2 + $0x268] sm:$0xff] 0.0
          %325 = vst [vmem:[#allocation2 + $0x270] sm:$0xff] 0.0
          %326 = vst [vmem:[#allocation2 + $0x278] sm:$0xff] 0.0
          %327 = vst [vmem:[#allocation2 + $0x280] sm:$0xff] 0.0
          %328 = vst [vmem:[#allocation2 + $0x288] sm:$0xff] 0.0
          %329 = vst [vmem:[#allocation2 + $0x290] sm:$0xff] 0.0
          %330 = vst [vmem:[#allocation2 + $0x298] sm:$0xff] 0.0
          %331 = vst [vmem:[#allocation2 + $0x2a0] sm:$0xff] 0.0
          %332 = vst [vmem:[#allocation2 + $0x2a8] sm:$0xff] 0.0
          %333 = vst [vmem:[#allocation2 + $0x2b0] sm:$0xff] 0.0
          %334 = vst [vmem:[#allocation2 + $0x2b8] sm:$0xff] 0.0
          %335 = vst [vmem:[#allocation2 + $0x2c0] sm:$0xff] 0.0
          %336 = vst [vmem:[#allocation2 + $0x2c8] sm:$0xff] 0.0
          %337 = vst [vmem:[#allocation2 + $0x2d0] sm:$0xff] 0.0
          %338 = vst [vmem:[#allocation2 + $0x2d8] sm:$0xff] 0.0
          %339 = vst [vmem:[#allocation2 + $0x2e0] sm:$0xff] 0.0
          %340 = vst [vmem:[#allocation2 + $0x2e8] sm:$0xff] 0.0
          %341 = vst [vmem:[#allocation2 + $0x2f0] sm:$0xff] 0.0
          %342 = vst [vmem:[#allocation2 + $0x2f8] sm:$0xff] 0.0
          %343 = vst [vmem:[#allocation2 + $0x300] sm:$0xff] 0.0
          %344 = vst [vmem:[#allocation2 + $0x308] sm:$0xff] 0.0
          %345 = vst [vmem:[#allocation2 + $0x310] sm:$0xff] 0.0
          %346 = vst [vmem:[#allocation2 + $0x318] sm:$0xff] 0.0
          %347 = vst [vmem:[#allocation2 + $0x320] sm:$0xff] 0.0
          %348 = vst [vmem:[#allocation2 + $0x328] sm:$0xff] 0.0
          %349 = vst [vmem:[#allocation2 + $0x330] sm:$0xff] 0.0
          %350 = vst [vmem:[#allocation2 + $0x338] sm:$0xff] 0.0
          %351 = vst [vmem:[#allocation2 + $0x340] sm:$0xff] 0.0
          %352 = vst [vmem:[#allocation2 + $0x348] sm:$0xff] 0.0
          %353 = vst [vmem:[#allocation2 + $0x350] sm:$0xff] 0.0
          %354 = vst [vmem:[#allocation2 + $0x358] sm:$0xff] 0.0
          %355 = vst [vmem:[#allocation2 + $0x360] sm:$0xff] 0.0
          %356 = vst [vmem:[#allocation2 + $0x368] sm:$0xff] 0.0
          %357 = vst [vmem:[#allocation2 + $0x370] sm:$0xff] 0.0
          %358 = vst [vmem:[#allocation2 + $0x378] sm:$0xff] 0.0
          %359 = vst [vmem:[#allocation2 + $0x380] sm:$0xff] 0.0
          %360 = vst [vmem:[#allocation2 + $0x388] sm:$0xff] 0.0
          %361 = vst [vmem:[#allocation2 + $0x390] sm:$0xff] 0.0
          %362 = vst [vmem:[#allocation2 + $0x398] sm:$0xff] 0.0
          %363 = vst [vmem:[#allocation2 + $0x3a0] sm:$0xff] 0.0
          %364 = vst [vmem:[#allocation2 + $0x3a8] sm:$0xff] 0.0
          %365 = vst [vmem:[#allocation2 + $0x3b0] sm:$0xff] 0.0
          %366 = vst [vmem:[#allocation2 + $0x3b8] sm:$0xff] 0.0
          %367 = vst [vmem:[#allocation2 + $0x3c0] sm:$0xff] 0.0
          %368 = vst [vmem:[#allocation2 + $0x3c8] sm:$0xff] 0.0
          %369 = vst [vmem:[#allocation2 + $0x3d0] sm:$0xff] 0.0
          %370 = vst [vmem:[#allocation2 + $0x3d8] sm:$0xff] 0.0
          %371 = vst [vmem:[#allocation2 + $0x3e0] sm:$0xff] 0.0
          %372 = vst [vmem:[#allocation2 + $0x3e8] sm:$0xff] 0.0
          %373 = vst [vmem:[#allocation2 + $0x3f0] sm:$0xff] 0.0
          %374 = vst [vmem:[#allocation2 + $0x3f8] sm:$0xff] 0.0
        $region40: #{tpu_custom_call.1} parent=27 // pred_fallthru
          _
        %v375 = vld [vmem:[#allocation2] sm:$0xff]
        %v376 = vld [vmem:[#allocation2 + $0x8] sm:$0xff]
        %v377 = vld [vmem:[#allocation2 + $0x10] sm:$0xff]
        %v378 = vld [vmem:[#allocation2 + $0x18] sm:$0xff]
        %v379 = vld [vmem:[#allocation2 + $0x20] sm:$0xff]
        %v380 = vld [vmem:[#allocation2 + $0x28] sm:$0xff]
        %v381 = vld [vmem:[#allocation2 + $0x30] sm:$0xff]
        %v382 = vld [vmem:[#allocation2 + $0x38] sm:$0xff]
        %v383 = vld [vmem:[#allocation2 + $0x40] sm:$0xff]
        %v384 = vld [vmem:[#allocation2 + $0x48] sm:$0xff]
        %v385 = vld [vmem:[#allocation2 + $0x50] sm:$0xff]
        %v386 = vld [vmem:[#allocation2 + $0x58] sm:$0xff]
        %v387 = vld [vmem:[#allocation2 + $0x60] sm:$0xff]
        %v388 = vld [vmem:[#allocation2 + $0x68] sm:$0xff]
        %v389 = vld [vmem:[#allocation2 + $0x70] sm:$0xff]
        %v390 = vld [vmem:[#allocation2 + $0x78] sm:$0xff]
        %v391 = vld [vmem:[#allocation2 + $0x80] sm:$0xff]
        %v392 = vld [vmem:[#allocation2 + $0x88] sm:$0xff]
        %v393 = vld [vmem:[#allocation2 + $0x90] sm:$0xff]
        %v394 = vld [vmem:[#allocation2 + $0x98] sm:$0xff]
        %v395 = vld [vmem:[#allocation2 + $0xa0] sm:$0xff]
        %v396 = vld [vmem:[#allocation2 + $0xa8] sm:$0xff]
        %v397 = vld [vmem:[#allocation2 + $0xb0] sm:$0xff]
        %v398 = vld [vmem:[#allocation2 + $0xb8] sm:$0xff]
        %v399 = vld [vmem:[#allocation2 + $0xc0] sm:$0xff]
        %v400 = vld [vmem:[#allocation2 + $0xc8] sm:$0xff]
        %v401 = vld [vmem:[#allocation2 + $0xd0] sm:$0xff]
        %v402 = vld [vmem:[#allocation2 + $0xd8] sm:$0xff]
        %v403 = vld [vmem:[#allocation2 + $0xe0] sm:$0xff]
        %v404 = vld [vmem:[#allocation2 + $0xe8] sm:$0xff]
        %v405 = vld [vmem:[#allocation2 + $0xf0] sm:$0xff]
        %v406 = vld [vmem:[#allocation2 + $0xf8] sm:$0xff]
        %v407 = vld [vmem:[#allocation2 + $0x100] sm:$0xff]
        %v408 = vld [vmem:[#allocation2 + $0x108] sm:$0xff]
        %v409 = vld [vmem:[#allocation2 + $0x110] sm:$0xff]
        %v410 = vld [vmem:[#allocation2 + $0x118] sm:$0xff]
        %v411 = vld [vmem:[#allocation2 + $0x120] sm:$0xff]
        %v412 = vld [vmem:[#allocation2 + $0x128] sm:$0xff]
        %v413 = vld [vmem:[#allocation2 + $0x130] sm:$0xff]
        %v414 = vld [vmem:[#allocation2 + $0x138] sm:$0xff]
        %v415 = vld [vmem:[#allocation2 + $0x140] sm:$0xff]
        %v416 = vld [vmem:[#allocation2 + $0x148] sm:$0xff]
        %v417 = vld [vmem:[#allocation2 + $0x150] sm:$0xff]
        %v418 = vld [vmem:[#allocation2 + $0x158] sm:$0xff]
        %v419 = vld [vmem:[#allocation2 + $0x160] sm:$0xff]
        %v420 = vld [vmem:[#allocation2 + $0x168] sm:$0xff]
        %v421 = vld [vmem:[#allocation2 + $0x170] sm:$0xff]
        %v422 = vld [vmem:[#allocation2 + $0x178] sm:$0xff]
        %v423 = vld [vmem:[#allocation2 + $0x180] sm:$0xff]
        %v424 = vld [vmem:[#allocation2 + $0x188] sm:$0xff]
        %v425 = vld [vmem:[#allocation2 + $0x190] sm:$0xff]
        %v426 = vld [vmem:[#allocation2 + $0x198] sm:$0xff]
        %v427 = vld [vmem:[#allocation2 + $0x1a0] sm:$0xff]
        %v428 = vld [vmem:[#allocation2 + $0x1a8] sm:$0xff]
        %v429 = vld [vmem:[#allocation2 + $0x1b0] sm:$0xff]
        %v430 = vld [vmem:[#allocation2 + $0x1b8] sm:$0xff]
        %v431 = vld [vmem:[#allocation2 + $0x1c0] sm:$0xff]
        %v432 = vld [vmem:[#allocation2 + $0x1c8] sm:$0xff]
        %v433 = vld [vmem:[#allocation2 + $0x1d0] sm:$0xff]
        %v434 = vld [vmem:[#allocation2 + $0x1d8] sm:$0xff]
        %v435 = vld [vmem:[#allocation2 + $0x1e0] sm:$0xff]
        %v436 = vld [vmem:[#allocation2 + $0x1e8] sm:$0xff]
        %v437 = vld [vmem:[#allocation2 + $0x1f0] sm:$0xff]
        %v438 = vld [vmem:[#allocation2 + $0x1f8] sm:$0xff]
        %v439 = vld [vmem:[#allocation2 + $0x200] sm:$0xff]
        %v440 = vld [vmem:[#allocation2 + $0x208] sm:$0xff]
        %v441 = vld [vmem:[#allocation2 + $0x210] sm:$0xff]
        %v442 = vld [vmem:[#allocation2 + $0x218] sm:$0xff]
        %v443 = vld [vmem:[#allocation2 + $0x220] sm:$0xff]
        %v444 = vld [vmem:[#allocation2 + $0x228] sm:$0xff]
        %v445 = vld [vmem:[#allocation2 + $0x230] sm:$0xff]
        %v446 = vld [vmem:[#allocation2 + $0x238] sm:$0xff]
        %v447 = vld [vmem:[#allocation2 + $0x240] sm:$0xff]
        %v448 = vld [vmem:[#allocation2 + $0x248] sm:$0xff]
        %v449 = vld [vmem:[#allocation2 + $0x250] sm:$0xff]
        %v450 = vld [vmem:[#allocation2 + $0x258] sm:$0xff]
        %v451 = vld [vmem:[#allocation2 + $0x260] sm:$0xff]
        %v452 = vld [vmem:[#allocation2 + $0x268] sm:$0xff]
        %v453 = vld [vmem:[#allocation2 + $0x270] sm:$0xff]
        %v454 = vld [vmem:[#allocation2 + $0x278] sm:$0xff]
        %v455 = vld [vmem:[#allocation2 + $0x280] sm:$0xff]
        %v456 = vld [vmem:[#allocation2 + $0x288] sm:$0xff]
        %v457 = vld [vmem:[#allocation2 + $0x290] sm:$0xff]
        %v458 = vld [vmem:[#allocation2 + $0x298] sm:$0xff]
        %v459 = vld [vmem:[#allocation2 + $0x2a0] sm:$0xff]
        %v460 = vld [vmem:[#allocation2 + $0x2a8] sm:$0xff]
        %v461 = vld [vmem:[#allocation2 + $0x2b0] sm:$0xff]
        %v462 = vld [vmem:[#allocation2 + $0x2b8] sm:$0xff]
        %v463 = vld [vmem:[#allocation2 + $0x2c0] sm:$0xff]
        %v464 = vld [vmem:[#allocation2 + $0x2c8] sm:$0xff]
        %v465 = vld [vmem:[#allocation2 + $0x2d0] sm:$0xff]
        %v466 = vld [vmem:[#allocation2 + $0x2d8] sm:$0xff]
        %v467 = vld [vmem:[#allocation2 + $0x2e0] sm:$0xff]
        %v468 = vld [vmem:[#allocation2 + $0x2e8] sm:$0xff]
        %v469 = vld [vmem:[#allocation2 + $0x2f0] sm:$0xff]
        %v470 = vld [vmem:[#allocation2 + $0x2f8] sm:$0xff]
        %v471 = vld [vmem:[#allocation2 + $0x300] sm:$0xff]
        %v472 = vld [vmem:[#allocation2 + $0x308] sm:$0xff]
        %v473 = vld [vmem:[#allocation2 + $0x310] sm:$0xff]
        %v474 = vld [vmem:[#allocation2 + $0x318] sm:$0xff]
        %v475 = vld [vmem:[#allocation2 + $0x320] sm:$0xff]
        %v476 = vld [vmem:[#allocation2 + $0x328] sm:$0xff]
        %v477 = vld [vmem:[#allocation2 + $0x330] sm:$0xff]
        %v478 = vld [vmem:[#allocation2 + $0x338] sm:$0xff]
        %v479 = vld [vmem:[#allocation2 + $0x340] sm:$0xff]
        %v480 = vld [vmem:[#allocation2 + $0x348] sm:$0xff]
        %v481 = vld [vmem:[#allocation2 + $0x350] sm:$0xff]
        %v482 = vld [vmem:[#allocation2 + $0x358] sm:$0xff]
        %v483 = vld [vmem:[#allocation2 + $0x360] sm:$0xff]
        %v484 = vld [vmem:[#allocation2 + $0x368] sm:$0xff]
        %v485 = vld [vmem:[#allocation2 + $0x370] sm:$0xff]
        %v486 = vld [vmem:[#allocation2 + $0x378] sm:$0xff]
        %v487 = vld [vmem:[#allocation2 + $0x380] sm:$0xff]
        %v488 = vld [vmem:[#allocation2 + $0x388] sm:$0xff]
        %v489 = vld [vmem:[#allocation2 + $0x390] sm:$0xff]
        %v490 = vld [vmem:[#allocation2 + $0x398] sm:$0xff]
        %v491 = vld [vmem:[#allocation2 + $0x3a0] sm:$0xff]
        %v492 = vld [vmem:[#allocation2 + $0x3a8] sm:$0xff]
        %v493 = vld [vmem:[#allocation2 + $0x3b0] sm:$0xff]
        %v494 = vld [vmem:[#allocation2 + $0x3b8] sm:$0xff]
        %v495 = vld [vmem:[#allocation2 + $0x3c0] sm:$0xff]
        %v496 = vld [vmem:[#allocation2 + $0x3c8] sm:$0xff]
        %v497 = vld [vmem:[#allocation2 + $0x3d0] sm:$0xff]
        %v498 = vld [vmem:[#allocation2 + $0x3d8] sm:$0xff]
        %v499 = vld [vmem:[#allocation2 + $0x3e0] sm:$0xff]
        %v500 = vld [vmem:[#allocation2 + $0x3e8] sm:$0xff]
        %v501 = vld [vmem:[#allocation2 + $0x3f0] sm:$0xff]
        %v502 = vld [vmem:[#allocation2 + $0x3f8] sm:$0xff]
        %v503 = vld [vmem:[%s200] sm:$0xff]
        %v504 = vld [vmem:[%s200 + $0x8] sm:$0xff]
        %v505 = vld [vmem:[%s200 + $0x10] sm:$0xff]
        %v506 = vld [vmem:[%s200 + $0x18] sm:$0xff]
        %v507 = vld [vmem:[%s200 + $0x20] sm:$0xff]
        %v508 = vld [vmem:[%s200 + $0x28] sm:$0xff]
        %v509 = vld [vmem:[%s200 + $0x30] sm:$0xff]
        %v510 = vld [vmem:[%s200 + $0x38] sm:$0xff]
        %v511 = vld [vmem:[%s200 + $0x40] sm:$0xff]
        %v512 = vld [vmem:[%s200 + $0x48] sm:$0xff]
        %v513 = vld [vmem:[%s200 + $0x50] sm:$0xff]
        %v514 = vld [vmem:[%s200 + $0x58] sm:$0xff]
        %v515 = vld [vmem:[%s200 + $0x60] sm:$0xff]
        %v516 = vld [vmem:[%s200 + $0x68] sm:$0xff]
        %v517 = vld [vmem:[%s200 + $0x70] sm:$0xff]
        %v518 = vld [vmem:[%s200 + $0x78] sm:$0xff]
        %v519 = vld [vmem:[%s200 + $0x80] sm:$0xff]
        %v520 = vld [vmem:[%s200 + $0x88] sm:$0xff]
        %v521 = vld [vmem:[%s200 + $0x90] sm:$0xff]
        %v522 = vld [vmem:[%s200 + $0x98] sm:$0xff]
        %v523 = vld [vmem:[%s200 + $0xa0] sm:$0xff]
        %v524 = vld [vmem:[%s200 + $0xa8] sm:$0xff]
        %v525 = vld [vmem:[%s200 + $0xb0] sm:$0xff]
        %v526 = vld [vmem:[%s200 + $0xb8] sm:$0xff]
        %v527 = vld [vmem:[%s200 + $0xc0] sm:$0xff]
        %v528 = vld [vmem:[%s200 + $0xc8] sm:$0xff]
        %v529 = vld [vmem:[%s200 + $0xd0] sm:$0xff]
        %v530 = vld [vmem:[%s200 + $0xd8] sm:$0xff]
        %v531 = vld [vmem:[%s200 + $0xe0] sm:$0xff]
        %v532 = vld [vmem:[%s200 + $0xe8] sm:$0xff]
        %v533 = vld [vmem:[%s200 + $0xf0] sm:$0xff]
        %v534 = vld [vmem:[%s200 + $0xf8] sm:$0xff]
        %v535 = vld [vmem:[%s200 + $0x100] sm:$0xff]
        %v536 = vld [vmem:[%s200 + $0x108] sm:$0xff]
        %v537 = vld [vmem:[%s200 + $0x110] sm:$0xff]
        %v538 = vld [vmem:[%s200 + $0x118] sm:$0xff]
        %v539 = vld [vmem:[%s200 + $0x120] sm:$0xff]
        %v540 = vld [vmem:[%s200 + $0x128] sm:$0xff]
        %v541 = vld [vmem:[%s200 + $0x130] sm:$0xff]
        %v542 = vld [vmem:[%s200 + $0x138] sm:$0xff]
        %v543 = vld [vmem:[%s200 + $0x140] sm:$0xff]
        %v544 = vld [vmem:[%s200 + $0x148] sm:$0xff]
        %v545 = vld [vmem:[%s200 + $0x150] sm:$0xff]
        %v546 = vld [vmem:[%s200 + $0x158] sm:$0xff]
        %v547 = vld [vmem:[%s200 + $0x160] sm:$0xff]
        %v548 = vld [vmem:[%s200 + $0x168] sm:$0xff]
        %v549 = vld [vmem:[%s200 + $0x170] sm:$0xff]
        %v550 = vld [vmem:[%s200 + $0x178] sm:$0xff]
        %v551 = vld [vmem:[%s200 + $0x180] sm:$0xff]
        %v552 = vld [vmem:[%s200 + $0x188] sm:$0xff]
        %v553 = vld [vmem:[%s200 + $0x190] sm:$0xff]
        %v554 = vld [vmem:[%s200 + $0x198] sm:$0xff]
        %v555 = vld [vmem:[%s200 + $0x1a0] sm:$0xff]
        %v556 = vld [vmem:[%s200 + $0x1a8] sm:$0xff]
        %v557 = vld [vmem:[%s200 + $0x1b0] sm:$0xff]
        %v558 = vld [vmem:[%s200 + $0x1b8] sm:$0xff]
        %v559 = vld [vmem:[%s200 + $0x1c0] sm:$0xff]
        %v560 = vld [vmem:[%s200 + $0x1c8] sm:$0xff]
        %v561 = vld [vmem:[%s200 + $0x1d0] sm:$0xff]
        %v562 = vld [vmem:[%s200 + $0x1d8] sm:$0xff]
        %v563 = vld [vmem:[%s200 + $0x1e0] sm:$0xff]
        %v564 = vld [vmem:[%s200 + $0x1e8] sm:$0xff]
        %v565 = vld [vmem:[%s200 + $0x1f0] sm:$0xff]
        %v566 = vld [vmem:[%s200 + $0x1f8] sm:$0xff]
        %v567 = vld [vmem:[%s210] sm:$0xff]
        %v568 = vld [vmem:[%s210 + $0x8] sm:$0xff]
        %v569 = vld [vmem:[%s210 + $0x10] sm:$0xff]
        %v570 = vld [vmem:[%s210 + $0x18] sm:$0xff]
        %v571 = vld [vmem:[%s210 + $0x20] sm:$0xff]
        %v572 = vld [vmem:[%s210 + $0x28] sm:$0xff]
        %v573 = vld [vmem:[%s210 + $0x30] sm:$0xff]
        %v574 = vld [vmem:[%s210 + $0x38] sm:$0xff]
        %v575 = vld [vmem:[%s210 + $0x40] sm:$0xff]
        %v576 = vld [vmem:[%s210 + $0x48] sm:$0xff]
        %v577 = vld [vmem:[%s210 + $0x50] sm:$0xff]
        %v578 = vld [vmem:[%s210 + $0x58] sm:$0xff]
        %v579 = vld [vmem:[%s210 + $0x60] sm:$0xff]
        %v580 = vld [vmem:[%s210 + $0x68] sm:$0xff]
        %v581 = vld [vmem:[%s210 + $0x70] sm:$0xff]
        %v582 = vld [vmem:[%s210 + $0x78] sm:$0xff]
        %v583 = vld [vmem:[%s210 + $0x80] sm:$0xff]
        %v584 = vld [vmem:[%s210 + $0x88] sm:$0xff]
        %v585 = vld [vmem:[%s210 + $0x90] sm:$0xff]
        %v586 = vld [vmem:[%s210 + $0x98] sm:$0xff]
        %v587 = vld [vmem:[%s210 + $0xa0] sm:$0xff]
        %v588 = vld [vmem:[%s210 + $0xa8] sm:$0xff]
        %v589 = vld [vmem:[%s210 + $0xb0] sm:$0xff]
        %v590 = vld [vmem:[%s210 + $0xb8] sm:$0xff]
        %v591 = vld [vmem:[%s210 + $0xc0] sm:$0xff]
        %v592 = vld [vmem:[%s210 + $0xc8] sm:$0xff]
        %v593 = vld [vmem:[%s210 + $0xd0] sm:$0xff]
        %v594 = vld [vmem:[%s210 + $0xd8] sm:$0xff]
        %v595 = vld [vmem:[%s210 + $0xe0] sm:$0xff]
        %v596 = vld [vmem:[%s210 + $0xe8] sm:$0xff]
        %v597 = vld [vmem:[%s210 + $0xf0] sm:$0xff]
        %v598 = vld [vmem:[%s210 + $0xf8] sm:$0xff]
        %v599 = vld [vmem:[%s210 + $0x100] sm:$0xff]
        %v600 = vld [vmem:[%s210 + $0x108] sm:$0xff]
        %v601 = vld [vmem:[%s210 + $0x110] sm:$0xff]
        %v602 = vld [vmem:[%s210 + $0x118] sm:$0xff]
        %v603 = vld [vmem:[%s210 + $0x120] sm:$0xff]
        %v604 = vld [vmem:[%s210 + $0x128] sm:$0xff]
        %v605 = vld [vmem:[%s210 + $0x130] sm:$0xff]
        %v606 = vld [vmem:[%s210 + $0x138] sm:$0xff]
        %v607 = vld [vmem:[%s210 + $0x140] sm:$0xff]
        %v608 = vld [vmem:[%s210 + $0x148] sm:$0xff]
        %v609 = vld [vmem:[%s210 + $0x150] sm:$0xff]
        %v610 = vld [vmem:[%s210 + $0x158] sm:$0xff]
        %v611 = vld [vmem:[%s210 + $0x160] sm:$0xff]
        %v612 = vld [vmem:[%s210 + $0x168] sm:$0xff]
        %v613 = vld [vmem:[%s210 + $0x170] sm:$0xff]
        %v614 = vld [vmem:[%s210 + $0x178] sm:$0xff]
        %v615 = vld [vmem:[%s210 + $0x180] sm:$0xff]
        %v616 = vld [vmem:[%s210 + $0x188] sm:$0xff]
        %v617 = vld [vmem:[%s210 + $0x190] sm:$0xff]
        %v618 = vld [vmem:[%s210 + $0x198] sm:$0xff]
        %v619 = vld [vmem:[%s210 + $0x1a0] sm:$0xff]
        %v620 = vld [vmem:[%s210 + $0x1a8] sm:$0xff]
        %v621 = vld [vmem:[%s210 + $0x1b0] sm:$0xff]
        %v622 = vld [vmem:[%s210 + $0x1b8] sm:$0xff]
        %v623 = vld [vmem:[%s210 + $0x1c0] sm:$0xff]
        %v624 = vld [vmem:[%s210 + $0x1c8] sm:$0xff]
        %v625 = vld [vmem:[%s210 + $0x1d0] sm:$0xff]
        %v626 = vld [vmem:[%s210 + $0x1d8] sm:$0xff]
        %v627 = vld [vmem:[%s210 + $0x1e0] sm:$0xff]
        %v628 = vld [vmem:[%s210 + $0x1e8] sm:$0xff]
        %v629 = vld [vmem:[%s210 + $0x1f0] sm:$0xff]
        %v630 = vld [vmem:[%s210 + $0x1f8] sm:$0xff]
        %v631 = vld [vmem:[%s210 + $0x200] sm:$0xff]
        %v632 = vld [vmem:[%s210 + $0x208] sm:$0xff]
        %v633 = vld [vmem:[%s210 + $0x210] sm:$0xff]
        %v634 = vld [vmem:[%s210 + $0x218] sm:$0xff]
        %v635 = vld [vmem:[%s210 + $0x220] sm:$0xff]
        %v636 = vld [vmem:[%s210 + $0x228] sm:$0xff]
        %v637 = vld [vmem:[%s210 + $0x230] sm:$0xff]
        %v638 = vld [vmem:[%s210 + $0x238] sm:$0xff]
        %v639 = vld [vmem:[%s210 + $0x240] sm:$0xff]
        %v640 = vld [vmem:[%s210 + $0x248] sm:$0xff]
        %v641 = vld [vmem:[%s210 + $0x250] sm:$0xff]
        %v642 = vld [vmem:[%s210 + $0x258] sm:$0xff]
        %v643 = vld [vmem:[%s210 + $0x260] sm:$0xff]
        %v644 = vld [vmem:[%s210 + $0x268] sm:$0xff]
        %v645 = vld [vmem:[%s210 + $0x270] sm:$0xff]
        %v646 = vld [vmem:[%s210 + $0x278] sm:$0xff]
        %v647 = vld [vmem:[%s210 + $0x280] sm:$0xff]
        %v648 = vld [vmem:[%s210 + $0x288] sm:$0xff]
        %v649 = vld [vmem:[%s210 + $0x290] sm:$0xff]
        %v650 = vld [vmem:[%s210 + $0x298] sm:$0xff]
        %v651 = vld [vmem:[%s210 + $0x2a0] sm:$0xff]
        %v652 = vld [vmem:[%s210 + $0x2a8] sm:$0xff]
        %v653 = vld [vmem:[%s210 + $0x2b0] sm:$0xff]
        %v654 = vld [vmem:[%s210 + $0x2b8] sm:$0xff]
        %v655 = vld [vmem:[%s210 + $0x2c0] sm:$0xff]
        %v656 = vld [vmem:[%s210 + $0x2c8] sm:$0xff]
        %v657 = vld [vmem:[%s210 + $0x2d0] sm:$0xff]
        %v658 = vld [vmem:[%s210 + $0x2d8] sm:$0xff]
        %v659 = vld [vmem:[%s210 + $0x2e0] sm:$0xff]
        %v660 = vld [vmem:[%s210 + $0x2e8] sm:$0xff]
        %v661 = vld [vmem:[%s210 + $0x2f0] sm:$0xff]
        %v662 = vld [vmem:[%s210 + $0x2f8] sm:$0xff]
        %v663 = vld [vmem:[%s210 + $0x300] sm:$0xff]
        %v664 = vld [vmem:[%s210 + $0x308] sm:$0xff]
        %v665 = vld [vmem:[%s210 + $0x310] sm:$0xff]
        %v666 = vld [vmem:[%s210 + $0x318] sm:$0xff]
        %v667 = vld [vmem:[%s210 + $0x320] sm:$0xff]
        %v668 = vld [vmem:[%s210 + $0x328] sm:$0xff]
        %v669 = vld [vmem:[%s210 + $0x330] sm:$0xff]
        %v670 = vld [vmem:[%s210 + $0x338] sm:$0xff]
        %v671 = vld [vmem:[%s210 + $0x340] sm:$0xff]
        %v672 = vld [vmem:[%s210 + $0x348] sm:$0xff]
        %v673 = vld [vmem:[%s210 + $0x350] sm:$0xff]
        %v674 = vld [vmem:[%s210 + $0x358] sm:$0xff]
        %v675 = vld [vmem:[%s210 + $0x360] sm:$0xff]
        %v676 = vld [vmem:[%s210 + $0x368] sm:$0xff]
        %v677 = vld [vmem:[%s210 + $0x370] sm:$0xff]
        %v678 = vld [vmem:[%s210 + $0x378] sm:$0xff]
        %v679 = vld [vmem:[%s210 + $0x380] sm:$0xff]
        %v680 = vld [vmem:[%s210 + $0x388] sm:$0xff]
        %v681 = vld [vmem:[%s210 + $0x390] sm:$0xff]
        %v682 = vld [vmem:[%s210 + $0x398] sm:$0xff]
        %v683 = vld [vmem:[%s210 + $0x3a0] sm:$0xff]
        %v684 = vld [vmem:[%s210 + $0x3a8] sm:$0xff]
        %v685 = vld [vmem:[%s210 + $0x3b0] sm:$0xff]
        %v686 = vld [vmem:[%s210 + $0x3b8] sm:$0xff]
        %v687 = vld [vmem:[%s210 + $0x3c0] sm:$0xff]
        %v688 = vld [vmem:[%s210 + $0x3c8] sm:$0xff]
        %v689 = vld [vmem:[%s210 + $0x3d0] sm:$0xff]
        %v690 = vld [vmem:[%s210 + $0x3d8] sm:$0xff]
        %v691 = vld [vmem:[%s210 + $0x3e0] sm:$0xff]
        %v692 = vld [vmem:[%s210 + $0x3e8] sm:$0xff]
        %v693 = vld [vmem:[%s210 + $0x3f0] sm:$0xff]
        %v694 = vld [vmem:[%s210 + $0x3f8] sm:$0xff]
        %v759 = vunpack.c.l.b16 %v503
        %v760 = vunpack.c.h.b16 %v503
        %v761 = vunpack.c.l.b16 %v504
        %v762 = vunpack.c.h.b16 %v504
        %v763 = vunpack.c.l.b16 %v505
        %v764 = vunpack.c.h.b16 %v505
        %v765 = vunpack.c.l.b16 %v506
        %v766 = vunpack.c.h.b16 %v506
        %v767 = vunpack.c.l.b16 %v507
        %v768 = vunpack.c.h.b16 %v507
        %v769 = vunpack.c.l.b16 %v508
        %v770 = vunpack.c.h.b16 %v508
        %v771 = vunpack.c.l.b16 %v509
        %v772 = vunpack.c.h.b16 %v509
        %v773 = vunpack.c.l.b16 %v510
        %v774 = vunpack.c.h.b16 %v510
        %v775 = vunpack.c.l.b16 %v511
        %v776 = vunpack.c.h.b16 %v511
        %v777 = vunpack.c.l.b16 %v512
        %v778 = vunpack.c.h.b16 %v512
        %v779 = vunpack.c.l.b16 %v513
        %v780 = vunpack.c.h.b16 %v513
        %v781 = vunpack.c.l.b16 %v514
        %v782 = vunpack.c.h.b16 %v514
        %v783 = vunpack.c.l.b16 %v515
        %v784 = vunpack.c.h.b16 %v515
        %v785 = vunpack.c.l.b16 %v516
        %v786 = vunpack.c.h.b16 %v516
        %v787 = vunpack.c.l.b16 %v517
        %v788 = vunpack.c.h.b16 %v517
        %v789 = vunpack.c.l.b16 %v518
        %v790 = vunpack.c.h.b16 %v518
        %v791 = vunpack.c.l.b16 %v519
        %v792 = vunpack.c.h.b16 %v519
        %v793 = vunpack.c.l.b16 %v520
        %v794 = vunpack.c.h.b16 %v520
        %v795 = vunpack.c.l.b16 %v521
        %v796 = vunpack.c.h.b16 %v521
        %v797 = vunpack.c.l.b16 %v522
        %v798 = vunpack.c.h.b16 %v522
        %v799 = vunpack.c.l.b16 %v523
        %v800 = vunpack.c.h.b16 %v523
        %v801 = vunpack.c.l.b16 %v524
        %v802 = vunpack.c.h.b16 %v524
        %v803 = vunpack.c.l.b16 %v525
        %v804 = vunpack.c.h.b16 %v525
        %v805 = vunpack.c.l.b16 %v526
        %v806 = vunpack.c.h.b16 %v526
        %v807 = vunpack.c.l.b16 %v527
        %v808 = vunpack.c.h.b16 %v527
        %v809 = vunpack.c.l.b16 %v528
        %v810 = vunpack.c.h.b16 %v528
        %v811 = vunpack.c.l.b16 %v529
        %v812 = vunpack.c.h.b16 %v529
        %v813 = vunpack.c.l.b16 %v530
        %v814 = vunpack.c.h.b16 %v530
        %v815 = vunpack.c.l.b16 %v531
        %v816 = vunpack.c.h.b16 %v531
        %v817 = vunpack.c.l.b16 %v532
        %v818 = vunpack.c.h.b16 %v532
        %v819 = vunpack.c.l.b16 %v533
        %v820 = vunpack.c.h.b16 %v533
        %v821 = vunpack.c.l.b16 %v534
        %v822 = vunpack.c.h.b16 %v534
        %v823 = vunpack.c.l.b16 %v535
        %v824 = vunpack.c.h.b16 %v535
        %v825 = vunpack.c.l.b16 %v536
        %v826 = vunpack.c.h.b16 %v536
        %v827 = vunpack.c.l.b16 %v537
        %v828 = vunpack.c.h.b16 %v537
        %v829 = vunpack.c.l.b16 %v538
        %v830 = vunpack.c.h.b16 %v538
        %v831 = vunpack.c.l.b16 %v539
        %v832 = vunpack.c.h.b16 %v539
        %v833 = vunpack.c.l.b16 %v540
        %v834 = vunpack.c.h.b16 %v540
        %v835 = vunpack.c.l.b16 %v541
        %v836 = vunpack.c.h.b16 %v541
        %v837 = vunpack.c.l.b16 %v542
        %v838 = vunpack.c.h.b16 %v542
        %v839 = vunpack.c.l.b16 %v543
        %v840 = vunpack.c.h.b16 %v543
        %v841 = vunpack.c.l.b16 %v544
        %v842 = vunpack.c.h.b16 %v544
        %v843 = vunpack.c.l.b16 %v545
        %v844 = vunpack.c.h.b16 %v545
        %v845 = vunpack.c.l.b16 %v546
        %v846 = vunpack.c.h.b16 %v546
        %v847 = vunpack.c.l.b16 %v547
        %v848 = vunpack.c.h.b16 %v547
        %v849 = vunpack.c.l.b16 %v548
        %v850 = vunpack.c.h.b16 %v548
        %v851 = vunpack.c.l.b16 %v549
        %v852 = vunpack.c.h.b16 %v549
        %v853 = vunpack.c.l.b16 %v550
        %v854 = vunpack.c.h.b16 %v550
        %v855 = vunpack.c.l.b16 %v551
        %v856 = vunpack.c.h.b16 %v551
        %v857 = vunpack.c.l.b16 %v552
        %v858 = vunpack.c.h.b16 %v552
        %v859 = vunpack.c.l.b16 %v553
        %v860 = vunpack.c.h.b16 %v553
        %v861 = vunpack.c.l.b16 %v554
        %v862 = vunpack.c.h.b16 %v554
        %v863 = vunpack.c.l.b16 %v555
        %v864 = vunpack.c.h.b16 %v555
        %v865 = vunpack.c.l.b16 %v556
        %v866 = vunpack.c.h.b16 %v556
        %v867 = vunpack.c.l.b16 %v557
        %v868 = vunpack.c.h.b16 %v557
        %v869 = vunpack.c.l.b16 %v558
        %v870 = vunpack.c.h.b16 %v558
        %v871 = vunpack.c.l.b16 %v559
        %v872 = vunpack.c.h.b16 %v559
        %v873 = vunpack.c.l.b16 %v560
        %v874 = vunpack.c.h.b16 %v560
        %v875 = vunpack.c.l.b16 %v561
        %v876 = vunpack.c.h.b16 %v561
        %v877 = vunpack.c.l.b16 %v562
        %v878 = vunpack.c.h.b16 %v562
        %v879 = vunpack.c.l.b16 %v563
        %v880 = vunpack.c.h.b16 %v563
        %v881 = vunpack.c.l.b16 %v564
        %v882 = vunpack.c.h.b16 %v564
        %v883 = vunpack.c.l.b16 %v565
        %v884 = vunpack.c.h.b16 %v565
        %v885 = vunpack.c.l.b16 %v566
        %v886 = vunpack.c.h.b16 %v566
        %v887 = vpack.c.b16 %v763, %v759
        %v888 = vpack.c.b16 %v764, %v760
        %v889 = vpack.c.b16 %v765, %v761
        %v890 = vpack.c.b16 %v766, %v762
        %v891 = vpack.c.b16 %v771, %v767
        %v892 = vpack.c.b16 %v772, %v768
        %v893 = vpack.c.b16 %v773, %v769
        %v894 = vpack.c.b16 %v774, %v770
        %v895 = vpack.c.b16 %v779, %v775
        %v896 = vpack.c.b16 %v780, %v776
        %v897 = vpack.c.b16 %v781, %v777
        %v898 = vpack.c.b16 %v782, %v778
        %v899 = vpack.c.b16 %v787, %v783
        %v900 = vpack.c.b16 %v788, %v784
        %v901 = vpack.c.b16 %v789, %v785
        %v902 = vpack.c.b16 %v790, %v786
        %v903 = vpack.c.b16 %v795, %v791
        %v904 = vpack.c.b16 %v796, %v792
        %v905 = vpack.c.b16 %v797, %v793
        %v906 = vpack.c.b16 %v798, %v794
        %v907 = vpack.c.b16 %v803, %v799
        %v908 = vpack.c.b16 %v804, %v800
        %v909 = vpack.c.b16 %v805, %v801
        %v910 = vpack.c.b16 %v806, %v802
        %v911 = vpack.c.b16 %v811, %v807
        %v912 = vpack.c.b16 %v812, %v808
        %v913 = vpack.c.b16 %v813, %v809
        %v914 = vpack.c.b16 %v814, %v810
        %v915 = vpack.c.b16 %v819, %v815
        %v916 = vpack.c.b16 %v820, %v816
        %v917 = vpack.c.b16 %v821, %v817
        %v918 = vpack.c.b16 %v822, %v818
        %v919 = vpack.c.b16 %v827, %v823
        %v920 = vpack.c.b16 %v828, %v824
        %v921 = vpack.c.b16 %v829, %v825
        %v922 = vpack.c.b16 %v830, %v826
        %v923 = vpack.c.b16 %v835, %v831
        %v924 = vpack.c.b16 %v836, %v832
        %v925 = vpack.c.b16 %v837, %v833
        %v926 = vpack.c.b16 %v838, %v834
        %v927 = vpack.c.b16 %v843, %v839
        %v928 = vpack.c.b16 %v844, %v840
        %v929 = vpack.c.b16 %v845, %v841
        %v930 = vpack.c.b16 %v846, %v842
        %v931 = vpack.c.b16 %v851, %v847
        %v932 = vpack.c.b16 %v852, %v848
        %v933 = vpack.c.b16 %v853, %v849
        %v934 = vpack.c.b16 %v854, %v850
        %v935 = vpack.c.b16 %v859, %v855
        %v936 = vpack.c.b16 %v860, %v856
        %v937 = vpack.c.b16 %v861, %v857
        %v938 = vpack.c.b16 %v862, %v858
        %v939 = vpack.c.b16 %v867, %v863
        %v940 = vpack.c.b16 %v868, %v864
        %v941 = vpack.c.b16 %v869, %v865
        %v942 = vpack.c.b16 %v870, %v866
        %v943 = vpack.c.b16 %v875, %v871
        %v944 = vpack.c.b16 %v876, %v872
        %v945 = vpack.c.b16 %v877, %v873
        %v946 = vpack.c.b16 %v878, %v874
        %v947 = vpack.c.b16 %v883, %v879
        %v948 = vpack.c.b16 %v884, %v880
        %v949 = vpack.c.b16 %v885, %v881
        %v950 = vpack.c.b16 %v886, %v882
        %v1143 = vunpack.c.l.b16 %v567
        %v1144 = vunpack.c.h.b16 %v567
        %v1145 = vunpack.c.l.b16 %v568
        %v1146 = vunpack.c.h.b16 %v568
        %v1147 = vunpack.c.l.b16 %v569
        %v1148 = vunpack.c.h.b16 %v569
        %v1149 = vunpack.c.l.b16 %v570
        %v1150 = vunpack.c.h.b16 %v570
        %v1151 = vunpack.c.l.b16 %v571
        %v1152 = vunpack.c.h.b16 %v571
        %v1153 = vunpack.c.l.b16 %v572
        %v1154 = vunpack.c.h.b16 %v572
        %v1155 = vunpack.c.l.b16 %v573
        %v1156 = vunpack.c.h.b16 %v573
        %v1157 = vunpack.c.l.b16 %v574
        %v1158 = vunpack.c.h.b16 %v574
        %v1159 = vunpack.c.l.b16 %v575
        %v1160 = vunpack.c.h.b16 %v575
        %v1161 = vunpack.c.l.b16 %v576
        %v1162 = vunpack.c.h.b16 %v576
        %v1163 = vunpack.c.l.b16 %v577
        %v1164 = vunpack.c.h.b16 %v577
        %v1165 = vunpack.c.l.b16 %v578
        %v1166 = vunpack.c.h.b16 %v578
        %v1167 = vunpack.c.l.b16 %v579
        %v1168 = vunpack.c.h.b16 %v579
        %v1169 = vunpack.c.l.b16 %v580
        %v1170 = vunpack.c.h.b16 %v580
        %v1171 = vunpack.c.l.b16 %v581
        %v1172 = vunpack.c.h.b16 %v581
        %v1173 = vunpack.c.l.b16 %v582
        %v1174 = vunpack.c.h.b16 %v582
        %v1175 = vunpack.c.l.b16 %v583
        %v1176 = vunpack.c.h.b16 %v583
        %v1177 = vunpack.c.l.b16 %v584
        %v1178 = vunpack.c.h.b16 %v584
        %v1179 = vunpack.c.l.b16 %v585
        %v1180 = vunpack.c.h.b16 %v585
        %v1181 = vunpack.c.l.b16 %v586
        %v1182 = vunpack.c.h.b16 %v586
        %v1183 = vunpack.c.l.b16 %v587
        %v1184 = vunpack.c.h.b16 %v587
        %v1185 = vunpack.c.l.b16 %v588
        %v1186 = vunpack.c.h.b16 %v588
        %v1187 = vunpack.c.l.b16 %v589
        %v1188 = vunpack.c.h.b16 %v589
        %v1189 = vunpack.c.l.b16 %v590
        %v1190 = vunpack.c.h.b16 %v590
        %v1191 = vunpack.c.l.b16 %v591
        %v1192 = vunpack.c.h.b16 %v591
        %v1193 = vunpack.c.l.b16 %v592
        %v1194 = vunpack.c.h.b16 %v592
        %v1195 = vunpack.c.l.b16 %v593
        %v1196 = vunpack.c.h.b16 %v593
        %v1197 = vunpack.c.l.b16 %v594
        %v1198 = vunpack.c.h.b16 %v594
        %v1199 = vunpack.c.l.b16 %v595
        %v1200 = vunpack.c.h.b16 %v595
        %v1201 = vunpack.c.l.b16 %v596
        %v1202 = vunpack.c.h.b16 %v596
        %v1203 = vunpack.c.l.b16 %v597
        %v1204 = vunpack.c.h.b16 %v597
        %v1205 = vunpack.c.l.b16 %v598
        %v1206 = vunpack.c.h.b16 %v598
        %v1207 = vunpack.c.l.b16 %v599
        %v1208 = vunpack.c.h.b16 %v599
        %v1209 = vunpack.c.l.b16 %v600
        %v1210 = vunpack.c.h.b16 %v600
        %v1211 = vunpack.c.l.b16 %v601
        %v1212 = vunpack.c.h.b16 %v601
        %v1213 = vunpack.c.l.b16 %v602
        %v1214 = vunpack.c.h.b16 %v602
        %v1215 = vunpack.c.l.b16 %v603
        %v1216 = vunpack.c.h.b16 %v603
        %v1217 = vunpack.c.l.b16 %v604
        %v1218 = vunpack.c.h.b16 %v604
        %v1219 = vunpack.c.l.b16 %v605
        %v1220 = vunpack.c.h.b16 %v605
        %v1221 = vunpack.c.l.b16 %v606
        %v1222 = vunpack.c.h.b16 %v606
        %v1223 = vunpack.c.l.b16 %v607
        %v1224 = vunpack.c.h.b16 %v607
        %v1225 = vunpack.c.l.b16 %v608
        %v1226 = vunpack.c.h.b16 %v608
        %v1227 = vunpack.c.l.b16 %v609
        %v1228 = vunpack.c.h.b16 %v609
        %v1229 = vunpack.c.l.b16 %v610
        %v1230 = vunpack.c.h.b16 %v610
        %v1231 = vunpack.c.l.b16 %v611
        %v1232 = vunpack.c.h.b16 %v611
        %v1233 = vunpack.c.l.b16 %v612
        %v1234 = vunpack.c.h.b16 %v612
        %v1235 = vunpack.c.l.b16 %v613
        %v1236 = vunpack.c.h.b16 %v613
        %v1237 = vunpack.c.l.b16 %v614
        %v1238 = vunpack.c.h.b16 %v614
        %v1239 = vunpack.c.l.b16 %v615
        %v1240 = vunpack.c.h.b16 %v615
        %v1241 = vunpack.c.l.b16 %v616
        %v1242 = vunpack.c.h.b16 %v616
        %v1243 = vunpack.c.l.b16 %v617
        %v1244 = vunpack.c.h.b16 %v617
        %v1245 = vunpack.c.l.b16 %v618
        %v1246 = vunpack.c.h.b16 %v618
        %v1247 = vunpack.c.l.b16 %v619
        %v1248 = vunpack.c.h.b16 %v619
        %v1249 = vunpack.c.l.b16 %v620
        %v1250 = vunpack.c.h.b16 %v620
        %v1251 = vunpack.c.l.b16 %v621
        %v1252 = vunpack.c.h.b16 %v621
        %v1253 = vunpack.c.l.b16 %v622
        %v1254 = vunpack.c.h.b16 %v622
        %v1255 = vunpack.c.l.b16 %v623
        %v1256 = vunpack.c.h.b16 %v623
        %v1257 = vunpack.c.l.b16 %v624
        %v1258 = vunpack.c.h.b16 %v624
        %v1259 = vunpack.c.l.b16 %v625
        %v1260 = vunpack.c.h.b16 %v625
        %v1261 = vunpack.c.l.b16 %v626
        %v1262 = vunpack.c.h.b16 %v626
        %v1263 = vunpack.c.l.b16 %v627
        %v1264 = vunpack.c.h.b16 %v627
        %v1265 = vunpack.c.l.b16 %v628
        %v1266 = vunpack.c.h.b16 %v628
        %v1267 = vunpack.c.l.b16 %v629
        %v1268 = vunpack.c.h.b16 %v629
        %v1269 = vunpack.c.l.b16 %v630
        %v1270 = vunpack.c.h.b16 %v630
        %v1271 = vunpack.c.l.b16 %v631
        %v1272 = vunpack.c.h.b16 %v631
        %v1273 = vunpack.c.l.b16 %v632
        %v1274 = vunpack.c.h.b16 %v632
        %v1275 = vunpack.c.l.b16 %v633
        %v1276 = vunpack.c.h.b16 %v633
        %v1277 = vunpack.c.l.b16 %v634
        %v1278 = vunpack.c.h.b16 %v634
        %v1279 = vunpack.c.l.b16 %v635
        %v1280 = vunpack.c.h.b16 %v635
        %v1281 = vunpack.c.l.b16 %v636
        %v1282 = vunpack.c.h.b16 %v636
        %v1283 = vunpack.c.l.b16 %v637
        %v1284 = vunpack.c.h.b16 %v637
        %v1285 = vunpack.c.l.b16 %v638
        %v1286 = vunpack.c.h.b16 %v638
        %v1287 = vunpack.c.l.b16 %v639
        %v1288 = vunpack.c.h.b16 %v639
        %v1289 = vunpack.c.l.b16 %v640
        %v1290 = vunpack.c.h.b16 %v640
        %v1291 = vunpack.c.l.b16 %v641
        %v1292 = vunpack.c.h.b16 %v641
        %v1293 = vunpack.c.l.b16 %v642
        %v1294 = vunpack.c.h.b16 %v642
        %v1295 = vunpack.c.l.b16 %v643
        %v1296 = vunpack.c.h.b16 %v643
        %v1297 = vunpack.c.l.b16 %v644
        %v1298 = vunpack.c.h.b16 %v644
        %v1299 = vunpack.c.l.b16 %v645
        %v1300 = vunpack.c.h.b16 %v645
        %v1301 = vunpack.c.l.b16 %v646
        %v1302 = vunpack.c.h.b16 %v646
        %v1303 = vunpack.c.l.b16 %v647
        %v1304 = vunpack.c.h.b16 %v647
        %v1305 = vunpack.c.l.b16 %v648
        %v1306 = vunpack.c.h.b16 %v648
        %v1307 = vunpack.c.l.b16 %v649
        %v1308 = vunpack.c.h.b16 %v649
        %v1309 = vunpack.c.l.b16 %v650
        %v1310 = vunpack.c.h.b16 %v650
        %v1311 = vunpack.c.l.b16 %v651
        %v1312 = vunpack.c.h.b16 %v651
        %v1313 = vunpack.c.l.b16 %v652
        %v1314 = vunpack.c.h.b16 %v652
        %v1315 = vunpack.c.l.b16 %v653
        %v1316 = vunpack.c.h.b16 %v653
        %v1317 = vunpack.c.l.b16 %v654
        %v1318 = vunpack.c.h.b16 %v654
        %v1319 = vunpack.c.l.b16 %v655
        %v1320 = vunpack.c.h.b16 %v655
        %v1321 = vunpack.c.l.b16 %v656
        %v1322 = vunpack.c.h.b16 %v656
        %v1323 = vunpack.c.l.b16 %v657
        %v1324 = vunpack.c.h.b16 %v657
        %v1325 = vunpack.c.l.b16 %v658
        %v1326 = vunpack.c.h.b16 %v658
        %v1327 = vunpack.c.l.b16 %v659
        %v1328 = vunpack.c.h.b16 %v659
        %v1329 = vunpack.c.l.b16 %v660
        %v1330 = vunpack.c.h.b16 %v660
        %v1331 = vunpack.c.l.b16 %v661
        %v1332 = vunpack.c.h.b16 %v661
        %v1333 = vunpack.c.l.b16 %v662
        %v1334 = vunpack.c.h.b16 %v662
        %v1335 = vunpack.c.l.b16 %v663
        %v1336 = vunpack.c.h.b16 %v663
        %v1337 = vunpack.c.l.b16 %v664
        %v1338 = vunpack.c.h.b16 %v664
        %v1339 = vunpack.c.l.b16 %v665
        %v1340 = vunpack.c.h.b16 %v665
        %v1341 = vunpack.c.l.b16 %v666
        %v1342 = vunpack.c.h.b16 %v666
        %v1343 = vunpack.c.l.b16 %v667
        %v1344 = vunpack.c.h.b16 %v667
        %v1345 = vunpack.c.l.b16 %v668
        %v1346 = vunpack.c.h.b16 %v668
        %v1347 = vunpack.c.l.b16 %v669
        %v1348 = vunpack.c.h.b16 %v669
        %v1349 = vunpack.c.l.b16 %v670
        %v1350 = vunpack.c.h.b16 %v670
        %v1351 = vunpack.c.l.b16 %v671
        %v1352 = vunpack.c.h.b16 %v671
        %v1353 = vunpack.c.l.b16 %v672
        %v1354 = vunpack.c.h.b16 %v672
        %v1355 = vunpack.c.l.b16 %v673
        %v1356 = vunpack.c.h.b16 %v673
        %v1357 = vunpack.c.l.b16 %v674
        %v1358 = vunpack.c.h.b16 %v674
        %v1359 = vunpack.c.l.b16 %v675
        %v1360 = vunpack.c.h.b16 %v675
        %v1361 = vunpack.c.l.b16 %v676
        %v1362 = vunpack.c.h.b16 %v676
        %v1363 = vunpack.c.l.b16 %v677
        %v1364 = vunpack.c.h.b16 %v677
        %v1365 = vunpack.c.l.b16 %v678
        %v1366 = vunpack.c.h.b16 %v678
        %v1367 = vunpack.c.l.b16 %v679
        %v1368 = vunpack.c.h.b16 %v679
        %v1369 = vunpack.c.l.b16 %v680
        %v1370 = vunpack.c.h.b16 %v680
        %v1371 = vunpack.c.l.b16 %v681
        %v1372 = vunpack.c.h.b16 %v681
        %v1373 = vunpack.c.l.b16 %v682
        %v1374 = vunpack.c.h.b16 %v682
        %v1375 = vunpack.c.l.b16 %v683
        %v1376 = vunpack.c.h.b16 %v683
        %v1377 = vunpack.c.l.b16 %v684
        %v1378 = vunpack.c.h.b16 %v684
        %v1379 = vunpack.c.l.b16 %v685
        %v1380 = vunpack.c.h.b16 %v685
        %v1381 = vunpack.c.l.b16 %v686
        %v1382 = vunpack.c.h.b16 %v686
        %v1383 = vunpack.c.l.b16 %v687
        %v1384 = vunpack.c.h.b16 %v687
        %v1385 = vunpack.c.l.b16 %v688
        %v1386 = vunpack.c.h.b16 %v688
        %v1387 = vunpack.c.l.b16 %v689
        %v1388 = vunpack.c.h.b16 %v689
        %v1389 = vunpack.c.l.b16 %v690
        %v1390 = vunpack.c.h.b16 %v690
        %v1391 = vunpack.c.l.b16 %v691
        %v1392 = vunpack.c.h.b16 %v691
        %v1393 = vunpack.c.l.b16 %v692
        %v1394 = vunpack.c.h.b16 %v692
        %v1395 = vunpack.c.l.b16 %v693
        %v1396 = vunpack.c.h.b16 %v693
        %v1397 = vunpack.c.l.b16 %v694
        %v1398 = vunpack.c.h.b16 %v694
        %v1399 = vpack.c.b16 %v1147, %v1143
        %v1400 = vpack.c.b16 %v1148, %v1144
        %v1401 = vpack.c.b16 %v1149, %v1145
        %v1402 = vpack.c.b16 %v1150, %v1146
        %v1403 = vpack.c.b16 %v1155, %v1151
        %v1404 = vpack.c.b16 %v1156, %v1152
        %v1405 = vpack.c.b16 %v1157, %v1153
        %v1406 = vpack.c.b16 %v1158, %v1154
        %v1407 = vpack.c.b16 %v1163, %v1159
        %v1408 = vpack.c.b16 %v1164, %v1160
        %v1409 = vpack.c.b16 %v1165, %v1161
        %v1410 = vpack.c.b16 %v1166, %v1162
        %v1411 = vpack.c.b16 %v1171, %v1167
        %v1412 = vpack.c.b16 %v1172, %v1168
        %v1413 = vpack.c.b16 %v1173, %v1169
        %v1414 = vpack.c.b16 %v1174, %v1170
        %v1415 = vpack.c.b16 %v1179, %v1175
        %v1416 = vpack.c.b16 %v1180, %v1176
        %v1417 = vpack.c.b16 %v1181, %v1177
        %v1418 = vpack.c.b16 %v1182, %v1178
        %v1419 = vpack.c.b16 %v1187, %v1183
        %v1420 = vpack.c.b16 %v1188, %v1184
        %v1421 = vpack.c.b16 %v1189, %v1185
        %v1422 = vpack.c.b16 %v1190, %v1186
        %v1423 = vpack.c.b16 %v1195, %v1191
        %v1424 = vpack.c.b16 %v1196, %v1192
        %v1425 = vpack.c.b16 %v1197, %v1193
        %v1426 = vpack.c.b16 %v1198, %v1194
        %v1427 = vpack.c.b16 %v1203, %v1199
        %v1428 = vpack.c.b16 %v1204, %v1200
        %v1429 = vpack.c.b16 %v1205, %v1201
        %v1430 = vpack.c.b16 %v1206, %v1202
        %v1431 = vpack.c.b16 %v1211, %v1207
        %v1432 = vpack.c.b16 %v1212, %v1208
        %v1433 = vpack.c.b16 %v1213, %v1209
        %v1434 = vpack.c.b16 %v1214, %v1210
        %v1435 = vpack.c.b16 %v1219, %v1215
        %v1436 = vpack.c.b16 %v1220, %v1216
        %v1437 = vpack.c.b16 %v1221, %v1217
        %v1438 = vpack.c.b16 %v1222, %v1218
        %v1439 = vpack.c.b16 %v1227, %v1223
        %v1440 = vpack.c.b16 %v1228, %v1224
        %v1441 = vpack.c.b16 %v1229, %v1225
        %v1442 = vpack.c.b16 %v1230, %v1226
        %v1443 = vpack.c.b16 %v1235, %v1231
        %v1444 = vpack.c.b16 %v1236, %v1232
        %v1445 = vpack.c.b16 %v1237, %v1233
        %v1446 = vpack.c.b16 %v1238, %v1234
        %v1447 = vpack.c.b16 %v1243, %v1239
        %v1448 = vpack.c.b16 %v1244, %v1240
        %v1449 = vpack.c.b16 %v1245, %v1241
        %v1450 = vpack.c.b16 %v1246, %v1242
        %v1451 = vpack.c.b16 %v1251, %v1247
        %v1452 = vpack.c.b16 %v1252, %v1248
        %v1453 = vpack.c.b16 %v1253, %v1249
        %v1454 = vpack.c.b16 %v1254, %v1250
        %v1455 = vpack.c.b16 %v1259, %v1255
        %v1456 = vpack.c.b16 %v1260, %v1256
        %v1457 = vpack.c.b16 %v1261, %v1257
        %v1458 = vpack.c.b16 %v1262, %v1258
        %v1459 = vpack.c.b16 %v1267, %v1263
        %v1460 = vpack.c.b16 %v1268, %v1264
        %v1461 = vpack.c.b16 %v1269, %v1265
        %v1462 = vpack.c.b16 %v1270, %v1266
        %v1463 = vpack.c.b16 %v1275, %v1271
        %v1464 = vpack.c.b16 %v1276, %v1272
        %v1465 = vpack.c.b16 %v1277, %v1273
        %v1466 = vpack.c.b16 %v1278, %v1274
        %v1467 = vpack.c.b16 %v1283, %v1279
        %v1468 = vpack.c.b16 %v1284, %v1280
        %v1469 = vpack.c.b16 %v1285, %v1281
        %v1470 = vpack.c.b16 %v1286, %v1282
        %v1471 = vpack.c.b16 %v1291, %v1287
        %v1472 = vpack.c.b16 %v1292, %v1288
        %v1473 = vpack.c.b16 %v1293, %v1289
        %v1474 = vpack.c.b16 %v1294, %v1290
        %v1475 = vpack.c.b16 %v1299, %v1295
        %v1476 = vpack.c.b16 %v1300, %v1296
        %v1477 = vpack.c.b16 %v1301, %v1297
        %v1478 = vpack.c.b16 %v1302, %v1298
        %v1479 = vpack.c.b16 %v1307, %v1303
        %v1480 = vpack.c.b16 %v1308, %v1304
        %v1481 = vpack.c.b16 %v1309, %v1305
        %v1482 = vpack.c.b16 %v1310, %v1306
        %v1483 = vpack.c.b16 %v1315, %v1311
        %v1484 = vpack.c.b16 %v1316, %v1312
        %v1485 = vpack.c.b16 %v1317, %v1313
        %v1486 = vpack.c.b16 %v1318, %v1314
        %v1487 = vpack.c.b16 %v1323, %v1319
        %v1488 = vpack.c.b16 %v1324, %v1320
        %v1489 = vpack.c.b16 %v1325, %v1321
        %v1490 = vpack.c.b16 %v1326, %v1322
        %v1491 = vpack.c.b16 %v1331, %v1327
        %v1492 = vpack.c.b16 %v1332, %v1328
        %v1493 = vpack.c.b16 %v1333, %v1329
        %v1494 = vpack.c.b16 %v1334, %v1330
        %v1495 = vpack.c.b16 %v1339, %v1335
        %v1496 = vpack.c.b16 %v1340, %v1336
        %v1497 = vpack.c.b16 %v1341, %v1337
        %v1498 = vpack.c.b16 %v1342, %v1338
        %v1499 = vpack.c.b16 %v1347, %v1343
        %v1500 = vpack.c.b16 %v1348, %v1344
        %v1501 = vpack.c.b16 %v1349, %v1345
        %v1502 = vpack.c.b16 %v1350, %v1346
        %v1503 = vpack.c.b16 %v1355, %v1351
        %v1504 = vpack.c.b16 %v1356, %v1352
        %v1505 = vpack.c.b16 %v1357, %v1353
        %v1506 = vpack.c.b16 %v1358, %v1354
        %v1507 = vpack.c.b16 %v1363, %v1359
        %v1508 = vpack.c.b16 %v1364, %v1360
        %v1509 = vpack.c.b16 %v1365, %v1361
        %v1510 = vpack.c.b16 %v1366, %v1362
        %v1511 = vpack.c.b16 %v1371, %v1367
        %v1512 = vpack.c.b16 %v1372, %v1368
        %v1513 = vpack.c.b16 %v1373, %v1369
        %v1514 = vpack.c.b16 %v1374, %v1370
        %v1515 = vpack.c.b16 %v1379, %v1375
        %v1516 = vpack.c.b16 %v1380, %v1376
        %v1517 = vpack.c.b16 %v1381, %v1377
        %v1518 = vpack.c.b16 %v1382, %v1378
        %v1519 = vpack.c.b16 %v1387, %v1383
        %v1520 = vpack.c.b16 %v1388, %v1384
        %v1521 = vpack.c.b16 %v1389, %v1385
        %v1522 = vpack.c.b16 %v1390, %v1386
        %v1523 = vpack.c.b16 %v1395, %v1391
        %v1524 = vpack.c.b16 %v1396, %v1392
        %v1525 = vpack.c.b16 %v1397, %v1393
        %v1526 = vpack.c.b16 %v1398, %v1394
        %1655 = vmatpush.bf16.msra.mxu0 %v1427
        %1656 = vmatpush.bf16.msra.mxu0 %v1423
        %1657 = vmatpush.bf16.msra.mxu0 %v1419
        %1658 = vmatpush.bf16.msra.mxu0 %v1415
        %1659 = vmatpush.bf16.msra.mxu0 %v1411
        %1660 = vmatpush.bf16.msra.mxu0 %v1407
        %1661 = vmatpush.bf16.msra.mxu0 %v1403
        %1662 = vmatpush.bf16.msra.mxu0 %v1399
        %1663 = vmatmul.bf16.gmra.mxu0 %v887
        %v1664 = vpop.f32.mrf.mxu0
        %v1665 = vadd.f32 0.0, %v1664
        %v1666 = vpop.f32.mrf.mxu0
        %v1667 = vadd.f32 0.0, %v1666
        %1668 = vmatmul.bf16.gmra.mxu0 %v891
        %v1669 = vpop.f32.mrf.mxu0
        %v1670 = vadd.f32 0.0, %v1669
        %v1671 = vpop.f32.mrf.mxu0
        %v1672 = vadd.f32 0.0, %v1671
        %1673 = vmatmul.bf16.gmra.mxu0 %v895
        %v1674 = vpop.f32.mrf.mxu0
        %v1675 = vadd.f32 0.0, %v1674
        %v1676 = vpop.f32.mrf.mxu0
        %v1677 = vadd.f32 0.0, %v1676
        %1678 = vmatmul.bf16.gmra.mxu0 %v899
        %v1679 = vpop.f32.mrf.mxu0
        %v1680 = vadd.f32 0.0, %v1679
        %v1681 = vpop.f32.mrf.mxu0
        %v1682 = vadd.f32 0.0, %v1681
        %1683 = vmatmul.bf16.gmra.mxu0 %v903
        %v1684 = vpop.f32.mrf.mxu0
        %v1685 = vadd.f32 0.0, %v1684
        %v1686 = vpop.f32.mrf.mxu0
        %v1687 = vadd.f32 0.0, %v1686
        %1688 = vmatmul.bf16.gmra.mxu0 %v907
        %v1689 = vpop.f32.mrf.mxu0
        %v1690 = vadd.f32 0.0, %v1689
        %v1691 = vpop.f32.mrf.mxu0
        %v1692 = vadd.f32 0.0, %v1691
        %1693 = vmatmul.bf16.gmra.mxu0 %v911
        %v1694 = vpop.f32.mrf.mxu0
        %v1695 = vadd.f32 0.0, %v1694
        %v1696 = vpop.f32.mrf.mxu0
        %v1697 = vadd.f32 0.0, %v1696
        %1698 = vmatmul.bf16.gmra.mxu0 %v915
        %v1699 = vpop.f32.mrf.mxu0
        %v1700 = vadd.f32 0.0, %v1699
        %v1701 = vpop.f32.mrf.mxu0
        %v1702 = vadd.f32 0.0, %v1701
        %1703 = vmatmul.bf16.gmra.mxu0 %v919
        %v1704 = vpop.f32.mrf.mxu0
        %v1705 = vadd.f32 0.0, %v1704
        %v1706 = vpop.f32.mrf.mxu0
        %v1707 = vadd.f32 0.0, %v1706
        %1708 = vmatmul.bf16.gmra.mxu0 %v923
        %v1709 = vpop.f32.mrf.mxu0
        %v1710 = vadd.f32 0.0, %v1709
        %v1711 = vpop.f32.mrf.mxu0
        %v1712 = vadd.f32 0.0, %v1711
        %1713 = vmatmul.bf16.gmra.mxu0 %v927
        %v1714 = vpop.f32.mrf.mxu0
        %v1715 = vadd.f32 0.0, %v1714
        %v1716 = vpop.f32.mrf.mxu0
        %v1717 = vadd.f32 0.0, %v1716
        %1718 = vmatmul.bf16.gmra.mxu0 %v931
        %v1719 = vpop.f32.mrf.mxu0
        %v1720 = vadd.f32 0.0, %v1719
        %v1721 = vpop.f32.mrf.mxu0
        %v1722 = vadd.f32 0.0, %v1721
        %1723 = vmatmul.bf16.gmra.mxu0 %v935
        %v1724 = vpop.f32.mrf.mxu0
        %v1725 = vadd.f32 0.0, %v1724
        %v1726 = vpop.f32.mrf.mxu0
        %v1727 = vadd.f32 0.0, %v1726
        %1728 = vmatmul.bf16.gmra.mxu0 %v939
        %v1729 = vpop.f32.mrf.mxu0
        %v1730 = vadd.f32 0.0, %v1729
        %v1731 = vpop.f32.mrf.mxu0
        %v1732 = vadd.f32 0.0, %v1731
        %1733 = vmatmul.bf16.gmra.mxu0 %v943
        %v1734 = vpop.f32.mrf.mxu0
        %v1735 = vadd.f32 0.0, %v1734
        %v1736 = vpop.f32.mrf.mxu0
        %v1737 = vadd.f32 0.0, %v1736
        %1738 = vmatmul.bf16.gmra.mxu0 %v947
        %v1739 = vpop.f32.mrf.mxu0
        %v1740 = vadd.f32 0.0, %v1739
        %v1741 = vpop.f32.mrf.mxu0
        %v1742 = vadd.f32 0.0, %v1741
        %1743 = vdwg.mxu0
        %1744 = vmatpush.bf16.msra.mxu0 %v1459
        %1745 = vmatpush.bf16.msra.mxu0 %v1455
        %1746 = vmatpush.bf16.msra.mxu0 %v1451
        %1747 = vmatpush.bf16.msra.mxu0 %v1447
        %1748 = vmatpush.bf16.msra.mxu0 %v1443
        %1749 = vmatpush.bf16.msra.mxu0 %v1439
        %1750 = vmatpush.bf16.msra.mxu0 %v1435
        %1751 = vmatpush.bf16.msra.mxu0 %v1431
        %1752 = vmatmul.bf16.gmra.mxu0 %v888
        %v1753 = vpop.f32.mrf.mxu0
        %v1754 = vadd.f32 %v1665, %v1753
        %v1755 = vpop.f32.mrf.mxu0
        %v1756 = vadd.f32 %v1667, %v1755
        %1757 = vmatmul.bf16.gmra.mxu0 %v892
        %v1758 = vpop.f32.mrf.mxu0
        %v1759 = vadd.f32 %v1670, %v1758
        %v1760 = vpop.f32.mrf.mxu0
        %v1761 = vadd.f32 %v1672, %v1760
        %1762 = vmatmul.bf16.gmra.mxu0 %v896
        %v1763 = vpop.f32.mrf.mxu0
        %v1764 = vadd.f32 %v1675, %v1763
        %v1765 = vpop.f32.mrf.mxu0
        %v1766 = vadd.f32 %v1677, %v1765
        %1767 = vmatmul.bf16.gmra.mxu0 %v900
        %v1768 = vpop.f32.mrf.mxu0
        %v1769 = vadd.f32 %v1680, %v1768
        %v1770 = vpop.f32.mrf.mxu0
        %v1771 = vadd.f32 %v1682, %v1770
        %1772 = vmatmul.bf16.gmra.mxu0 %v904
        %v1773 = vpop.f32.mrf.mxu0
        %v1774 = vadd.f32 %v1685, %v1773
        %v1775 = vpop.f32.mrf.mxu0
        %v1776 = vadd.f32 %v1687, %v1775
        %1777 = vmatmul.bf16.gmra.mxu0 %v908
        %v1778 = vpop.f32.mrf.mxu0
        %v1779 = vadd.f32 %v1690, %v1778
        %v1780 = vpop.f32.mrf.mxu0
        %v1781 = vadd.f32 %v1692, %v1780
        %1782 = vmatmul.bf16.gmra.mxu0 %v912
        %v1783 = vpop.f32.mrf.mxu0
        %v1784 = vadd.f32 %v1695, %v1783
        %v1785 = vpop.f32.mrf.mxu0
        %v1786 = vadd.f32 %v1697, %v1785
        %1787 = vmatmul.bf16.gmra.mxu0 %v916
        %v1788 = vpop.f32.mrf.mxu0
        %v1789 = vadd.f32 %v1700, %v1788
        %v1790 = vpop.f32.mrf.mxu0
        %v1791 = vadd.f32 %v1702, %v1790
        %1792 = vmatmul.bf16.gmra.mxu0 %v920
        %v1793 = vpop.f32.mrf.mxu0
        %v1794 = vadd.f32 %v1705, %v1793
        %v1795 = vpop.f32.mrf.mxu0
        %v1796 = vadd.f32 %v1707, %v1795
        %1797 = vmatmul.bf16.gmra.mxu0 %v924
        %v1798 = vpop.f32.mrf.mxu0
        %v1799 = vadd.f32 %v1710, %v1798
        %v1800 = vpop.f32.mrf.mxu0
        %v1801 = vadd.f32 %v1712, %v1800
        %1802 = vmatmul.bf16.gmra.mxu0 %v928
        %v1803 = vpop.f32.mrf.mxu0
        %v1804 = vadd.f32 %v1715, %v1803
        %v1805 = vpop.f32.mrf.mxu0
        %v1806 = vadd.f32 %v1717, %v1805
        %1807 = vmatmul.bf16.gmra.mxu0 %v932
        %v1808 = vpop.f32.mrf.mxu0
        %v1809 = vadd.f32 %v1720, %v1808
        %v1810 = vpop.f32.mrf.mxu0
        %v1811 = vadd.f32 %v1722, %v1810
        %1812 = vmatmul.bf16.gmra.mxu0 %v936
        %v1813 = vpop.f32.mrf.mxu0
        %v1814 = vadd.f32 %v1725, %v1813
        %v1815 = vpop.f32.mrf.mxu0
        %v1816 = vadd.f32 %v1727, %v1815
        %1817 = vmatmul.bf16.gmra.mxu0 %v940
        %v1818 = vpop.f32.mrf.mxu0
        %v1819 = vadd.f32 %v1730, %v1818
        %v1820 = vpop.f32.mrf.mxu0
        %v1821 = vadd.f32 %v1732, %v1820
        %1822 = vmatmul.bf16.gmra.mxu0 %v944
        %v1823 = vpop.f32.mrf.mxu0
        %v1824 = vadd.f32 %v1735, %v1823
        %v1825 = vpop.f32.mrf.mxu0
        %v1826 = vadd.f32 %v1737, %v1825
        %1827 = vmatmul.bf16.gmra.mxu0 %v948
        %v1828 = vpop.f32.mrf.mxu0
        %v1829 = vadd.f32 %v1740, %v1828
        %v1830 = vpop.f32.mrf.mxu0
        %v1831 = vadd.f32 %v1742, %v1830
        %1832 = vdwg.mxu0
        %1833 = vmatpush.bf16.msra.mxu0 %v1491
        %1834 = vmatpush.bf16.msra.mxu0 %v1487
        %1835 = vmatpush.bf16.msra.mxu0 %v1483
        %1836 = vmatpush.bf16.msra.mxu0 %v1479
        %1837 = vmatpush.bf16.msra.mxu0 %v1475
        %1838 = vmatpush.bf16.msra.mxu0 %v1471
        %1839 = vmatpush.bf16.msra.mxu0 %v1467
        %1840 = vmatpush.bf16.msra.mxu0 %v1463
        %1841 = vmatmul.bf16.gmra.mxu0 %v889
        %v1842 = vpop.f32.mrf.mxu0
        %v1843 = vadd.f32 %v1754, %v1842
        %v1844 = vpop.f32.mrf.mxu0
        %v1845 = vadd.f32 %v1756, %v1844
        %1846 = vmatmul.bf16.gmra.mxu0 %v893
        %v1847 = vpop.f32.mrf.mxu0
        %v1848 = vadd.f32 %v1759, %v1847
        %v1849 = vpop.f32.mrf.mxu0
        %v1850 = vadd.f32 %v1761, %v1849
        %1851 = vmatmul.bf16.gmra.mxu0 %v897
        %v1852 = vpop.f32.mrf.mxu0
        %v1853 = vadd.f32 %v1764, %v1852
        %v1854 = vpop.f32.mrf.mxu0
        %v1855 = vadd.f32 %v1766, %v1854
        %1856 = vmatmul.bf16.gmra.mxu0 %v901
        %v1857 = vpop.f32.mrf.mxu0
        %v1858 = vadd.f32 %v1769, %v1857
        %v1859 = vpop.f32.mrf.mxu0
        %v1860 = vadd.f32 %v1771, %v1859
        %1861 = vmatmul.bf16.gmra.mxu0 %v905
        %v1862 = vpop.f32.mrf.mxu0
        %v1863 = vadd.f32 %v1774, %v1862
        %v1864 = vpop.f32.mrf.mxu0
        %v1865 = vadd.f32 %v1776, %v1864
        %1866 = vmatmul.bf16.gmra.mxu0 %v909
        %v1867 = vpop.f32.mrf.mxu0
        %v1868 = vadd.f32 %v1779, %v1867
        %v1869 = vpop.f32.mrf.mxu0
        %v1870 = vadd.f32 %v1781, %v1869
        %1871 = vmatmul.bf16.gmra.mxu0 %v913
        %v1872 = vpop.f32.mrf.mxu0
        %v1873 = vadd.f32 %v1784, %v1872
        %v1874 = vpop.f32.mrf.mxu0
        %v1875 = vadd.f32 %v1786, %v1874
        %1876 = vmatmul.bf16.gmra.mxu0 %v917
        %v1877 = vpop.f32.mrf.mxu0
        %v1878 = vadd.f32 %v1789, %v1877
        %v1879 = vpop.f32.mrf.mxu0
        %v1880 = vadd.f32 %v1791, %v1879
        %1881 = vmatmul.bf16.gmra.mxu0 %v921
        %v1882 = vpop.f32.mrf.mxu0
        %v1883 = vadd.f32 %v1794, %v1882
        %v1884 = vpop.f32.mrf.mxu0
        %v1885 = vadd.f32 %v1796, %v1884
        %1886 = vmatmul.bf16.gmra.mxu0 %v925
        %v1887 = vpop.f32.mrf.mxu0
        %v1888 = vadd.f32 %v1799, %v1887
        %v1889 = vpop.f32.mrf.mxu0
        %v1890 = vadd.f32 %v1801, %v1889
        %1891 = vmatmul.bf16.gmra.mxu0 %v929
        %v1892 = vpop.f32.mrf.mxu0
        %v1893 = vadd.f32 %v1804, %v1892
        %v1894 = vpop.f32.mrf.mxu0
        %v1895 = vadd.f32 %v1806, %v1894
        %1896 = vmatmul.bf16.gmra.mxu0 %v933
        %v1897 = vpop.f32.mrf.mxu0
        %v1898 = vadd.f32 %v1809, %v1897
        %v1899 = vpop.f32.mrf.mxu0
        %v1900 = vadd.f32 %v1811, %v1899
        %1901 = vmatmul.bf16.gmra.mxu0 %v937
        %v1902 = vpop.f32.mrf.mxu0
        %v1903 = vadd.f32 %v1814, %v1902
        %v1904 = vpop.f32.mrf.mxu0
        %v1905 = vadd.f32 %v1816, %v1904
        %1906 = vmatmul.bf16.gmra.mxu0 %v941
        %v1907 = vpop.f32.mrf.mxu0
        %v1908 = vadd.f32 %v1819, %v1907
        %v1909 = vpop.f32.mrf.mxu0
        %v1910 = vadd.f32 %v1821, %v1909
        %1911 = vmatmul.bf16.gmra.mxu0 %v945
        %v1912 = vpop.f32.mrf.mxu0
        %v1913 = vadd.f32 %v1824, %v1912
        %v1914 = vpop.f32.mrf.mxu0
        %v1915 = vadd.f32 %v1826, %v1914
        %1916 = vmatmul.bf16.gmra.mxu0 %v949
        %v1917 = vpop.f32.mrf.mxu0
        %v1918 = vadd.f32 %v1829, %v1917
        %v1919 = vpop.f32.mrf.mxu0
        %v1920 = vadd.f32 %v1831, %v1919
        %1921 = vdwg.mxu0
        %1922 = vmatpush.bf16.msra.mxu0 %v1523
        %1923 = vmatpush.bf16.msra.mxu0 %v1519
        %1924 = vmatpush.bf16.msra.mxu0 %v1515
        %1925 = vmatpush.bf16.msra.mxu0 %v1511
        %1926 = vmatpush.bf16.msra.mxu0 %v1507
        %1927 = vmatpush.bf16.msra.mxu0 %v1503
        %1928 = vmatpush.bf16.msra.mxu0 %v1499
        %1929 = vmatpush.bf16.msra.mxu0 %v1495
        %1930 = vmatmul.bf16.gmra.mxu0 %v890
        %v1931 = vpop.f32.mrf.mxu0
        %v1932 = vadd.f32 %v1843, %v1931
        %v1933 = vpop.f32.mrf.mxu0
        %v1934 = vadd.f32 %v1845, %v1933
        %1935 = vmatmul.bf16.gmra.mxu0 %v894
        %v1936 = vpop.f32.mrf.mxu0
        %v1937 = vadd.f32 %v1848, %v1936
        %v1938 = vpop.f32.mrf.mxu0
        %v1939 = vadd.f32 %v1850, %v1938
        %1940 = vmatmul.bf16.gmra.mxu0 %v898
        %v1941 = vpop.f32.mrf.mxu0
        %v1942 = vadd.f32 %v1853, %v1941
        %v1943 = vpop.f32.mrf.mxu0
        %v1944 = vadd.f32 %v1855, %v1943
        %1945 = vmatmul.bf16.gmra.mxu0 %v902
        %v1946 = vpop.f32.mrf.mxu0
        %v1947 = vadd.f32 %v1858, %v1946
        %v1948 = vpop.f32.mrf.mxu0
        %v1949 = vadd.f32 %v1860, %v1948
        %1950 = vmatmul.bf16.gmra.mxu0 %v906
        %v1951 = vpop.f32.mrf.mxu0
        %v1952 = vadd.f32 %v1863, %v1951
        %v1953 = vpop.f32.mrf.mxu0
        %v1954 = vadd.f32 %v1865, %v1953
        %1955 = vmatmul.bf16.gmra.mxu0 %v910
        %v1956 = vpop.f32.mrf.mxu0
        %v1957 = vadd.f32 %v1868, %v1956
        %v1958 = vpop.f32.mrf.mxu0
        %v1959 = vadd.f32 %v1870, %v1958
        %1960 = vmatmul.bf16.gmra.mxu0 %v914
        %v1961 = vpop.f32.mrf.mxu0
        %v1962 = vadd.f32 %v1873, %v1961
        %v1963 = vpop.f32.mrf.mxu0
        %v1964 = vadd.f32 %v1875, %v1963
        %1965 = vmatmul.bf16.gmra.mxu0 %v918
        %v1966 = vpop.f32.mrf.mxu0
        %v1967 = vadd.f32 %v1878, %v1966
        %v1968 = vpop.f32.mrf.mxu0
        %v1969 = vadd.f32 %v1880, %v1968
        %1970 = vmatmul.bf16.gmra.mxu0 %v922
        %v1971 = vpop.f32.mrf.mxu0
        %v1972 = vadd.f32 %v1883, %v1971
        %v1973 = vpop.f32.mrf.mxu0
        %v1974 = vadd.f32 %v1885, %v1973
        %1975 = vmatmul.bf16.gmra.mxu0 %v926
        %v1976 = vpop.f32.mrf.mxu0
        %v1977 = vadd.f32 %v1888, %v1976
        %v1978 = vpop.f32.mrf.mxu0
        %v1979 = vadd.f32 %v1890, %v1978
        %1980 = vmatmul.bf16.gmra.mxu0 %v930
        %v1981 = vpop.f32.mrf.mxu0
        %v1982 = vadd.f32 %v1893, %v1981
        %v1983 = vpop.f32.mrf.mxu0
        %v1984 = vadd.f32 %v1895, %v1983
        %1985 = vmatmul.bf16.gmra.mxu0 %v934
        %v1986 = vpop.f32.mrf.mxu0
        %v1987 = vadd.f32 %v1898, %v1986
        %v1988 = vpop.f32.mrf.mxu0
        %v1989 = vadd.f32 %v1900, %v1988
        %1990 = vmatmul.bf16.gmra.mxu0 %v938
        %v1991 = vpop.f32.mrf.mxu0
        %v1992 = vadd.f32 %v1903, %v1991
        %v1993 = vpop.f32.mrf.mxu0
        %v1994 = vadd.f32 %v1905, %v1993
        %1995 = vmatmul.bf16.gmra.mxu0 %v942
        %v1996 = vpop.f32.mrf.mxu0
        %v1997 = vadd.f32 %v1908, %v1996
        %v1998 = vpop.f32.mrf.mxu0
        %v1999 = vadd.f32 %v1910, %v1998
        %2000 = vmatmul.bf16.gmra.mxu0 %v946
        %v2001 = vpop.f32.mrf.mxu0
        %v2002 = vadd.f32 %v1913, %v2001
        %v2003 = vpop.f32.mrf.mxu0
        %v2004 = vadd.f32 %v1915, %v2003
        %2005 = vmatmul.bf16.gmra.mxu0 %v950
        %v2006 = vpop.f32.mrf.mxu0
        %v2007 = vadd.f32 %v1918, %v2006
        %v2008 = vpop.f32.mrf.mxu0
        %v2009 = vadd.f32 %v1920, %v2008
        %2010 = vdwg.mxu0
        %2011 = vmatpush.bf16.msra.mxu0 %v1428
        %2012 = vmatpush.bf16.msra.mxu0 %v1424
        %2013 = vmatpush.bf16.msra.mxu0 %v1420
        %2014 = vmatpush.bf16.msra.mxu0 %v1416
        %2015 = vmatpush.bf16.msra.mxu0 %v1412
        %2016 = vmatpush.bf16.msra.mxu0 %v1408
        %2017 = vmatpush.bf16.msra.mxu0 %v1404
        %2018 = vmatpush.bf16.msra.mxu0 %v1400
        %2019 = vmatmul.bf16.gmra.mxu0 %v887
        %v2020 = vpop.f32.mrf.mxu0
        %v2021 = vadd.f32 0.0, %v2020
        %v2022 = vpop.f32.mrf.mxu0
        %v2023 = vadd.f32 0.0, %v2022
        %2024 = vmatmul.bf16.gmra.mxu0 %v891
        %v2025 = vpop.f32.mrf.mxu0
        %v2026 = vadd.f32 0.0, %v2025
        %v2027 = vpop.f32.mrf.mxu0
        %v2028 = vadd.f32 0.0, %v2027
        %2029 = vmatmul.bf16.gmra.mxu0 %v895
        %v2030 = vpop.f32.mrf.mxu0
        %v2031 = vadd.f32 0.0, %v2030
        %v2032 = vpop.f32.mrf.mxu0
        %v2033 = vadd.f32 0.0, %v2032
        %2034 = vmatmul.bf16.gmra.mxu0 %v899
        %v2035 = vpop.f32.mrf.mxu0
        %v2036 = vadd.f32 0.0, %v2035
        %v2037 = vpop.f32.mrf.mxu0
        %v2038 = vadd.f32 0.0, %v2037
        %2039 = vmatmul.bf16.gmra.mxu0 %v903
        %v2040 = vpop.f32.mrf.mxu0
        %v2041 = vadd.f32 0.0, %v2040
        %v2042 = vpop.f32.mrf.mxu0
        %v2043 = vadd.f32 0.0, %v2042
        %2044 = vmatmul.bf16.gmra.mxu0 %v907
        %v2045 = vpop.f32.mrf.mxu0
        %v2046 = vadd.f32 0.0, %v2045
        %v2047 = vpop.f32.mrf.mxu0
        %v2048 = vadd.f32 0.0, %v2047
        %2049 = vmatmul.bf16.gmra.mxu0 %v911
        %v2050 = vpop.f32.mrf.mxu0
        %v2051 = vadd.f32 0.0, %v2050
        %v2052 = vpop.f32.mrf.mxu0
        %v2053 = vadd.f32 0.0, %v2052
        %2054 = vmatmul.bf16.gmra.mxu0 %v915
        %v2055 = vpop.f32.mrf.mxu0
        %v2056 = vadd.f32 0.0, %v2055
        %v2057 = vpop.f32.mrf.mxu0
        %v2058 = vadd.f32 0.0, %v2057
        %2059 = vmatmul.bf16.gmra.mxu0 %v919
        %v2060 = vpop.f32.mrf.mxu0
        %v2061 = vadd.f32 0.0, %v2060
        %v2062 = vpop.f32.mrf.mxu0
        %v2063 = vadd.f32 0.0, %v2062
        %2064 = vmatmul.bf16.gmra.mxu0 %v923
        %v2065 = vpop.f32.mrf.mxu0
        %v2066 = vadd.f32 0.0, %v2065
        %v2067 = vpop.f32.mrf.mxu0
        %v2068 = vadd.f32 0.0, %v2067
        %2069 = vmatmul.bf16.gmra.mxu0 %v927
        %v2070 = vpop.f32.mrf.mxu0
        %v2071 = vadd.f32 0.0, %v2070
        %v2072 = vpop.f32.mrf.mxu0
        %v2073 = vadd.f32 0.0, %v2072
        %2074 = vmatmul.bf16.gmra.mxu0 %v931
        %v2075 = vpop.f32.mrf.mxu0
        %v2076 = vadd.f32 0.0, %v2075
        %v2077 = vpop.f32.mrf.mxu0
        %v2078 = vadd.f32 0.0, %v2077
        %2079 = vmatmul.bf16.gmra.mxu0 %v935
        %v2080 = vpop.f32.mrf.mxu0
        %v2081 = vadd.f32 0.0, %v2080
        %v2082 = vpop.f32.mrf.mxu0
        %v2083 = vadd.f32 0.0, %v2082
        %2084 = vmatmul.bf16.gmra.mxu0 %v939
        %v2085 = vpop.f32.mrf.mxu0
        %v2086 = vadd.f32 0.0, %v2085
        %v2087 = vpop.f32.mrf.mxu0
        %v2088 = vadd.f32 0.0, %v2087
        %2089 = vmatmul.bf16.gmra.mxu0 %v943
        %v2090 = vpop.f32.mrf.mxu0
        %v2091 = vadd.f32 0.0, %v2090
        %v2092 = vpop.f32.mrf.mxu0
        %v2093 = vadd.f32 0.0, %v2092
        %2094 = vmatmul.bf16.gmra.mxu0 %v947
        %v2095 = vpop.f32.mrf.mxu0
        %v2096 = vadd.f32 0.0, %v2095
        %v2097 = vpop.f32.mrf.mxu0
        %v2098 = vadd.f32 0.0, %v2097
        %2099 = vdwg.mxu0
        %2100 = vmatpush.bf16.msra.mxu0 %v1460
        %2101 = vmatpush.bf16.msra.mxu0 %v1456
        %2102 = vmatpush.bf16.msra.mxu0 %v1452
        %2103 = vmatpush.bf16.msra.mxu0 %v1448
        %2104 = vmatpush.bf16.msra.mxu0 %v1444
        %2105 = vmatpush.bf16.msra.mxu0 %v1440
        %2106 = vmatpush.bf16.msra.mxu0 %v1436
        %2107 = vmatpush.bf16.msra.mxu0 %v1432
        %2108 = vmatmul.bf16.gmra.mxu0 %v888
        %v2109 = vpop.f32.mrf.mxu0
        %v2110 = vadd.f32 %v2021, %v2109
        %v2111 = vpop.f32.mrf.mxu0
        %v2112 = vadd.f32 %v2023, %v2111
        %2113 = vmatmul.bf16.gmra.mxu0 %v892
        %v2114 = vpop.f32.mrf.mxu0
        %v2115 = vadd.f32 %v2026, %v2114
        %v2116 = vpop.f32.mrf.mxu0
        %v2117 = vadd.f32 %v2028, %v2116
        %2118 = vmatmul.bf16.gmra.mxu0 %v896
        %v2119 = vpop.f32.mrf.mxu0
        %v2120 = vadd.f32 %v2031, %v2119
        %v2121 = vpop.f32.mrf.mxu0
        %v2122 = vadd.f32 %v2033, %v2121
        %2123 = vmatmul.bf16.gmra.mxu0 %v900
        %v2124 = vpop.f32.mrf.mxu0
        %v2125 = vadd.f32 %v2036, %v2124
        %v2126 = vpop.f32.mrf.mxu0
        %v2127 = vadd.f32 %v2038, %v2126
        %2128 = vmatmul.bf16.gmra.mxu0 %v904
        %v2129 = vpop.f32.mrf.mxu0
        %v2130 = vadd.f32 %v2041, %v2129
        %v2131 = vpop.f32.mrf.mxu0
        %v2132 = vadd.f32 %v2043, %v2131
        %2133 = vmatmul.bf16.gmra.mxu0 %v908
        %v2134 = vpop.f32.mrf.mxu0
        %v2135 = vadd.f32 %v2046, %v2134
        %v2136 = vpop.f32.mrf.mxu0
        %v2137 = vadd.f32 %v2048, %v2136
        %2138 = vmatmul.bf16.gmra.mxu0 %v912
        %v2139 = vpop.f32.mrf.mxu0
        %v2140 = vadd.f32 %v2051, %v2139
        %v2141 = vpop.f32.mrf.mxu0
        %v2142 = vadd.f32 %v2053, %v2141
        %2143 = vmatmul.bf16.gmra.mxu0 %v916
        %v2144 = vpop.f32.mrf.mxu0
        %v2145 = vadd.f32 %v2056, %v2144
        %v2146 = vpop.f32.mrf.mxu0
        %v2147 = vadd.f32 %v2058, %v2146
        %2148 = vmatmul.bf16.gmra.mxu0 %v920
        %v2149 = vpop.f32.mrf.mxu0
        %v2150 = vadd.f32 %v2061, %v2149
        %v2151 = vpop.f32.mrf.mxu0
        %v2152 = vadd.f32 %v2063, %v2151
        %2153 = vmatmul.bf16.gmra.mxu0 %v924
        %v2154 = vpop.f32.mrf.mxu0
        %v2155 = vadd.f32 %v2066, %v2154
        %v2156 = vpop.f32.mrf.mxu0
        %v2157 = vadd.f32 %v2068, %v2156
        %2158 = vmatmul.bf16.gmra.mxu0 %v928
        %v2159 = vpop.f32.mrf.mxu0
        %v2160 = vadd.f32 %v2071, %v2159
        %v2161 = vpop.f32.mrf.mxu0
        %v2162 = vadd.f32 %v2073, %v2161
        %2163 = vmatmul.bf16.gmra.mxu0 %v932
        %v2164 = vpop.f32.mrf.mxu0
        %v2165 = vadd.f32 %v2076, %v2164
        %v2166 = vpop.f32.mrf.mxu0
        %v2167 = vadd.f32 %v2078, %v2166
        %2168 = vmatmul.bf16.gmra.mxu0 %v936
        %v2169 = vpop.f32.mrf.mxu0
        %v2170 = vadd.f32 %v2081, %v2169
        %v2171 = vpop.f32.mrf.mxu0
        %v2172 = vadd.f32 %v2083, %v2171
        %2173 = vmatmul.bf16.gmra.mxu0 %v940
        %v2174 = vpop.f32.mrf.mxu0
        %v2175 = vadd.f32 %v2086, %v2174
        %v2176 = vpop.f32.mrf.mxu0
        %v2177 = vadd.f32 %v2088, %v2176
        %2178 = vmatmul.bf16.gmra.mxu0 %v944
        %v2179 = vpop.f32.mrf.mxu0
        %v2180 = vadd.f32 %v2091, %v2179
        %v2181 = vpop.f32.mrf.mxu0
        %v2182 = vadd.f32 %v2093, %v2181
        %2183 = vmatmul.bf16.gmra.mxu0 %v948
        %v2184 = vpop.f32.mrf.mxu0
        %v2185 = vadd.f32 %v2096, %v2184
        %v2186 = vpop.f32.mrf.mxu0
        %v2187 = vadd.f32 %v2098, %v2186
        %2188 = vdwg.mxu0
        %2189 = vmatpush.bf16.msra.mxu0 %v1492
        %2190 = vmatpush.bf16.msra.mxu0 %v1488
        %2191 = vmatpush.bf16.msra.mxu0 %v1484
        %2192 = vmatpush.bf16.msra.mxu0 %v1480
        %2193 = vmatpush.bf16.msra.mxu0 %v1476
        %2194 = vmatpush.bf16.msra.mxu0 %v1472
        %2195 = vmatpush.bf16.msra.mxu0 %v1468
        %2196 = vmatpush.bf16.msra.mxu0 %v1464
        %2197 = vmatmul.bf16.gmra.mxu0 %v889
        %v2198 = vpop.f32.mrf.mxu0
        %v2199 = vadd.f32 %v2110, %v2198
        %v2200 = vpop.f32.mrf.mxu0
        %v2201 = vadd.f32 %v2112, %v2200
        %2202 = vmatmul.bf16.gmra.mxu0 %v893
        %v2203 = vpop.f32.mrf.mxu0
        %v2204 = vadd.f32 %v2115, %v2203
        %v2205 = vpop.f32.mrf.mxu0
        %v2206 = vadd.f32 %v2117, %v2205
        %2207 = vmatmul.bf16.gmra.mxu0 %v897
        %v2208 = vpop.f32.mrf.mxu0
        %v2209 = vadd.f32 %v2120, %v2208
        %v2210 = vpop.f32.mrf.mxu0
        %v2211 = vadd.f32 %v2122, %v2210
        %2212 = vmatmul.bf16.gmra.mxu0 %v901
        %v2213 = vpop.f32.mrf.mxu0
        %v2214 = vadd.f32 %v2125, %v2213
        %v2215 = vpop.f32.mrf.mxu0
        %v2216 = vadd.f32 %v2127, %v2215
        %2217 = vmatmul.bf16.gmra.mxu0 %v905
        %v2218 = vpop.f32.mrf.mxu0
        %v2219 = vadd.f32 %v2130, %v2218
        %v2220 = vpop.f32.mrf.mxu0
        %v2221 = vadd.f32 %v2132, %v2220
        %2222 = vmatmul.bf16.gmra.mxu0 %v909
        %v2223 = vpop.f32.mrf.mxu0
        %v2224 = vadd.f32 %v2135, %v2223
        %v2225 = vpop.f32.mrf.mxu0
        %v2226 = vadd.f32 %v2137, %v2225
        %2227 = vmatmul.bf16.gmra.mxu0 %v913
        %v2228 = vpop.f32.mrf.mxu0
        %v2229 = vadd.f32 %v2140, %v2228
        %v2230 = vpop.f32.mrf.mxu0
        %v2231 = vadd.f32 %v2142, %v2230
        %2232 = vmatmul.bf16.gmra.mxu0 %v917
        %v2233 = vpop.f32.mrf.mxu0
        %v2234 = vadd.f32 %v2145, %v2233
        %v2235 = vpop.f32.mrf.mxu0
        %v2236 = vadd.f32 %v2147, %v2235
        %2237 = vmatmul.bf16.gmra.mxu0 %v921
        %v2238 = vpop.f32.mrf.mxu0
        %v2239 = vadd.f32 %v2150, %v2238
        %v2240 = vpop.f32.mrf.mxu0
        %v2241 = vadd.f32 %v2152, %v2240
        %2242 = vmatmul.bf16.gmra.mxu0 %v925
        %v2243 = vpop.f32.mrf.mxu0
        %v2244 = vadd.f32 %v2155, %v2243
        %v2245 = vpop.f32.mrf.mxu0
        %v2246 = vadd.f32 %v2157, %v2245
        %2247 = vmatmul.bf16.gmra.mxu0 %v929
        %v2248 = vpop.f32.mrf.mxu0
        %v2249 = vadd.f32 %v2160, %v2248
        %v2250 = vpop.f32.mrf.mxu0
        %v2251 = vadd.f32 %v2162, %v2250
        %2252 = vmatmul.bf16.gmra.mxu0 %v933
        %v2253 = vpop.f32.mrf.mxu0
        %v2254 = vadd.f32 %v2165, %v2253
        %v2255 = vpop.f32.mrf.mxu0
        %v2256 = vadd.f32 %v2167, %v2255
        %2257 = vmatmul.bf16.gmra.mxu0 %v937
        %v2258 = vpop.f32.mrf.mxu0
        %v2259 = vadd.f32 %v2170, %v2258
        %v2260 = vpop.f32.mrf.mxu0
        %v2261 = vadd.f32 %v2172, %v2260
        %2262 = vmatmul.bf16.gmra.mxu0 %v941
        %v2263 = vpop.f32.mrf.mxu0
        %v2264 = vadd.f32 %v2175, %v2263
        %v2265 = vpop.f32.mrf.mxu0
        %v2266 = vadd.f32 %v2177, %v2265
        %2267 = vmatmul.bf16.gmra.mxu0 %v945
        %v2268 = vpop.f32.mrf.mxu0
        %v2269 = vadd.f32 %v2180, %v2268
        %v2270 = vpop.f32.mrf.mxu0
        %v2271 = vadd.f32 %v2182, %v2270
        %2272 = vmatmul.bf16.gmra.mxu0 %v949
        %v2273 = vpop.f32.mrf.mxu0
        %v2274 = vadd.f32 %v2185, %v2273
        %v2275 = vpop.f32.mrf.mxu0
        %v2276 = vadd.f32 %v2187, %v2275
        %2277 = vdwg.mxu0
        %2278 = vmatpush.bf16.msra.mxu0 %v1524
        %2279 = vmatpush.bf16.msra.mxu0 %v1520
        %2280 = vmatpush.bf16.msra.mxu0 %v1516
        %2281 = vmatpush.bf16.msra.mxu0 %v1512
        %2282 = vmatpush.bf16.msra.mxu0 %v1508
        %2283 = vmatpush.bf16.msra.mxu0 %v1504
        %2284 = vmatpush.bf16.msra.mxu0 %v1500
        %2285 = vmatpush.bf16.msra.mxu0 %v1496
        %2286 = vmatmul.bf16.gmra.mxu0 %v890
        %v2287 = vpop.f32.mrf.mxu0
        %v2288 = vadd.f32 %v2199, %v2287
        %v2289 = vpop.f32.mrf.mxu0
        %v2290 = vadd.f32 %v2201, %v2289
        %2291 = vmatmul.bf16.gmra.mxu0 %v894
        %v2292 = vpop.f32.mrf.mxu0
        %v2293 = vadd.f32 %v2204, %v2292
        %v2294 = vpop.f32.mrf.mxu0
        %v2295 = vadd.f32 %v2206, %v2294
        %2296 = vmatmul.bf16.gmra.mxu0 %v898
        %v2297 = vpop.f32.mrf.mxu0
        %v2298 = vadd.f32 %v2209, %v2297
        %v2299 = vpop.f32.mrf.mxu0
        %v2300 = vadd.f32 %v2211, %v2299
        %2301 = vmatmul.bf16.gmra.mxu0 %v902
        %v2302 = vpop.f32.mrf.mxu0
        %v2303 = vadd.f32 %v2214, %v2302
        %v2304 = vpop.f32.mrf.mxu0
        %v2305 = vadd.f32 %v2216, %v2304
        %2306 = vmatmul.bf16.gmra.mxu0 %v906
        %v2307 = vpop.f32.mrf.mxu0
        %v2308 = vadd.f32 %v2219, %v2307
        %v2309 = vpop.f32.mrf.mxu0
        %v2310 = vadd.f32 %v2221, %v2309
        %2311 = vmatmul.bf16.gmra.mxu0 %v910
        %v2312 = vpop.f32.mrf.mxu0
        %v2313 = vadd.f32 %v2224, %v2312
        %v2314 = vpop.f32.mrf.mxu0
        %v2315 = vadd.f32 %v2226, %v2314
        %2316 = vmatmul.bf16.gmra.mxu0 %v914
        %v2317 = vpop.f32.mrf.mxu0
        %v2318 = vadd.f32 %v2229, %v2317
        %v2319 = vpop.f32.mrf.mxu0
        %v2320 = vadd.f32 %v2231, %v2319
        %2321 = vmatmul.bf16.gmra.mxu0 %v918
        %v2322 = vpop.f32.mrf.mxu0
        %v2323 = vadd.f32 %v2234, %v2322
        %v2324 = vpop.f32.mrf.mxu0
        %v2325 = vadd.f32 %v2236, %v2324
        %2326 = vmatmul.bf16.gmra.mxu0 %v922
        %v2327 = vpop.f32.mrf.mxu0
        %v2328 = vadd.f32 %v2239, %v2327
        %v2329 = vpop.f32.mrf.mxu0
        %v2330 = vadd.f32 %v2241, %v2329
        %2331 = vmatmul.bf16.gmra.mxu0 %v926
        %v2332 = vpop.f32.mrf.mxu0
        %v2333 = vadd.f32 %v2244, %v2332
        %v2334 = vpop.f32.mrf.mxu0
        %v2335 = vadd.f32 %v2246, %v2334
        %2336 = vmatmul.bf16.gmra.mxu0 %v930
        %v2337 = vpop.f32.mrf.mxu0
        %v2338 = vadd.f32 %v2249, %v2337
        %v2339 = vpop.f32.mrf.mxu0
        %v2340 = vadd.f32 %v2251, %v2339
        %2341 = vmatmul.bf16.gmra.mxu0 %v934
        %v2342 = vpop.f32.mrf.mxu0
        %v2343 = vadd.f32 %v2254, %v2342
        %v2344 = vpop.f32.mrf.mxu0
        %v2345 = vadd.f32 %v2256, %v2344
        %2346 = vmatmul.bf16.gmra.mxu0 %v938
        %v2347 = vpop.f32.mrf.mxu0
        %v2348 = vadd.f32 %v2259, %v2347
        %v2349 = vpop.f32.mrf.mxu0
        %v2350 = vadd.f32 %v2261, %v2349
        %2351 = vmatmul.bf16.gmra.mxu0 %v942
        %v2352 = vpop.f32.mrf.mxu0
        %v2353 = vadd.f32 %v2264, %v2352
        %v2354 = vpop.f32.mrf.mxu0
        %v2355 = vadd.f32 %v2266, %v2354
        %2356 = vmatmul.bf16.gmra.mxu0 %v946
        %v2357 = vpop.f32.mrf.mxu0
        %v2358 = vadd.f32 %v2269, %v2357
        %v2359 = vpop.f32.mrf.mxu0
        %v2360 = vadd.f32 %v2271, %v2359
        %2361 = vmatmul.bf16.gmra.mxu0 %v950
        %v2362 = vpop.f32.mrf.mxu0
        %v2363 = vadd.f32 %v2274, %v2362
        %v2364 = vpop.f32.mrf.mxu0
        %v2365 = vadd.f32 %v2276, %v2364
        %2366 = vdwg.mxu0
        %2367 = vmatpush.bf16.msra.mxu0 %v1429
        %2368 = vmatpush.bf16.msra.mxu0 %v1425
        %2369 = vmatpush.bf16.msra.mxu0 %v1421
        %2370 = vmatpush.bf16.msra.mxu0 %v1417
        %2371 = vmatpush.bf16.msra.mxu0 %v1413
        %2372 = vmatpush.bf16.msra.mxu0 %v1409
        %2373 = vmatpush.bf16.msra.mxu0 %v1405
        %2374 = vmatpush.bf16.msra.mxu0 %v1401
        %2375 = vmatmul.bf16.gmra.mxu0 %v887
        %v2376 = vpop.f32.mrf.mxu0
        %v2377 = vadd.f32 0.0, %v2376
        %v2378 = vpop.f32.mrf.mxu0
        %v2379 = vadd.f32 0.0, %v2378
        %2380 = vmatmul.bf16.gmra.mxu0 %v891
        %v2381 = vpop.f32.mrf.mxu0
        %v2382 = vadd.f32 0.0, %v2381
        %v2383 = vpop.f32.mrf.mxu0
        %v2384 = vadd.f32 0.0, %v2383
        %2385 = vmatmul.bf16.gmra.mxu0 %v895
        %v2386 = vpop.f32.mrf.mxu0
        %v2387 = vadd.f32 0.0, %v2386
        %v2388 = vpop.f32.mrf.mxu0
        %v2389 = vadd.f32 0.0, %v2388
        %2390 = vmatmul.bf16.gmra.mxu0 %v899
        %v2391 = vpop.f32.mrf.mxu0
        %v2392 = vadd.f32 0.0, %v2391
        %v2393 = vpop.f32.mrf.mxu0
        %v2394 = vadd.f32 0.0, %v2393
        %2395 = vmatmul.bf16.gmra.mxu0 %v903
        %v2396 = vpop.f32.mrf.mxu0
        %v2397 = vadd.f32 0.0, %v2396
        %v2398 = vpop.f32.mrf.mxu0
        %v2399 = vadd.f32 0.0, %v2398
        %2400 = vmatmul.bf16.gmra.mxu0 %v907
        %v2401 = vpop.f32.mrf.mxu0
        %v2402 = vadd.f32 0.0, %v2401
        %v2403 = vpop.f32.mrf.mxu0
        %v2404 = vadd.f32 0.0, %v2403
        %2405 = vmatmul.bf16.gmra.mxu0 %v911
        %v2406 = vpop.f32.mrf.mxu0
        %v2407 = vadd.f32 0.0, %v2406
        %v2408 = vpop.f32.mrf.mxu0
        %v2409 = vadd.f32 0.0, %v2408
        %2410 = vmatmul.bf16.gmra.mxu0 %v915
        %v2411 = vpop.f32.mrf.mxu0
        %v2412 = vadd.f32 0.0, %v2411
        %v2413 = vpop.f32.mrf.mxu0
        %v2414 = vadd.f32 0.0, %v2413
        %2415 = vmatmul.bf16.gmra.mxu0 %v919
        %v2416 = vpop.f32.mrf.mxu0
        %v2417 = vadd.f32 0.0, %v2416
        %v2418 = vpop.f32.mrf.mxu0
        %v2419 = vadd.f32 0.0, %v2418
        %2420 = vmatmul.bf16.gmra.mxu0 %v923
        %v2421 = vpop.f32.mrf.mxu0
        %v2422 = vadd.f32 0.0, %v2421
        %v2423 = vpop.f32.mrf.mxu0
        %v2424 = vadd.f32 0.0, %v2423
        %2425 = vmatmul.bf16.gmra.mxu0 %v927
        %v2426 = vpop.f32.mrf.mxu0
        %v2427 = vadd.f32 0.0, %v2426
        %v2428 = vpop.f32.mrf.mxu0
        %v2429 = vadd.f32 0.0, %v2428
        %2430 = vmatmul.bf16.gmra.mxu0 %v931
        %v2431 = vpop.f32.mrf.mxu0
        %v2432 = vadd.f32 0.0, %v2431
        %v2433 = vpop.f32.mrf.mxu0
        %v2434 = vadd.f32 0.0, %v2433
        %2435 = vmatmul.bf16.gmra.mxu0 %v935
        %v2436 = vpop.f32.mrf.mxu0
        %v2437 = vadd.f32 0.0, %v2436
        %v2438 = vpop.f32.mrf.mxu0
        %v2439 = vadd.f32 0.0, %v2438
        %2440 = vmatmul.bf16.gmra.mxu0 %v939
        %v2441 = vpop.f32.mrf.mxu0
        %v2442 = vadd.f32 0.0, %v2441
        %v2443 = vpop.f32.mrf.mxu0
        %v2444 = vadd.f32 0.0, %v2443
        %2445 = vmatmul.bf16.gmra.mxu0 %v943
        %v2446 = vpop.f32.mrf.mxu0
        %v2447 = vadd.f32 0.0, %v2446
        %v2448 = vpop.f32.mrf.mxu0
        %v2449 = vadd.f32 0.0, %v2448
        %2450 = vmatmul.bf16.gmra.mxu0 %v947
        %v2451 = vpop.f32.mrf.mxu0
        %v2452 = vadd.f32 0.0, %v2451
        %v2453 = vpop.f32.mrf.mxu0
        %v2454 = vadd.f32 0.0, %v2453
        %2455 = vdwg.mxu0
        %2456 = vmatpush.bf16.msra.mxu0 %v1461
        %2457 = vmatpush.bf16.msra.mxu0 %v1457
        %2458 = vmatpush.bf16.msra.mxu0 %v1453
        %2459 = vmatpush.bf16.msra.mxu0 %v1449
        %2460 = vmatpush.bf16.msra.mxu0 %v1445
        %2461 = vmatpush.bf16.msra.mxu0 %v1441
        %2462 = vmatpush.bf16.msra.mxu0 %v1437
        %2463 = vmatpush.bf16.msra.mxu0 %v1433
        %2464 = vmatmul.bf16.gmra.mxu0 %v888
        %v2465 = vpop.f32.mrf.mxu0
        %v2466 = vadd.f32 %v2377, %v2465
        %v2467 = vpop.f32.mrf.mxu0
        %v2468 = vadd.f32 %v2379, %v2467
        %2469 = vmatmul.bf16.gmra.mxu0 %v892
        %v2470 = vpop.f32.mrf.mxu0
        %v2471 = vadd.f32 %v2382, %v2470
        %v2472 = vpop.f32.mrf.mxu0
        %v2473 = vadd.f32 %v2384, %v2472
        %2474 = vmatmul.bf16.gmra.mxu0 %v896
        %v2475 = vpop.f32.mrf.mxu0
        %v2476 = vadd.f32 %v2387, %v2475
        %v2477 = vpop.f32.mrf.mxu0
        %v2478 = vadd.f32 %v2389, %v2477
        %2479 = vmatmul.bf16.gmra.mxu0 %v900
        %v2480 = vpop.f32.mrf.mxu0
        %v2481 = vadd.f32 %v2392, %v2480
        %v2482 = vpop.f32.mrf.mxu0
        %v2483 = vadd.f32 %v2394, %v2482
        %2484 = vmatmul.bf16.gmra.mxu0 %v904
        %v2485 = vpop.f32.mrf.mxu0
        %v2486 = vadd.f32 %v2397, %v2485
        %v2487 = vpop.f32.mrf.mxu0
        %v2488 = vadd.f32 %v2399, %v2487
        %2489 = vmatmul.bf16.gmra.mxu0 %v908
        %v2490 = vpop.f32.mrf.mxu0
        %v2491 = vadd.f32 %v2402, %v2490
        %v2492 = vpop.f32.mrf.mxu0
        %v2493 = vadd.f32 %v2404, %v2492
        %2494 = vmatmul.bf16.gmra.mxu0 %v912
        %v2495 = vpop.f32.mrf.mxu0
        %v2496 = vadd.f32 %v2407, %v2495
        %v2497 = vpop.f32.mrf.mxu0
        %v2498 = vadd.f32 %v2409, %v2497
        %2499 = vmatmul.bf16.gmra.mxu0 %v916
        %v2500 = vpop.f32.mrf.mxu0
        %v2501 = vadd.f32 %v2412, %v2500
        %v2502 = vpop.f32.mrf.mxu0
        %v2503 = vadd.f32 %v2414, %v2502
        %2504 = vmatmul.bf16.gmra.mxu0 %v920
        %v2505 = vpop.f32.mrf.mxu0
        %v2506 = vadd.f32 %v2417, %v2505
        %v2507 = vpop.f32.mrf.mxu0
        %v2508 = vadd.f32 %v2419, %v2507
        %2509 = vmatmul.bf16.gmra.mxu0 %v924
        %v2510 = vpop.f32.mrf.mxu0
        %v2511 = vadd.f32 %v2422, %v2510
        %v2512 = vpop.f32.mrf.mxu0
        %v2513 = vadd.f32 %v2424, %v2512
        %2514 = vmatmul.bf16.gmra.mxu0 %v928
        %v2515 = vpop.f32.mrf.mxu0
        %v2516 = vadd.f32 %v2427, %v2515
        %v2517 = vpop.f32.mrf.mxu0
        %v2518 = vadd.f32 %v2429, %v2517
        %2519 = vmatmul.bf16.gmra.mxu0 %v932
        %v2520 = vpop.f32.mrf.mxu0
        %v2521 = vadd.f32 %v2432, %v2520
        %v2522 = vpop.f32.mrf.mxu0
        %v2523 = vadd.f32 %v2434, %v2522
        %2524 = vmatmul.bf16.gmra.mxu0 %v936
        %v2525 = vpop.f32.mrf.mxu0
        %v2526 = vadd.f32 %v2437, %v2525
        %v2527 = vpop.f32.mrf.mxu0
        %v2528 = vadd.f32 %v2439, %v2527
        %2529 = vmatmul.bf16.gmra.mxu0 %v940
        %v2530 = vpop.f32.mrf.mxu0
        %v2531 = vadd.f32 %v2442, %v2530
        %v2532 = vpop.f32.mrf.mxu0
        %v2533 = vadd.f32 %v2444, %v2532
        %2534 = vmatmul.bf16.gmra.mxu0 %v944
        %v2535 = vpop.f32.mrf.mxu0
        %v2536 = vadd.f32 %v2447, %v2535
        %v2537 = vpop.f32.mrf.mxu0
        %v2538 = vadd.f32 %v2449, %v2537
        %2539 = vmatmul.bf16.gmra.mxu0 %v948
        %v2540 = vpop.f32.mrf.mxu0
        %v2541 = vadd.f32 %v2452, %v2540
        %v2542 = vpop.f32.mrf.mxu0
        %v2543 = vadd.f32 %v2454, %v2542
        %2544 = vdwg.mxu0
        %2545 = vmatpush.bf16.msra.mxu0 %v1493
        %2546 = vmatpush.bf16.msra.mxu0 %v1489
        %2547 = vmatpush.bf16.msra.mxu0 %v1485
        %2548 = vmatpush.bf16.msra.mxu0 %v1481
        %2549 = vmatpush.bf16.msra.mxu0 %v1477
        %2550 = vmatpush.bf16.msra.mxu0 %v1473
        %2551 = vmatpush.bf16.msra.mxu0 %v1469
        %2552 = vmatpush.bf16.msra.mxu0 %v1465
        %2553 = vmatmul.bf16.gmra.mxu0 %v889
        %v2554 = vpop.f32.mrf.mxu0
        %v2555 = vadd.f32 %v2466, %v2554
        %v2556 = vpop.f32.mrf.mxu0
        %v2557 = vadd.f32 %v2468, %v2556
        %2558 = vmatmul.bf16.gmra.mxu0 %v893
        %v2559 = vpop.f32.mrf.mxu0
        %v2560 = vadd.f32 %v2471, %v2559
        %v2561 = vpop.f32.mrf.mxu0
        %v2562 = vadd.f32 %v2473, %v2561
        %2563 = vmatmul.bf16.gmra.mxu0 %v897
        %v2564 = vpop.f32.mrf.mxu0
        %v2565 = vadd.f32 %v2476, %v2564
        %v2566 = vpop.f32.mrf.mxu0
        %v2567 = vadd.f32 %v2478, %v2566
        %2568 = vmatmul.bf16.gmra.mxu0 %v901
        %v2569 = vpop.f32.mrf.mxu0
        %v2570 = vadd.f32 %v2481, %v2569
        %v2571 = vpop.f32.mrf.mxu0
        %v2572 = vadd.f32 %v2483, %v2571
        %2573 = vmatmul.bf16.gmra.mxu0 %v905
        %v2574 = vpop.f32.mrf.mxu0
        %v2575 = vadd.f32 %v2486, %v2574
        %v2576 = vpop.f32.mrf.mxu0
        %v2577 = vadd.f32 %v2488, %v2576
        %2578 = vmatmul.bf16.gmra.mxu0 %v909
        %v2579 = vpop.f32.mrf.mxu0
        %v2580 = vadd.f32 %v2491, %v2579
        %v2581 = vpop.f32.mrf.mxu0
        %v2582 = vadd.f32 %v2493, %v2581
        %2583 = vmatmul.bf16.gmra.mxu0 %v913
        %v2584 = vpop.f32.mrf.mxu0
        %v2585 = vadd.f32 %v2496, %v2584
        %v2586 = vpop.f32.mrf.mxu0
        %v2587 = vadd.f32 %v2498, %v2586
        %2588 = vmatmul.bf16.gmra.mxu0 %v917
        %v2589 = vpop.f32.mrf.mxu0
        %v2590 = vadd.f32 %v2501, %v2589
        %v2591 = vpop.f32.mrf.mxu0
        %v2592 = vadd.f32 %v2503, %v2591
        %2593 = vmatmul.bf16.gmra.mxu0 %v921
        %v2594 = vpop.f32.mrf.mxu0
        %v2595 = vadd.f32 %v2506, %v2594
        %v2596 = vpop.f32.mrf.mxu0
        %v2597 = vadd.f32 %v2508, %v2596
        %2598 = vmatmul.bf16.gmra.mxu0 %v925
        %v2599 = vpop.f32.mrf.mxu0
        %v2600 = vadd.f32 %v2511, %v2599
        %v2601 = vpop.f32.mrf.mxu0
        %v2602 = vadd.f32 %v2513, %v2601
        %2603 = vmatmul.bf16.gmra.mxu0 %v929
        %v2604 = vpop.f32.mrf.mxu0
        %v2605 = vadd.f32 %v2516, %v2604
        %v2606 = vpop.f32.mrf.mxu0
        %v2607 = vadd.f32 %v2518, %v2606
        %2608 = vmatmul.bf16.gmra.mxu0 %v933
        %v2609 = vpop.f32.mrf.mxu0
        %v2610 = vadd.f32 %v2521, %v2609
        %v2611 = vpop.f32.mrf.mxu0
        %v2612 = vadd.f32 %v2523, %v2611
        %2613 = vmatmul.bf16.gmra.mxu0 %v937
        %v2614 = vpop.f32.mrf.mxu0
        %v2615 = vadd.f32 %v2526, %v2614
        %v2616 = vpop.f32.mrf.mxu0
        %v2617 = vadd.f32 %v2528, %v2616
        %2618 = vmatmul.bf16.gmra.mxu0 %v941
        %v2619 = vpop.f32.mrf.mxu0
        %v2620 = vadd.f32 %v2531, %v2619
        %v2621 = vpop.f32.mrf.mxu0
        %v2622 = vadd.f32 %v2533, %v2621
        %2623 = vmatmul.bf16.gmra.mxu0 %v945
        %v2624 = vpop.f32.mrf.mxu0
        %v2625 = vadd.f32 %v2536, %v2624
        %v2626 = vpop.f32.mrf.mxu0
        %v2627 = vadd.f32 %v2538, %v2626
        %2628 = vmatmul.bf16.gmra.mxu0 %v949
        %v2629 = vpop.f32.mrf.mxu0
        %v2630 = vadd.f32 %v2541, %v2629
        %v2631 = vpop.f32.mrf.mxu0
        %v2632 = vadd.f32 %v2543, %v2631
        %2633 = vdwg.mxu0
        %2634 = vmatpush.bf16.msra.mxu0 %v1525
        %2635 = vmatpush.bf16.msra.mxu0 %v1521
        %2636 = vmatpush.bf16.msra.mxu0 %v1517
        %2637 = vmatpush.bf16.msra.mxu0 %v1513
        %2638 = vmatpush.bf16.msra.mxu0 %v1509
        %2639 = vmatpush.bf16.msra.mxu0 %v1505
        %2640 = vmatpush.bf16.msra.mxu0 %v1501
        %2641 = vmatpush.bf16.msra.mxu0 %v1497
        %2642 = vmatmul.bf16.gmra.mxu0 %v890
        %v2643 = vpop.f32.mrf.mxu0
        %v2644 = vadd.f32 %v2555, %v2643
        %v2645 = vpop.f32.mrf.mxu0
        %v2646 = vadd.f32 %v2557, %v2645
        %2647 = vmatmul.bf16.gmra.mxu0 %v894
        %v2648 = vpop.f32.mrf.mxu0
        %v2649 = vadd.f32 %v2560, %v2648
        %v2650 = vpop.f32.mrf.mxu0
        %v2651 = vadd.f32 %v2562, %v2650
        %2652 = vmatmul.bf16.gmra.mxu0 %v898
        %v2653 = vpop.f32.mrf.mxu0
        %v2654 = vadd.f32 %v2565, %v2653
        %v2655 = vpop.f32.mrf.mxu0
        %v2656 = vadd.f32 %v2567, %v2655
        %2657 = vmatmul.bf16.gmra.mxu0 %v902
        %v2658 = vpop.f32.mrf.mxu0
        %v2659 = vadd.f32 %v2570, %v2658
        %v2660 = vpop.f32.mrf.mxu0
        %v2661 = vadd.f32 %v2572, %v2660
        %2662 = vmatmul.bf16.gmra.mxu0 %v906
        %v2663 = vpop.f32.mrf.mxu0
        %v2664 = vadd.f32 %v2575, %v2663
        %v2665 = vpop.f32.mrf.mxu0
        %v2666 = vadd.f32 %v2577, %v2665
        %2667 = vmatmul.bf16.gmra.mxu0 %v910
        %v2668 = vpop.f32.mrf.mxu0
        %v2669 = vadd.f32 %v2580, %v2668
        %v2670 = vpop.f32.mrf.mxu0
        %v2671 = vadd.f32 %v2582, %v2670
        %2672 = vmatmul.bf16.gmra.mxu0 %v914
        %v2673 = vpop.f32.mrf.mxu0
        %v2674 = vadd.f32 %v2585, %v2673
        %v2675 = vpop.f32.mrf.mxu0
        %v2676 = vadd.f32 %v2587, %v2675
        %2677 = vmatmul.bf16.gmra.mxu0 %v918
        %v2678 = vpop.f32.mrf.mxu0
        %v2679 = vadd.f32 %v2590, %v2678
        %v2680 = vpop.f32.mrf.mxu0
        %v2681 = vadd.f32 %v2592, %v2680
        %2682 = vmatmul.bf16.gmra.mxu0 %v922
        %v2683 = vpop.f32.mrf.mxu0
        %v2684 = vadd.f32 %v2595, %v2683
        %v2685 = vpop.f32.mrf.mxu0
        %v2686 = vadd.f32 %v2597, %v2685
        %2687 = vmatmul.bf16.gmra.mxu0 %v926
        %v2688 = vpop.f32.mrf.mxu0
        %v2689 = vadd.f32 %v2600, %v2688
        %v2690 = vpop.f32.mrf.mxu0
        %v2691 = vadd.f32 %v2602, %v2690
        %2692 = vmatmul.bf16.gmra.mxu0 %v930
        %v2693 = vpop.f32.mrf.mxu0
        %v2694 = vadd.f32 %v2605, %v2693
        %v2695 = vpop.f32.mrf.mxu0
        %v2696 = vadd.f32 %v2607, %v2695
        %2697 = vmatmul.bf16.gmra.mxu0 %v934
        %v2698 = vpop.f32.mrf.mxu0
        %v2699 = vadd.f32 %v2610, %v2698
        %v2700 = vpop.f32.mrf.mxu0
        %v2701 = vadd.f32 %v2612, %v2700
        %2702 = vmatmul.bf16.gmra.mxu0 %v938
        %v2703 = vpop.f32.mrf.mxu0
        %v2704 = vadd.f32 %v2615, %v2703
        %v2705 = vpop.f32.mrf.mxu0
        %v2706 = vadd.f32 %v2617, %v2705
        %2707 = vmatmul.bf16.gmra.mxu0 %v942
        %v2708 = vpop.f32.mrf.mxu0
        %v2709 = vadd.f32 %v2620, %v2708
        %v2710 = vpop.f32.mrf.mxu0
        %v2711 = vadd.f32 %v2622, %v2710
        %2712 = vmatmul.bf16.gmra.mxu0 %v946
        %v2713 = vpop.f32.mrf.mxu0
        %v2714 = vadd.f32 %v2625, %v2713
        %v2715 = vpop.f32.mrf.mxu0
        %v2716 = vadd.f32 %v2627, %v2715
        %2717 = vmatmul.bf16.gmra.mxu0 %v950
        %v2718 = vpop.f32.mrf.mxu0
        %v2719 = vadd.f32 %v2630, %v2718
        %v2720 = vpop.f32.mrf.mxu0
        %v2721 = vadd.f32 %v2632, %v2720
        %2722 = vdwg.mxu0
        %2723 = vmatpush.bf16.msra.mxu0 %v1430
        %2724 = vmatpush.bf16.msra.mxu0 %v1426
        %2725 = vmatpush.bf16.msra.mxu0 %v1422
        %2726 = vmatpush.bf16.msra.mxu0 %v1418
        %2727 = vmatpush.bf16.msra.mxu0 %v1414
        %2728 = vmatpush.bf16.msra.mxu0 %v1410
        %2729 = vmatpush.bf16.msra.mxu0 %v1406
        %2730 = vmatpush.bf16.msra.mxu0 %v1402
        %2731 = vmatmul.bf16.gmra.mxu0 %v887
        %v2732 = vpop.f32.mrf.mxu0
        %v2733 = vadd.f32 0.0, %v2732
        %v2734 = vpop.f32.mrf.mxu0
        %v2735 = vadd.f32 0.0, %v2734
        %2736 = vmatmul.bf16.gmra.mxu0 %v891
        %v2737 = vpop.f32.mrf.mxu0
        %v2738 = vadd.f32 0.0, %v2737
        %v2739 = vpop.f32.mrf.mxu0
        %v2740 = vadd.f32 0.0, %v2739
        %2741 = vmatmul.bf16.gmra.mxu0 %v895
        %v2742 = vpop.f32.mrf.mxu0
        %v2743 = vadd.f32 0.0, %v2742
        %v2744 = vpop.f32.mrf.mxu0
        %v2745 = vadd.f32 0.0, %v2744
        %2746 = vmatmul.bf16.gmra.mxu0 %v899
        %v2747 = vpop.f32.mrf.mxu0
        %v2748 = vadd.f32 0.0, %v2747
        %v2749 = vpop.f32.mrf.mxu0
        %v2750 = vadd.f32 0.0, %v2749
        %2751 = vmatmul.bf16.gmra.mxu0 %v903
        %v2752 = vpop.f32.mrf.mxu0
        %v2753 = vadd.f32 0.0, %v2752
        %v2754 = vpop.f32.mrf.mxu0
        %v2755 = vadd.f32 0.0, %v2754
        %2756 = vmatmul.bf16.gmra.mxu0 %v907
        %v2757 = vpop.f32.mrf.mxu0
        %v2758 = vadd.f32 0.0, %v2757
        %v2759 = vpop.f32.mrf.mxu0
        %v2760 = vadd.f32 0.0, %v2759
        %2761 = vmatmul.bf16.gmra.mxu0 %v911
        %v2762 = vpop.f32.mrf.mxu0
        %v2763 = vadd.f32 0.0, %v2762
        %v2764 = vpop.f32.mrf.mxu0
        %v2765 = vadd.f32 0.0, %v2764
        %2766 = vmatmul.bf16.gmra.mxu0 %v915
        %v2767 = vpop.f32.mrf.mxu0
        %v2768 = vadd.f32 0.0, %v2767
        %v2769 = vpop.f32.mrf.mxu0
        %v2770 = vadd.f32 0.0, %v2769
        %2771 = vmatmul.bf16.gmra.mxu0 %v919
        %v2772 = vpop.f32.mrf.mxu0
        %v2773 = vadd.f32 0.0, %v2772
        %v2774 = vpop.f32.mrf.mxu0
        %v2775 = vadd.f32 0.0, %v2774
        %2776 = vmatmul.bf16.gmra.mxu0 %v923
        %v2777 = vpop.f32.mrf.mxu0
        %v2778 = vadd.f32 0.0, %v2777
        %v2779 = vpop.f32.mrf.mxu0
        %v2780 = vadd.f32 0.0, %v2779
        %2781 = vmatmul.bf16.gmra.mxu0 %v927
        %v2782 = vpop.f32.mrf.mxu0
        %v2783 = vadd.f32 0.0, %v2782
        %v2784 = vpop.f32.mrf.mxu0
        %v2785 = vadd.f32 0.0, %v2784
        %2786 = vmatmul.bf16.gmra.mxu0 %v931
        %v2787 = vpop.f32.mrf.mxu0
        %v2788 = vadd.f32 0.0, %v2787
        %v2789 = vpop.f32.mrf.mxu0
        %v2790 = vadd.f32 0.0, %v2789
        %2791 = vmatmul.bf16.gmra.mxu0 %v935
        %v2792 = vpop.f32.mrf.mxu0
        %v2793 = vadd.f32 0.0, %v2792
        %v2794 = vpop.f32.mrf.mxu0
        %v2795 = vadd.f32 0.0, %v2794
        %2796 = vmatmul.bf16.gmra.mxu0 %v939
        %v2797 = vpop.f32.mrf.mxu0
        %v2798 = vadd.f32 0.0, %v2797
        %v2799 = vpop.f32.mrf.mxu0
        %v2800 = vadd.f32 0.0, %v2799
        %2801 = vmatmul.bf16.gmra.mxu0 %v943
        %v2802 = vpop.f32.mrf.mxu0
        %v2803 = vadd.f32 0.0, %v2802
        %v2804 = vpop.f32.mrf.mxu0
        %v2805 = vadd.f32 0.0, %v2804
        %2806 = vmatmul.bf16.gmra.mxu0 %v947
        %v2807 = vpop.f32.mrf.mxu0
        %v2808 = vadd.f32 0.0, %v2807
        %v2809 = vpop.f32.mrf.mxu0
        %v2810 = vadd.f32 0.0, %v2809
        %2811 = vdwg.mxu0
        %2812 = vmatpush.bf16.msra.mxu0 %v1462
        %2813 = vmatpush.bf16.msra.mxu0 %v1458
        %2814 = vmatpush.bf16.msra.mxu0 %v1454
        %2815 = vmatpush.bf16.msra.mxu0 %v1450
        %2816 = vmatpush.bf16.msra.mxu0 %v1446
        %2817 = vmatpush.bf16.msra.mxu0 %v1442
        %2818 = vmatpush.bf16.msra.mxu0 %v1438
        %2819 = vmatpush.bf16.msra.mxu0 %v1434
        %2820 = vmatmul.bf16.gmra.mxu0 %v888
        %v2821 = vpop.f32.mrf.mxu0
        %v2822 = vadd.f32 %v2733, %v2821
        %v2823 = vpop.f32.mrf.mxu0
        %v2824 = vadd.f32 %v2735, %v2823
        %2825 = vmatmul.bf16.gmra.mxu0 %v892
        %v2826 = vpop.f32.mrf.mxu0
        %v2827 = vadd.f32 %v2738, %v2826
        %v2828 = vpop.f32.mrf.mxu0
        %v2829 = vadd.f32 %v2740, %v2828
        %2830 = vmatmul.bf16.gmra.mxu0 %v896
        %v2831 = vpop.f32.mrf.mxu0
        %v2832 = vadd.f32 %v2743, %v2831
        %v2833 = vpop.f32.mrf.mxu0
        %v2834 = vadd.f32 %v2745, %v2833
        %2835 = vmatmul.bf16.gmra.mxu0 %v900
        %v2836 = vpop.f32.mrf.mxu0
        %v2837 = vadd.f32 %v2748, %v2836
        %v2838 = vpop.f32.mrf.mxu0
        %v2839 = vadd.f32 %v2750, %v2838
        %2840 = vmatmul.bf16.gmra.mxu0 %v904
        %v2841 = vpop.f32.mrf.mxu0
        %v2842 = vadd.f32 %v2753, %v2841
        %v2843 = vpop.f32.mrf.mxu0
        %v2844 = vadd.f32 %v2755, %v2843
        %2845 = vmatmul.bf16.gmra.mxu0 %v908
        %v2846 = vpop.f32.mrf.mxu0
        %v2847 = vadd.f32 %v2758, %v2846
        %v2848 = vpop.f32.mrf.mxu0
        %v2849 = vadd.f32 %v2760, %v2848
        %2850 = vmatmul.bf16.gmra.mxu0 %v912
        %v2851 = vpop.f32.mrf.mxu0
        %v2852 = vadd.f32 %v2763, %v2851
        %v2853 = vpop.f32.mrf.mxu0
        %v2854 = vadd.f32 %v2765, %v2853
        %2855 = vmatmul.bf16.gmra.mxu0 %v916
        %v2856 = vpop.f32.mrf.mxu0
        %v2857 = vadd.f32 %v2768, %v2856
        %v2858 = vpop.f32.mrf.mxu0
        %v2859 = vadd.f32 %v2770, %v2858
        %2860 = vmatmul.bf16.gmra.mxu0 %v920
        %v2861 = vpop.f32.mrf.mxu0
        %v2862 = vadd.f32 %v2773, %v2861
        %v2863 = vpop.f32.mrf.mxu0
        %v2864 = vadd.f32 %v2775, %v2863
        %2865 = vmatmul.bf16.gmra.mxu0 %v924
        %v2866 = vpop.f32.mrf.mxu0
        %v2867 = vadd.f32 %v2778, %v2866
        %v2868 = vpop.f32.mrf.mxu0
        %v2869 = vadd.f32 %v2780, %v2868
        %2870 = vmatmul.bf16.gmra.mxu0 %v928
        %v2871 = vpop.f32.mrf.mxu0
        %v2872 = vadd.f32 %v2783, %v2871
        %v2873 = vpop.f32.mrf.mxu0
        %v2874 = vadd.f32 %v2785, %v2873
        %2875 = vmatmul.bf16.gmra.mxu0 %v932
        %v2876 = vpop.f32.mrf.mxu0
        %v2877 = vadd.f32 %v2788, %v2876
        %v2878 = vpop.f32.mrf.mxu0
        %v2879 = vadd.f32 %v2790, %v2878
        %2880 = vmatmul.bf16.gmra.mxu0 %v936
        %v2881 = vpop.f32.mrf.mxu0
        %v2882 = vadd.f32 %v2793, %v2881
        %v2883 = vpop.f32.mrf.mxu0
        %v2884 = vadd.f32 %v2795, %v2883
        %2885 = vmatmul.bf16.gmra.mxu0 %v940
        %v2886 = vpop.f32.mrf.mxu0
        %v2887 = vadd.f32 %v2798, %v2886
        %v2888 = vpop.f32.mrf.mxu0
        %v2889 = vadd.f32 %v2800, %v2888
        %2890 = vmatmul.bf16.gmra.mxu0 %v944
        %v2891 = vpop.f32.mrf.mxu0
        %v2892 = vadd.f32 %v2803, %v2891
        %v2893 = vpop.f32.mrf.mxu0
        %v2894 = vadd.f32 %v2805, %v2893
        %2895 = vmatmul.bf16.gmra.mxu0 %v948
        %v2896 = vpop.f32.mrf.mxu0
        %v2897 = vadd.f32 %v2808, %v2896
        %v2898 = vpop.f32.mrf.mxu0
        %v2899 = vadd.f32 %v2810, %v2898
        %2900 = vdwg.mxu0
        %2901 = vmatpush.bf16.msra.mxu0 %v1494
        %2902 = vmatpush.bf16.msra.mxu0 %v1490
        %2903 = vmatpush.bf16.msra.mxu0 %v1486
        %2904 = vmatpush.bf16.msra.mxu0 %v1482
        %2905 = vmatpush.bf16.msra.mxu0 %v1478
        %2906 = vmatpush.bf16.msra.mxu0 %v1474
        %2907 = vmatpush.bf16.msra.mxu0 %v1470
        %2908 = vmatpush.bf16.msra.mxu0 %v1466
        %2909 = vmatmul.bf16.gmra.mxu0 %v889
        %v2910 = vpop.f32.mrf.mxu0
        %v2911 = vadd.f32 %v2822, %v2910
        %v2912 = vpop.f32.mrf.mxu0
        %v2913 = vadd.f32 %v2824, %v2912
        %2914 = vmatmul.bf16.gmra.mxu0 %v893
        %v2915 = vpop.f32.mrf.mxu0
        %v2916 = vadd.f32 %v2827, %v2915
        %v2917 = vpop.f32.mrf.mxu0
        %v2918 = vadd.f32 %v2829, %v2917
        %2919 = vmatmul.bf16.gmra.mxu0 %v897
        %v2920 = vpop.f32.mrf.mxu0
        %v2921 = vadd.f32 %v2832, %v2920
        %v2922 = vpop.f32.mrf.mxu0
        %v2923 = vadd.f32 %v2834, %v2922
        %2924 = vmatmul.bf16.gmra.mxu0 %v901
        %v2925 = vpop.f32.mrf.mxu0
        %v2926 = vadd.f32 %v2837, %v2925
        %v2927 = vpop.f32.mrf.mxu0
        %v2928 = vadd.f32 %v2839, %v2927
        %2929 = vmatmul.bf16.gmra.mxu0 %v905
        %v2930 = vpop.f32.mrf.mxu0
        %v2931 = vadd.f32 %v2842, %v2930
        %v2932 = vpop.f32.mrf.mxu0
        %v2933 = vadd.f32 %v2844, %v2932
        %2934 = vmatmul.bf16.gmra.mxu0 %v909
        %v2935 = vpop.f32.mrf.mxu0
        %v2936 = vadd.f32 %v2847, %v2935
        %v2937 = vpop.f32.mrf.mxu0
        %v2938 = vadd.f32 %v2849, %v2937
        %2939 = vmatmul.bf16.gmra.mxu0 %v913
        %v2940 = vpop.f32.mrf.mxu0
        %v2941 = vadd.f32 %v2852, %v2940
        %v2942 = vpop.f32.mrf.mxu0
        %v2943 = vadd.f32 %v2854, %v2942
        %2944 = vmatmul.bf16.gmra.mxu0 %v917
        %v2945 = vpop.f32.mrf.mxu0
        %v2946 = vadd.f32 %v2857, %v2945
        %v2947 = vpop.f32.mrf.mxu0
        %v2948 = vadd.f32 %v2859, %v2947
        %2949 = vmatmul.bf16.gmra.mxu0 %v921
        %v2950 = vpop.f32.mrf.mxu0
        %v2951 = vadd.f32 %v2862, %v2950
        %v2952 = vpop.f32.mrf.mxu0
        %v2953 = vadd.f32 %v2864, %v2952
        %2954 = vmatmul.bf16.gmra.mxu0 %v925
        %v2955 = vpop.f32.mrf.mxu0
        %v2956 = vadd.f32 %v2867, %v2955
        %v2957 = vpop.f32.mrf.mxu0
        %v2958 = vadd.f32 %v2869, %v2957
        %2959 = vmatmul.bf16.gmra.mxu0 %v929
        %v2960 = vpop.f32.mrf.mxu0
        %v2961 = vadd.f32 %v2872, %v2960
        %v2962 = vpop.f32.mrf.mxu0
        %v2963 = vadd.f32 %v2874, %v2962
        %2964 = vmatmul.bf16.gmra.mxu0 %v933
        %v2965 = vpop.f32.mrf.mxu0
        %v2966 = vadd.f32 %v2877, %v2965
        %v2967 = vpop.f32.mrf.mxu0
        %v2968 = vadd.f32 %v2879, %v2967
        %2969 = vmatmul.bf16.gmra.mxu0 %v937
        %v2970 = vpop.f32.mrf.mxu0
        %v2971 = vadd.f32 %v2882, %v2970
        %v2972 = vpop.f32.mrf.mxu0
        %v2973 = vadd.f32 %v2884, %v2972
        %2974 = vmatmul.bf16.gmra.mxu0 %v941
        %v2975 = vpop.f32.mrf.mxu0
        %v2976 = vadd.f32 %v2887, %v2975
        %v2977 = vpop.f32.mrf.mxu0
        %v2978 = vadd.f32 %v2889, %v2977
        %2979 = vmatmul.bf16.gmra.mxu0 %v945
        %v2980 = vpop.f32.mrf.mxu0
        %v2981 = vadd.f32 %v2892, %v2980
        %v2982 = vpop.f32.mrf.mxu0
        %v2983 = vadd.f32 %v2894, %v2982
        %2984 = vmatmul.bf16.gmra.mxu0 %v949
        %v2985 = vpop.f32.mrf.mxu0
        %v2986 = vadd.f32 %v2897, %v2985
        %v2987 = vpop.f32.mrf.mxu0
        %v2988 = vadd.f32 %v2899, %v2987
        %2989 = vdwg.mxu0
        %2990 = vmatpush.bf16.msra.mxu0 %v1526
        %2991 = vmatpush.bf16.msra.mxu0 %v1522
        %2992 = vmatpush.bf16.msra.mxu0 %v1518
        %2993 = vmatpush.bf16.msra.mxu0 %v1514
        %2994 = vmatpush.bf16.msra.mxu0 %v1510
        %2995 = vmatpush.bf16.msra.mxu0 %v1506
        %2996 = vmatpush.bf16.msra.mxu0 %v1502
        %2997 = vmatpush.bf16.msra.mxu0 %v1498
        %2998 = vmatmul.bf16.gmra.mxu0 %v890
        %v2999 = vpop.f32.mrf.mxu0
        %v3000 = vadd.f32 %v2911, %v2999
        %v3001 = vpop.f32.mrf.mxu0
        %v3002 = vadd.f32 %v2913, %v3001
        %3003 = vmatmul.bf16.gmra.mxu0 %v894
        %v3004 = vpop.f32.mrf.mxu0
        %v3005 = vadd.f32 %v2916, %v3004
        %v3006 = vpop.f32.mrf.mxu0
        %v3007 = vadd.f32 %v2918, %v3006
        %3008 = vmatmul.bf16.gmra.mxu0 %v898
        %v3009 = vpop.f32.mrf.mxu0
        %v3010 = vadd.f32 %v2921, %v3009
        %v3011 = vpop.f32.mrf.mxu0
        %v3012 = vadd.f32 %v2923, %v3011
        %3013 = vmatmul.bf16.gmra.mxu0 %v902
        %v3014 = vpop.f32.mrf.mxu0
        %v3015 = vadd.f32 %v2926, %v3014
        %v3016 = vpop.f32.mrf.mxu0
        %v3017 = vadd.f32 %v2928, %v3016
        %3018 = vmatmul.bf16.gmra.mxu0 %v906
        %v3019 = vpop.f32.mrf.mxu0
        %v3020 = vadd.f32 %v2931, %v3019
        %v3021 = vpop.f32.mrf.mxu0
        %v3022 = vadd.f32 %v2933, %v3021
        %3023 = vmatmul.bf16.gmra.mxu0 %v910
        %v3024 = vpop.f32.mrf.mxu0
        %v3025 = vadd.f32 %v2936, %v3024
        %v3026 = vpop.f32.mrf.mxu0
        %v3027 = vadd.f32 %v2938, %v3026
        %3028 = vmatmul.bf16.gmra.mxu0 %v914
        %v3029 = vpop.f32.mrf.mxu0
        %v3030 = vadd.f32 %v2941, %v3029
        %v3031 = vpop.f32.mrf.mxu0
        %v3032 = vadd.f32 %v2943, %v3031
        %3033 = vmatmul.bf16.gmra.mxu0 %v918
        %v3034 = vpop.f32.mrf.mxu0
        %v3035 = vadd.f32 %v2946, %v3034
        %v3036 = vpop.f32.mrf.mxu0
        %v3037 = vadd.f32 %v2948, %v3036
        %3038 = vmatmul.bf16.gmra.mxu0 %v922
        %v3039 = vpop.f32.mrf.mxu0
        %v3040 = vadd.f32 %v2951, %v3039
        %v3041 = vpop.f32.mrf.mxu0
        %v3042 = vadd.f32 %v2953, %v3041
        %3043 = vmatmul.bf16.gmra.mxu0 %v926
        %v3044 = vpop.f32.mrf.mxu0
        %v3045 = vadd.f32 %v2956, %v3044
        %v3046 = vpop.f32.mrf.mxu0
        %v3047 = vadd.f32 %v2958, %v3046
        %3048 = vmatmul.bf16.gmra.mxu0 %v930
        %v3049 = vpop.f32.mrf.mxu0
        %v3050 = vadd.f32 %v2961, %v3049
        %v3051 = vpop.f32.mrf.mxu0
        %v3052 = vadd.f32 %v2963, %v3051
        %3053 = vmatmul.bf16.gmra.mxu0 %v934
        %v3054 = vpop.f32.mrf.mxu0
        %v3055 = vadd.f32 %v2966, %v3054
        %v3056 = vpop.f32.mrf.mxu0
        %v3057 = vadd.f32 %v2968, %v3056
        %3058 = vmatmul.bf16.gmra.mxu0 %v938
        %v3059 = vpop.f32.mrf.mxu0
        %v3060 = vadd.f32 %v2971, %v3059
        %v3061 = vpop.f32.mrf.mxu0
        %v3062 = vadd.f32 %v2973, %v3061
        %3063 = vmatmul.bf16.gmra.mxu0 %v942
        %v3064 = vpop.f32.mrf.mxu0
        %v3065 = vadd.f32 %v2976, %v3064
        %v3066 = vpop.f32.mrf.mxu0
        %v3067 = vadd.f32 %v2978, %v3066
        %3068 = vmatmul.bf16.gmra.mxu0 %v946
        %v3069 = vpop.f32.mrf.mxu0
        %v3070 = vadd.f32 %v2981, %v3069
        %v3071 = vpop.f32.mrf.mxu0
        %v3072 = vadd.f32 %v2983, %v3071
        %3073 = vmatmul.bf16.gmra.mxu0 %v950
        %v3074 = vpop.f32.mrf.mxu0
        %v3075 = vadd.f32 %v2986, %v3074
        %v3076 = vpop.f32.mrf.mxu0
        %v3077 = vadd.f32 %v2988, %v3076
        %3078 = vdwg.mxu0
        %v3079 = vadd.f32 %v375, %v1932
        %v3080 = vadd.f32 %v376, %v2288
        %v3081 = vadd.f32 %v377, %v2644
        %v3082 = vadd.f32 %v378, %v3000
        %v3083 = vadd.f32 %v379, %v1934
        %v3084 = vadd.f32 %v380, %v2290
        %v3085 = vadd.f32 %v381, %v2646
        %v3086 = vadd.f32 %v382, %v3002
        %v3087 = vadd.f32 %v383, %v1937
        %v3088 = vadd.f32 %v384, %v2293
        %v3089 = vadd.f32 %v385, %v2649
        %v3090 = vadd.f32 %v386, %v3005
        %v3091 = vadd.f32 %v387, %v1939
        %v3092 = vadd.f32 %v388, %v2295
        %v3093 = vadd.f32 %v389, %v2651
        %v3094 = vadd.f32 %v390, %v3007
        %v3095 = vadd.f32 %v391, %v1942
        %v3096 = vadd.f32 %v392, %v2298
        %v3097 = vadd.f32 %v393, %v2654
        %v3098 = vadd.f32 %v394, %v3010
        %v3099 = vadd.f32 %v395, %v1944
        %v3100 = vadd.f32 %v396, %v2300
        %v3101 = vadd.f32 %v397, %v2656
        %v3102 = vadd.f32 %v398, %v3012
        %v3103 = vadd.f32 %v399, %v1947
        %v3104 = vadd.f32 %v400, %v2303
        %v3105 = vadd.f32 %v401, %v2659
        %v3106 = vadd.f32 %v402, %v3015
        %v3107 = vadd.f32 %v403, %v1949
        %v3108 = vadd.f32 %v404, %v2305
        %v3109 = vadd.f32 %v405, %v2661
        %v3110 = vadd.f32 %v406, %v3017
        %v3111 = vadd.f32 %v407, %v1952
        %v3112 = vadd.f32 %v408, %v2308
        %v3113 = vadd.f32 %v409, %v2664
        %v3114 = vadd.f32 %v410, %v3020
        %v3115 = vadd.f32 %v411, %v1954
        %v3116 = vadd.f32 %v412, %v2310
        %v3117 = vadd.f32 %v413, %v2666
        %v3118 = vadd.f32 %v414, %v3022
        %v3119 = vadd.f32 %v415, %v1957
        %v3120 = vadd.f32 %v416, %v2313
        %v3121 = vadd.f32 %v417, %v2669
        %v3122 = vadd.f32 %v418, %v3025
        %v3123 = vadd.f32 %v419, %v1959
        %v3124 = vadd.f32 %v420, %v2315
        %v3125 = vadd.f32 %v421, %v2671
        %v3126 = vadd.f32 %v422, %v3027
        %v3127 = vadd.f32 %v423, %v1962
        %v3128 = vadd.f32 %v424, %v2318
        %v3129 = vadd.f32 %v425, %v2674
        %v3130 = vadd.f32 %v426, %v3030
        %v3131 = vadd.f32 %v427, %v1964
        %v3132 = vadd.f32 %v428, %v2320
        %v3133 = vadd.f32 %v429, %v2676
        %v3134 = vadd.f32 %v430, %v3032
        %v3135 = vadd.f32 %v431, %v1967
        %v3136 = vadd.f32 %v432, %v2323
        %v3137 = vadd.f32 %v433, %v2679
        %v3138 = vadd.f32 %v434, %v3035
        %v3139 = vadd.f32 %v435, %v1969
        %v3140 = vadd.f32 %v436, %v2325
        %v3141 = vadd.f32 %v437, %v2681
        %v3142 = vadd.f32 %v438, %v3037
        %v3143 = vadd.f32 %v439, %v1972
        %v3144 = vadd.f32 %v440, %v2328
        %v3145 = vadd.f32 %v441, %v2684
        %v3146 = vadd.f32 %v442, %v3040
        %v3147 = vadd.f32 %v443, %v1974
        %v3148 = vadd.f32 %v444, %v2330
        %v3149 = vadd.f32 %v445, %v2686
        %v3150 = vadd.f32 %v446, %v3042
        %v3151 = vadd.f32 %v447, %v1977
        %v3152 = vadd.f32 %v448, %v2333
        %v3153 = vadd.f32 %v449, %v2689
        %v3154 = vadd.f32 %v450, %v3045
        %v3155 = vadd.f32 %v451, %v1979
        %v3156 = vadd.f32 %v452, %v2335
        %v3157 = vadd.f32 %v453, %v2691
        %v3158 = vadd.f32 %v454, %v3047
        %v3159 = vadd.f32 %v455, %v1982
        %v3160 = vadd.f32 %v456, %v2338
        %v3161 = vadd.f32 %v457, %v2694
        %v3162 = vadd.f32 %v458, %v3050
        %v3163 = vadd.f32 %v459, %v1984
        %v3164 = vadd.f32 %v460, %v2340
        %v3165 = vadd.f32 %v461, %v2696
        %v3166 = vadd.f32 %v462, %v3052
        %v3167 = vadd.f32 %v463, %v1987
        %v3168 = vadd.f32 %v464, %v2343
        %v3169 = vadd.f32 %v465, %v2699
        %v3170 = vadd.f32 %v466, %v3055
        %v3171 = vadd.f32 %v467, %v1989
        %v3172 = vadd.f32 %v468, %v2345
        %v3173 = vadd.f32 %v469, %v2701
        %v3174 = vadd.f32 %v470, %v3057
        %v3175 = vadd.f32 %v471, %v1992
        %v3176 = vadd.f32 %v472, %v2348
        %v3177 = vadd.f32 %v473, %v2704
        %v3178 = vadd.f32 %v474, %v3060
        %v3179 = vadd.f32 %v475, %v1994
        %v3180 = vadd.f32 %v476, %v2350
        %v3181 = vadd.f32 %v477, %v2706
        %v3182 = vadd.f32 %v478, %v3062
        %v3183 = vadd.f32 %v479, %v1997
        %v3184 = vadd.f32 %v480, %v2353
        %v3185 = vadd.f32 %v481, %v2709
        %v3186 = vadd.f32 %v482, %v3065
        %v3187 = vadd.f32 %v483, %v1999
        %v3188 = vadd.f32 %v484, %v2355
        %v3189 = vadd.f32 %v485, %v2711
        %v3190 = vadd.f32 %v486, %v3067
        %v3191 = vadd.f32 %v487, %v2002
        %v3192 = vadd.f32 %v488, %v2358
        %v3193 = vadd.f32 %v489, %v2714
        %v3194 = vadd.f32 %v490, %v3070
        %v3195 = vadd.f32 %v491, %v2004
        %v3196 = vadd.f32 %v492, %v2360
        %v3197 = vadd.f32 %v493, %v2716
        %v3198 = vadd.f32 %v494, %v3072
        %v3199 = vadd.f32 %v495, %v2007
        %v3200 = vadd.f32 %v496, %v2363
        %v3201 = vadd.f32 %v497, %v2719
        %v3202 = vadd.f32 %v498, %v3075
        %v3203 = vadd.f32 %v499, %v2009
        %v3204 = vadd.f32 %v500, %v2365
        %v3205 = vadd.f32 %v501, %v2721
        %v3206 = vadd.f32 %v502, %v3077
        %3207 = vst [vmem:[#allocation2] sm:$0xff] %v3079
        %3208 = vst [vmem:[#allocation2 + $0x8] sm:$0xff] %v3080
        %3209 = vst [vmem:[#allocation2 + $0x10] sm:$0xff] %v3081
        %3210 = vst [vmem:[#allocation2 + $0x18] sm:$0xff] %v3082
        %3211 = vst [vmem:[#allocation2 + $0x20] sm:$0xff] %v3083
        %3212 = vst [vmem:[#allocation2 + $0x28] sm:$0xff] %v3084
        %3213 = vst [vmem:[#allocation2 + $0x30] sm:$0xff] %v3085
        %3214 = vst [vmem:[#allocation2 + $0x38] sm:$0xff] %v3086
        %3215 = vst [vmem:[#allocation2 + $0x40] sm:$0xff] %v3087
        %3216 = vst [vmem:[#allocation2 + $0x48] sm:$0xff] %v3088
        %3217 = vst [vmem:[#allocation2 + $0x50] sm:$0xff] %v3089
        %3218 = vst [vmem:[#allocation2 + $0x58] sm:$0xff] %v3090
        %3219 = vst [vmem:[#allocation2 + $0x60] sm:$0xff] %v3091
        %3220 = vst [vmem:[#allocation2 + $0x68] sm:$0xff] %v3092
        %3221 = vst [vmem:[#allocation2 + $0x70] sm:$0xff] %v3093
        %3222 = vst [vmem:[#allocation2 + $0x78] sm:$0xff] %v3094
        %3223 = vst [vmem:[#allocation2 + $0x80] sm:$0xff] %v3095
        %3224 = vst [vmem:[#allocation2 + $0x88] sm:$0xff] %v3096
        %3225 = vst [vmem:[#allocation2 + $0x90] sm:$0xff] %v3097
        %3226 = vst [vmem:[#allocation2 + $0x98] sm:$0xff] %v3098
        %3227 = vst [vmem:[#allocation2 + $0xa0] sm:$0xff] %v3099
        %3228 = vst [vmem:[#allocation2 + $0xa8] sm:$0xff] %v3100
        %3229 = vst [vmem:[#allocation2 + $0xb0] sm:$0xff] %v3101
        %3230 = vst [vmem:[#allocation2 + $0xb8] sm:$0xff] %v3102
        %3231 = vst [vmem:[#allocation2 + $0xc0] sm:$0xff] %v3103
        %3232 = vst [vmem:[#allocation2 + $0xc8] sm:$0xff] %v3104
        %3233 = vst [vmem:[#allocation2 + $0xd0] sm:$0xff] %v3105
        %3234 = vst [vmem:[#allocation2 + $0xd8] sm:$0xff] %v3106
        %3235 = vst [vmem:[#allocation2 + $0xe0] sm:$0xff] %v3107
        %3236 = vst [vmem:[#allocation2 + $0xe8] sm:$0xff] %v3108
        %3237 = vst [vmem:[#allocation2 + $0xf0] sm:$0xff] %v3109
        %3238 = vst [vmem:[#allocation2 + $0xf8] sm:$0xff] %v3110
        %3239 = vst [vmem:[#allocation2 + $0x100] sm:$0xff] %v3111
        %3240 = vst [vmem:[#allocation2 + $0x108] sm:$0xff] %v3112
        %3241 = vst [vmem:[#allocation2 + $0x110] sm:$0xff] %v3113
        %3242 = vst [vmem:[#allocation2 + $0x118] sm:$0xff] %v3114
        %3243 = vst [vmem:[#allocation2 + $0x120] sm:$0xff] %v3115
        %3244 = vst [vmem:[#allocation2 + $0x128] sm:$0xff] %v3116
        %3245 = vst [vmem:[#allocation2 + $0x130] sm:$0xff] %v3117
        %3246 = vst [vmem:[#allocation2 + $0x138] sm:$0xff] %v3118
        %3247 = vst [vmem:[#allocation2 + $0x140] sm:$0xff] %v3119
        %3248 = vst [vmem:[#allocation2 + $0x148] sm:$0xff] %v3120
        %3249 = vst [vmem:[#allocation2 + $0x150] sm:$0xff] %v3121
        %3250 = vst [vmem:[#allocation2 + $0x158] sm:$0xff] %v3122
        %3251 = vst [vmem:[#allocation2 + $0x160] sm:$0xff] %v3123
        %3252 = vst [vmem:[#allocation2 + $0x168] sm:$0xff] %v3124
        %3253 = vst [vmem:[#allocation2 + $0x170] sm:$0xff] %v3125
        %3254 = vst [vmem:[#allocation2 + $0x178] sm:$0xff] %v3126
        %3255 = vst [vmem:[#allocation2 + $0x180] sm:$0xff] %v3127
        %3256 = vst [vmem:[#allocation2 + $0x188] sm:$0xff] %v3128
        %3257 = vst [vmem:[#allocation2 + $0x190] sm:$0xff] %v3129
        %3258 = vst [vmem:[#allocation2 + $0x198] sm:$0xff] %v3130
        %3259 = vst [vmem:[#allocation2 + $0x1a0] sm:$0xff] %v3131
        %3260 = vst [vmem:[#allocation2 + $0x1a8] sm:$0xff] %v3132
        %3261 = vst [vmem:[#allocation2 + $0x1b0] sm:$0xff] %v3133
        %3262 = vst [vmem:[#allocation2 + $0x1b8] sm:$0xff] %v3134
        %3263 = vst [vmem:[#allocation2 + $0x1c0] sm:$0xff] %v3135
        %3264 = vst [vmem:[#allocation2 + $0x1c8] sm:$0xff] %v3136
        %3265 = vst [vmem:[#allocation2 + $0x1d0] sm:$0xff] %v3137
        %3266 = vst [vmem:[#allocation2 + $0x1d8] sm:$0xff] %v3138
        %3267 = vst [vmem:[#allocation2 + $0x1e0] sm:$0xff] %v3139
        %3268 = vst [vmem:[#allocation2 + $0x1e8] sm:$0xff] %v3140
        %3269 = vst [vmem:[#allocation2 + $0x1f0] sm:$0xff] %v3141
        %3270 = vst [vmem:[#allocation2 + $0x1f8] sm:$0xff] %v3142
        %3271 = vst [vmem:[#allocation2 + $0x200] sm:$0xff] %v3143
        %3272 = vst [vmem:[#allocation2 + $0x208] sm:$0xff] %v3144
        %3273 = vst [vmem:[#allocation2 + $0x210] sm:$0xff] %v3145
        %3274 = vst [vmem:[#allocation2 + $0x218] sm:$0xff] %v3146
        %3275 = vst [vmem:[#allocation2 + $0x220] sm:$0xff] %v3147
        %3276 = vst [vmem:[#allocation2 + $0x228] sm:$0xff] %v3148
        %3277 = vst [vmem:[#allocation2 + $0x230] sm:$0xff] %v3149
        %3278 = vst [vmem:[#allocation2 + $0x238] sm:$0xff] %v3150
        %3279 = vst [vmem:[#allocation2 + $0x240] sm:$0xff] %v3151
        %3280 = vst [vmem:[#allocation2 + $0x248] sm:$0xff] %v3152
        %3281 = vst [vmem:[#allocation2 + $0x250] sm:$0xff] %v3153
        %3282 = vst [vmem:[#allocation2 + $0x258] sm:$0xff] %v3154
        %3283 = vst [vmem:[#allocation2 + $0x260] sm:$0xff] %v3155
        %3284 = vst [vmem:[#allocation2 + $0x268] sm:$0xff] %v3156
        %3285 = vst [vmem:[#allocation2 + $0x270] sm:$0xff] %v3157
        %3286 = vst [vmem:[#allocation2 + $0x278] sm:$0xff] %v3158
        %3287 = vst [vmem:[#allocation2 + $0x280] sm:$0xff] %v3159
        %3288 = vst [vmem:[#allocation2 + $0x288] sm:$0xff] %v3160
        %3289 = vst [vmem:[#allocation2 + $0x290] sm:$0xff] %v3161
        %3290 = vst [vmem:[#allocation2 + $0x298] sm:$0xff] %v3162
        %3291 = vst [vmem:[#allocation2 + $0x2a0] sm:$0xff] %v3163
        %3292 = vst [vmem:[#allocation2 + $0x2a8] sm:$0xff] %v3164
        %3293 = vst [vmem:[#allocation2 + $0x2b0] sm:$0xff] %v3165
        %3294 = vst [vmem:[#allocation2 + $0x2b8] sm:$0xff] %v3166
        %3295 = vst [vmem:[#allocation2 + $0x2c0] sm:$0xff] %v3167
        %3296 = vst [vmem:[#allocation2 + $0x2c8] sm:$0xff] %v3168
        %3297 = vst [vmem:[#allocation2 + $0x2d0] sm:$0xff] %v3169
        %3298 = vst [vmem:[#allocation2 + $0x2d8] sm:$0xff] %v3170
        %3299 = vst [vmem:[#allocation2 + $0x2e0] sm:$0xff] %v3171
        %3300 = vst [vmem:[#allocation2 + $0x2e8] sm:$0xff] %v3172
        %3301 = vst [vmem:[#allocation2 + $0x2f0] sm:$0xff] %v3173
        %3302 = vst [vmem:[#allocation2 + $0x2f8] sm:$0xff] %v3174
        %3303 = vst [vmem:[#allocation2 + $0x300] sm:$0xff] %v3175
        %3304 = vst [vmem:[#allocation2 + $0x308] sm:$0xff] %v3176
        %3305 = vst [vmem:[#allocation2 + $0x310] sm:$0xff] %v3177
        %3306 = vst [vmem:[#allocation2 + $0x318] sm:$0xff] %v3178
        %3307 = vst [vmem:[#allocation2 + $0x320] sm:$0xff] %v3179
        %3308 = vst [vmem:[#allocation2 + $0x328] sm:$0xff] %v3180
        %3309 = vst [vmem:[#allocation2 + $0x330] sm:$0xff] %v3181
        %3310 = vst [vmem:[#allocation2 + $0x338] sm:$0xff] %v3182
        %3311 = vst [vmem:[#allocation2 + $0x340] sm:$0xff] %v3183
        %3312 = vst [vmem:[#allocation2 + $0x348] sm:$0xff] %v3184
        %3313 = vst [vmem:[#allocation2 + $0x350] sm:$0xff] %v3185
        %3314 = vst [vmem:[#allocation2 + $0x358] sm:$0xff] %v3186
        %3315 = vst [vmem:[#allocation2 + $0x360] sm:$0xff] %v3187
        %3316 = vst [vmem:[#allocation2 + $0x368] sm:$0xff] %v3188
        %3317 = vst [vmem:[#allocation2 + $0x370] sm:$0xff] %v3189
        %3318 = vst [vmem:[#allocation2 + $0x378] sm:$0xff] %v3190
        %3319 = vst [vmem:[#allocation2 + $0x380] sm:$0xff] %v3191
        %3320 = vst [vmem:[#allocation2 + $0x388] sm:$0xff] %v3192
        %3321 = vst [vmem:[#allocation2 + $0x390] sm:$0xff] %v3193
        %3322 = vst [vmem:[#allocation2 + $0x398] sm:$0xff] %v3194
        %3323 = vst [vmem:[#allocation2 + $0x3a0] sm:$0xff] %v3195
        %3324 = vst [vmem:[#allocation2 + $0x3a8] sm:$0xff] %v3196
        %3325 = vst [vmem:[#allocation2 + $0x3b0] sm:$0xff] %v3197
        %3326 = vst [vmem:[#allocation2 + $0x3b8] sm:$0xff] %v3198
        %3327 = vst [vmem:[#allocation2 + $0x3c0] sm:$0xff] %v3199
        %3328 = vst [vmem:[#allocation2 + $0x3c8] sm:$0xff] %v3200
        %3329 = vst [vmem:[#allocation2 + $0x3d0] sm:$0xff] %v3201
        %3330 = vst [vmem:[#allocation2 + $0x3d8] sm:$0xff] %v3202
        %3331 = vst [vmem:[#allocation2 + $0x3e0] sm:$0xff] %v3203
        %3332 = vst [vmem:[#allocation2 + $0x3e8] sm:$0xff] %v3204
        %3333 = vst [vmem:[#allocation2 + $0x3f0] sm:$0xff] %v3205
        %3334 = vst [vmem:[#allocation2 + $0x3f8] sm:$0xff] %v3206
        // Predicated region
        $region41: #{tpu_custom_call.1} parent=27 // pred_check
          %p3335 = pneg %p243
        $region42: #{tpu_custom_call.1} parent=27 // pred_check_branch
          %3337 = sbr.rel (%p3335) target = $region44
        $region43: #{tpu_custom_call.1} parent=27 // pred_region
          %v3338 = vld [vmem:[#allocation2] sm:$0xff]
          %v3339 = vld [vmem:[#allocation2 + $0x8] sm:$0xff]
          %v3340 = vld [vmem:[#allocation2 + $0x10] sm:$0xff]
          %v3341 = vld [vmem:[#allocation2 + $0x18] sm:$0xff]
          %v3342 = vld [vmem:[#allocation2 + $0x20] sm:$0xff]
          %v3343 = vld [vmem:[#allocation2 + $0x28] sm:$0xff]
          %v3344 = vld [vmem:[#allocation2 + $0x30] sm:$0xff]
          %v3345 = vld [vmem:[#allocation2 + $0x38] sm:$0xff]
          %v3346 = vld [vmem:[#allocation2 + $0x40] sm:$0xff]
          %v3347 = vld [vmem:[#allocation2 + $0x48] sm:$0xff]
          %v3348 = vld [vmem:[#allocation2 + $0x50] sm:$0xff]
          %v3349 = vld [vmem:[#allocation2 + $0x58] sm:$0xff]
          %v3350 = vld [vmem:[#allocation2 + $0x60] sm:$0xff]
          %v3351 = vld [vmem:[#allocation2 + $0x68] sm:$0xff]
          %v3352 = vld [vmem:[#allocation2 + $0x70] sm:$0xff]
          %v3353 = vld [vmem:[#allocation2 + $0x78] sm:$0xff]
          %v3354 = vld [vmem:[#allocation2 + $0x80] sm:$0xff]
          %v3355 = vld [vmem:[#allocation2 + $0x88] sm:$0xff]
          %v3356 = vld [vmem:[#allocation2 + $0x90] sm:$0xff]
          %v3357 = vld [vmem:[#allocation2 + $0x98] sm:$0xff]
          %v3358 = vld [vmem:[#allocation2 + $0xa0] sm:$0xff]
          %v3359 = vld [vmem:[#allocation2 + $0xa8] sm:$0xff]
          %v3360 = vld [vmem:[#allocation2 + $0xb0] sm:$0xff]
          %v3361 = vld [vmem:[#allocation2 + $0xb8] sm:$0xff]
          %v3362 = vld [vmem:[#allocation2 + $0xc0] sm:$0xff]
          %v3363 = vld [vmem:[#allocation2 + $0xc8] sm:$0xff]
          %v3364 = vld [vmem:[#allocation2 + $0xd0] sm:$0xff]
          %v3365 = vld [vmem:[#allocation2 + $0xd8] sm:$0xff]
          %v3366 = vld [vmem:[#allocation2 + $0xe0] sm:$0xff]
          %v3367 = vld [vmem:[#allocation2 + $0xe8] sm:$0xff]
          %v3368 = vld [vmem:[#allocation2 + $0xf0] sm:$0xff]
          %v3369 = vld [vmem:[#allocation2 + $0xf8] sm:$0xff]
          %v3370 = vld [vmem:[#allocation2 + $0x100] sm:$0xff]
          %v3371 = vld [vmem:[#allocation2 + $0x108] sm:$0xff]
          %v3372 = vld [vmem:[#allocation2 + $0x110] sm:$0xff]
          %v3373 = vld [vmem:[#allocation2 + $0x118] sm:$0xff]
          %v3374 = vld [vmem:[#allocation2 + $0x120] sm:$0xff]
          %v3375 = vld [vmem:[#allocation2 + $0x128] sm:$0xff]
          %v3376 = vld [vmem:[#allocation2 + $0x130] sm:$0xff]
          %v3377 = vld [vmem:[#allocation2 + $0x138] sm:$0xff]
          %v3378 = vld [vmem:[#allocation2 + $0x140] sm:$0xff]
          %v3379 = vld [vmem:[#allocation2 + $0x148] sm:$0xff]
          %v3380 = vld [vmem:[#allocation2 + $0x150] sm:$0xff]
          %v3381 = vld [vmem:[#allocation2 + $0x158] sm:$0xff]
          %v3382 = vld [vmem:[#allocation2 + $0x160] sm:$0xff]
          %v3383 = vld [vmem:[#allocation2 + $0x168] sm:$0xff]
          %v3384 = vld [vmem:[#allocation2 + $0x170] sm:$0xff]
          %v3385 = vld [vmem:[#allocation2 + $0x178] sm:$0xff]
          %v3386 = vld [vmem:[#allocation2 + $0x180] sm:$0xff]
          %v3387 = vld [vmem:[#allocation2 + $0x188] sm:$0xff]
          %v3388 = vld [vmem:[#allocation2 + $0x190] sm:$0xff]
          %v3389 = vld [vmem:[#allocation2 + $0x198] sm:$0xff]
          %v3390 = vld [vmem:[#allocation2 + $0x1a0] sm:$0xff]
          %v3391 = vld [vmem:[#allocation2 + $0x1a8] sm:$0xff]
          %v3392 = vld [vmem:[#allocation2 + $0x1b0] sm:$0xff]
          %v3393 = vld [vmem:[#allocation2 + $0x1b8] sm:$0xff]
          %v3394 = vld [vmem:[#allocation2 + $0x1c0] sm:$0xff]
          %v3395 = vld [vmem:[#allocation2 + $0x1c8] sm:$0xff]
          %v3396 = vld [vmem:[#allocation2 + $0x1d0] sm:$0xff]
          %v3397 = vld [vmem:[#allocation2 + $0x1d8] sm:$0xff]
          %v3398 = vld [vmem:[#allocation2 + $0x1e0] sm:$0xff]
          %v3399 = vld [vmem:[#allocation2 + $0x1e8] sm:$0xff]
          %v3400 = vld [vmem:[#allocation2 + $0x1f0] sm:$0xff]
          %v3401 = vld [vmem:[#allocation2 + $0x1f8] sm:$0xff]
          %v3402 = vld [vmem:[#allocation2 + $0x200] sm:$0xff]
          %v3403 = vld [vmem:[#allocation2 + $0x208] sm:$0xff]
          %v3404 = vld [vmem:[#allocation2 + $0x210] sm:$0xff]
          %v3405 = vld [vmem:[#allocation2 + $0x218] sm:$0xff]
          %v3406 = vld [vmem:[#allocation2 + $0x220] sm:$0xff]
          %v3407 = vld [vmem:[#allocation2 + $0x228] sm:$0xff]
          %v3408 = vld [vmem:[#allocation2 + $0x230] sm:$0xff]
          %v3409 = vld [vmem:[#allocation2 + $0x238] sm:$0xff]
          %v3410 = vld [vmem:[#allocation2 + $0x240] sm:$0xff]
          %v3411 = vld [vmem:[#allocation2 + $0x248] sm:$0xff]
          %v3412 = vld [vmem:[#allocation2 + $0x250] sm:$0xff]
          %v3413 = vld [vmem:[#allocation2 + $0x258] sm:$0xff]
          %v3414 = vld [vmem:[#allocation2 + $0x260] sm:$0xff]
          %v3415 = vld [vmem:[#allocation2 + $0x268] sm:$0xff]
          %v3416 = vld [vmem:[#allocation2 + $0x270] sm:$0xff]
          %v3417 = vld [vmem:[#allocation2 + $0x278] sm:$0xff]
          %v3418 = vld [vmem:[#allocation2 + $0x280] sm:$0xff]
          %v3419 = vld [vmem:[#allocation2 + $0x288] sm:$0xff]
          %v3420 = vld [vmem:[#allocation2 + $0x290] sm:$0xff]
          %v3421 = vld [vmem:[#allocation2 + $0x298] sm:$0xff]
          %v3422 = vld [vmem:[#allocation2 + $0x2a0] sm:$0xff]
          %v3423 = vld [vmem:[#allocation2 + $0x2a8] sm:$0xff]
          %v3424 = vld [vmem:[#allocation2 + $0x2b0] sm:$0xff]
          %v3425 = vld [vmem:[#allocation2 + $0x2b8] sm:$0xff]
          %v3426 = vld [vmem:[#allocation2 + $0x2c0] sm:$0xff]
          %v3427 = vld [vmem:[#allocation2 + $0x2c8] sm:$0xff]
          %v3428 = vld [vmem:[#allocation2 + $0x2d0] sm:$0xff]
          %v3429 = vld [vmem:[#allocation2 + $0x2d8] sm:$0xff]
          %v3430 = vld [vmem:[#allocation2 + $0x2e0] sm:$0xff]
          %v3431 = vld [vmem:[#allocation2 + $0x2e8] sm:$0xff]
          %v3432 = vld [vmem:[#allocation2 + $0x2f0] sm:$0xff]
          %v3433 = vld [vmem:[#allocation2 + $0x2f8] sm:$0xff]
          %v3434 = vld [vmem:[#allocation2 + $0x300] sm:$0xff]
          %v3435 = vld [vmem:[#allocation2 + $0x308] sm:$0xff]
          %v3436 = vld [vmem:[#allocation2 + $0x310] sm:$0xff]
          %v3437 = vld [vmem:[#allocation2 + $0x318] sm:$0xff]
          %v3438 = vld [vmem:[#allocation2 + $0x320] sm:$0xff]
          %v3439 = vld [vmem:[#allocation2 + $0x328] sm:$0xff]
          %v3440 = vld [vmem:[#allocation2 + $0x330] sm:$0xff]
          %v3441 = vld [vmem:[#allocation2 + $0x338] sm:$0xff]
          %v3442 = vld [vmem:[#allocation2 + $0x340] sm:$0xff]
          %v3443 = vld [vmem:[#allocation2 + $0x348] sm:$0xff]
          %v3444 = vld [vmem:[#allocation2 + $0x350] sm:$0xff]
          %v3445 = vld [vmem:[#allocation2 + $0x358] sm:$0xff]
          %v3446 = vld [vmem:[#allocation2 + $0x360] sm:$0xff]
          %v3447 = vld [vmem:[#allocation2 + $0x368] sm:$0xff]
          %v3448 = vld [vmem:[#allocation2 + $0x370] sm:$0xff]
          %v3449 = vld [vmem:[#allocation2 + $0x378] sm:$0xff]
          %v3450 = vld [vmem:[#allocation2 + $0x380] sm:$0xff]
          %v3451 = vld [vmem:[#allocation2 + $0x388] sm:$0xff]
          %v3452 = vld [vmem:[#allocation2 + $0x390] sm:$0xff]
          %v3453 = vld [vmem:[#allocation2 + $0x398] sm:$0xff]
          %v3454 = vld [vmem:[#allocation2 + $0x3a0] sm:$0xff]
          %v3455 = vld [vmem:[#allocation2 + $0x3a8] sm:$0xff]
          %v3456 = vld [vmem:[#allocation2 + $0x3b0] sm:$0xff]
          %v3457 = vld [vmem:[#allocation2 + $0x3b8] sm:$0xff]
          %v3458 = vld [vmem:[#allocation2 + $0x3c0] sm:$0xff]
          %v3459 = vld [vmem:[#allocation2 + $0x3c8] sm:$0xff]
          %v3460 = vld [vmem:[#allocation2 + $0x3d0] sm:$0xff]
          %v3461 = vld [vmem:[#allocation2 + $0x3d8] sm:$0xff]
          %v3462 = vld [vmem:[#allocation2 + $0x3e0] sm:$0xff]
          %v3463 = vld [vmem:[#allocation2 + $0x3e8] sm:$0xff]
          %v3464 = vld [vmem:[#allocation2 + $0x3f0] sm:$0xff]
          %v3465 = vld [vmem:[#allocation2 + $0x3f8] sm:$0xff]
          %v3466 = vpack.c.bf16 %v3339, %v3338
          %v3467 = vpack.c.bf16 %v3341, %v3340
          %v3468 = vpack.c.bf16 %v3343, %v3342
          %v3469 = vpack.c.bf16 %v3345, %v3344
          %v3470 = vpack.c.bf16 %v3347, %v3346
          %v3471 = vpack.c.bf16 %v3349, %v3348
          %v3472 = vpack.c.bf16 %v3351, %v3350
          %v3473 = vpack.c.bf16 %v3353, %v3352
          %v3474 = vpack.c.bf16 %v3355, %v3354
          %v3475 = vpack.c.bf16 %v3357, %v3356
          %v3476 = vpack.c.bf16 %v3359, %v3358
          %v3477 = vpack.c.bf16 %v3361, %v3360
          %v3478 = vpack.c.bf16 %v3363, %v3362
          %v3479 = vpack.c.bf16 %v3365, %v3364
          %v3480 = vpack.c.bf16 %v3367, %v3366
          %v3481 = vpack.c.bf16 %v3369, %v3368
          %v3482 = vpack.c.bf16 %v3371, %v3370
          %v3483 = vpack.c.bf16 %v3373, %v3372
          %v3484 = vpack.c.bf16 %v3375, %v3374
          %v3485 = vpack.c.bf16 %v3377, %v3376
          %v3486 = vpack.c.bf16 %v3379, %v3378
          %v3487 = vpack.c.bf16 %v3381, %v3380
          %v3488 = vpack.c.bf16 %v3383, %v3382
          %v3489 = vpack.c.bf16 %v3385, %v3384
          %v3490 = vpack.c.bf16 %v3387, %v3386
          %v3491 = vpack.c.bf16 %v3389, %v3388
          %v3492 = vpack.c.bf16 %v3391, %v3390
          %v3493 = vpack.c.bf16 %v3393, %v3392
          %v3494 = vpack.c.bf16 %v3395, %v3394
          %v3495 = vpack.c.bf16 %v3397, %v3396
          %v3496 = vpack.c.bf16 %v3399, %v3398
          %v3497 = vpack.c.bf16 %v3401, %v3400
          %v3498 = vpack.c.bf16 %v3403, %v3402
          %v3499 = vpack.c.bf16 %v3405, %v3404
          %v3500 = vpack.c.bf16 %v3407, %v3406
          %v3501 = vpack.c.bf16 %v3409, %v3408
          %v3502 = vpack.c.bf16 %v3411, %v3410
          %v3503 = vpack.c.bf16 %v3413, %v3412
          %v3504 = vpack.c.bf16 %v3415, %v3414
          %v3505 = vpack.c.bf16 %v3417, %v3416
          %v3506 = vpack.c.bf16 %v3419, %v3418
          %v3507 = vpack.c.bf16 %v3421, %v3420
          %v3508 = vpack.c.bf16 %v3423, %v3422
          %v3509 = vpack.c.bf16 %v3425, %v3424
          %v3510 = vpack.c.bf16 %v3427, %v3426
          %v3511 = vpack.c.bf16 %v3429, %v3428
          %v3512 = vpack.c.bf16 %v3431, %v3430
          %v3513 = vpack.c.bf16 %v3433, %v3432
          %v3514 = vpack.c.bf16 %v3435, %v3434
          %v3515 = vpack.c.bf16 %v3437, %v3436
          %v3516 = vpack.c.bf16 %v3439, %v3438
          %v3517 = vpack.c.bf16 %v3441, %v3440
          %v3518 = vpack.c.bf16 %v3443, %v3442
          %v3519 = vpack.c.bf16 %v3445, %v3444
          %v3520 = vpack.c.bf16 %v3447, %v3446
          %v3521 = vpack.c.bf16 %v3449, %v3448
          %v3522 = vpack.c.bf16 %v3451, %v3450
          %v3523 = vpack.c.bf16 %v3453, %v3452
          %v3524 = vpack.c.bf16 %v3455, %v3454
          %v3525 = vpack.c.bf16 %v3457, %v3456
          %v3526 = vpack.c.bf16 %v3459, %v3458
          %v3527 = vpack.c.bf16 %v3461, %v3460
          %v3528 = vpack.c.bf16 %v3463, %v3462
          %v3529 = vpack.c.bf16 %v3465, %v3464
          %3530 = vst [vmem:[%s236] sm:$0xff] %v3466
          %3531 = vst [vmem:[%s236 + $0x8] sm:$0xff] %v3467
          %3532 = vst [vmem:[%s236 + $0x10] sm:$0xff] %v3468
          %3533 = vst [vmem:[%s236 + $0x18] sm:$0xff] %v3469
          %3534 = vst [vmem:[%s236 + $0x20] sm:$0xff] %v3470
          %3535 = vst [vmem:[%s236 + $0x28] sm:$0xff] %v3471
          %3536 = vst [vmem:[%s236 + $0x30] sm:$0xff] %v3472
          %3537 = vst [vmem:[%s236 + $0x38] sm:$0xff] %v3473
          %3538 = vst [vmem:[%s236 + $0x40] sm:$0xff] %v3474
          %3539 = vst [vmem:[%s236 + $0x48] sm:$0xff] %v3475
          %3540 = vst [vmem:[%s236 + $0x50] sm:$0xff] %v3476
          %3541 = vst [vmem:[%s236 + $0x58] sm:$0xff] %v3477
          %3542 = vst [vmem:[%s236 + $0x60] sm:$0xff] %v3478
          %3543 = vst [vmem:[%s236 + $0x68] sm:$0xff] %v3479
          %3544 = vst [vmem:[%s236 + $0x70] sm:$0xff] %v3480
          %3545 = vst [vmem:[%s236 + $0x78] sm:$0xff] %v3481
          %3546 = vst [vmem:[%s236 + $0x80] sm:$0xff] %v3482
          %3547 = vst [vmem:[%s236 + $0x88] sm:$0xff] %v3483
          %3548 = vst [vmem:[%s236 + $0x90] sm:$0xff] %v3484
          %3549 = vst [vmem:[%s236 + $0x98] sm:$0xff] %v3485
          %3550 = vst [vmem:[%s236 + $0xa0] sm:$0xff] %v3486
          %3551 = vst [vmem:[%s236 + $0xa8] sm:$0xff] %v3487
          %3552 = vst [vmem:[%s236 + $0xb0] sm:$0xff] %v3488
          %3553 = vst [vmem:[%s236 + $0xb8] sm:$0xff] %v3489
          %3554 = vst [vmem:[%s236 + $0xc0] sm:$0xff] %v3490
          %3555 = vst [vmem:[%s236 + $0xc8] sm:$0xff] %v3491
          %3556 = vst [vmem:[%s236 + $0xd0] sm:$0xff] %v3492
          %3557 = vst [vmem:[%s236 + $0xd8] sm:$0xff] %v3493
          %3558 = vst [vmem:[%s236 + $0xe0] sm:$0xff] %v3494
          %3559 = vst [vmem:[%s236 + $0xe8] sm:$0xff] %v3495
          %3560 = vst [vmem:[%s236 + $0xf0] sm:$0xff] %v3496
          %3561 = vst [vmem:[%s236 + $0xf8] sm:$0xff] %v3497
          %3562 = vst [vmem:[%s236 + $0x100] sm:$0xff] %v3498
          %3563 = vst [vmem:[%s236 + $0x108] sm:$0xff] %v3499
          %3564 = vst [vmem:[%s236 + $0x110] sm:$0xff] %v3500
          %3565 = vst [vmem:[%s236 + $0x118] sm:$0xff] %v3501
          %3566 = vst [vmem:[%s236 + $0x120] sm:$0xff] %v3502
          %3567 = vst [vmem:[%s236 + $0x128] sm:$0xff] %v3503
          %3568 = vst [vmem:[%s236 + $0x130] sm:$0xff] %v3504
          %3569 = vst [vmem:[%s236 + $0x138] sm:$0xff] %v3505
          %3570 = vst [vmem:[%s236 + $0x140] sm:$0xff] %v3506
          %3571 = vst [vmem:[%s236 + $0x148] sm:$0xff] %v3507
          %3572 = vst [vmem:[%s236 + $0x150] sm:$0xff] %v3508
          %3573 = vst [vmem:[%s236 + $0x158] sm:$0xff] %v3509
          %3574 = vst [vmem:[%s236 + $0x160] sm:$0xff] %v3510
          %3575 = vst [vmem:[%s236 + $0x168] sm:$0xff] %v3511
          %3576 = vst [vmem:[%s236 + $0x170] sm:$0xff] %v3512
          %3577 = vst [vmem:[%s236 + $0x178] sm:$0xff] %v3513
          %3578 = vst [vmem:[%s236 + $0x180] sm:$0xff] %v3514
          %3579 = vst [vmem:[%s236 + $0x188] sm:$0xff] %v3515
          %3580 = vst [vmem:[%s236 + $0x190] sm:$0xff] %v3516
          %3581 = vst [vmem:[%s236 + $0x198] sm:$0xff] %v3517
          %3582 = vst [vmem:[%s236 + $0x1a0] sm:$0xff] %v3518
          %3583 = vst [vmem:[%s236 + $0x1a8] sm:$0xff] %v3519
          %3584 = vst [vmem:[%s236 + $0x1b0] sm:$0xff] %v3520
          %3585 = vst [vmem:[%s236 + $0x1b8] sm:$0xff] %v3521
          %3586 = vst [vmem:[%s236 + $0x1c0] sm:$0xff] %v3522
          %3587 = vst [vmem:[%s236 + $0x1c8] sm:$0xff] %v3523
          %3588 = vst [vmem:[%s236 + $0x1d0] sm:$0xff] %v3524
          %3589 = vst [vmem:[%s236 + $0x1d8] sm:$0xff] %v3525
          %3590 = vst [vmem:[%s236 + $0x1e0] sm:$0xff] %v3526
          %3591 = vst [vmem:[%s236 + $0x1e8] sm:$0xff] %v3527
          %3592 = vst [vmem:[%s236 + $0x1f0] sm:$0xff] %v3528
          %3593 = vst [vmem:[%s236 + $0x1f8] sm:$0xff] %v3529
        $region44: #{tpu_custom_call.1} parent=27 // pred_fallthru
          _
        %s3594 = sand.u32 %s107, 1
        %s3595 = scalar_lea.sflag [#allocation5], %s3594
        %s3596 = sand.u32 %s107, 1
        %s3597 = smul.addr %s3596, 512
        %s3598 = scalar_lea.vmem [#allocation8], %s3597
        // Predicated region
        $region45: #{tpu_custom_call.1} parent=27 // pred_check
          %p3599 = pneg %p117
        $region46: #{tpu_custom_call.1} parent=27 // pred_check_branch
          %3601 = sbr.rel (%p3599) target = $region48
        $region47: #{tpu_custom_call.1} parent=27 // pred_region
          %s3602 = smul.u32 32, %s27
          %s3603 = smul.u32 4, %s28
          %3605 = vsyncadd %s3595, 0
          %s3606 = smul.addr %s3602, 8
          %s3607 = sadd.s32 %s3603, %s3606
          %s3608 = smul.addr %s3607, 4
          %s3609 = scalar_lea.hbm %s2, %s3608
          %s3610 = sshll.u32 %s3598, 4
          %s3611 = int_to_ptr.vmem [resolvable:$true] %s3610
          %s3612 = sshll.u32 %s3609, 4
          %s3613 = int_to_ptr.hbm [resolvable:$true] %s3612
          %3618 = dma.vmem_to_hbm [thread:$0]  %s3611, 8192, %s3613, %s3595, 256, 512, 16
        $region48: #{tpu_custom_call.1} parent=27 // pred_fallthru
          _
      $region28: #{tpu_custom_call.1} parent=5 // pred_fallthru
        _
      %p3619 = scmp.le.s32.totalorder 2, %s17
      // Predicated region
      $region49: #{tpu_custom_call.1} parent=5 // pred_check
        %p3620 = pneg %p3619
      $region50: #{tpu_custom_call.1} parent=5 // pred_check_branch
        %3622 = sbr.rel (%p3620) target = $region52
      $region51: #{tpu_custom_call.1} parent=5 // pred_region
        %s3623 = ssub.s32 %s17, 2
        // Predicated region
        $region53: #{tpu_custom_call.1} parent=51 // pred_check
          %p3624 = pneg %p123
        $region54: #{tpu_custom_call.1} parent=51 // pred_check_branch
          %3626 = sbr.rel (%p3624) target = $region56
        $region55: #{tpu_custom_call.1} parent=51 // pred_region
          %s3627 = sand.u32 %s108, 1
          %s3628 = scalar_lea.sflag [#allocation5], %s3627
          %s3629 = sand.u32 %s108, 1
          %s3630 = smul.addr %s3629, 512
          %s3631 = scalar_lea.vmem [#allocation8], %s3630
          %3633 = dma.done %s3628, 8192
        $region56: #{tpu_custom_call.1} parent=51 // pred_fallthru
          _
      $region52: #{tpu_custom_call.1} parent=5 // pred_fallthru
        _
    $region6: #{tpu_custom_call.1} parent=1 // loop_footer
      %s21 = sadd.s32 1, %s17
    $region7: #{tpu_custom_call.1} parent=1 // loop_footer_branch
      %16 = sbr.rel target = $region3
    $region8: #{tpu_custom_call.1} parent=1 // loop_exit
      _
    %3634 = vsyncpa [#allocation4], 1
    %s3635 = scalar_lea.sflag [#allocation4], 1
    %3636 = vsyncpa %s3635, 1
    %3637 = vsyncpa [#allocation7], 1
    %s3638 = scalar_lea.sflag [#allocation7], 1
    %3639 = vsyncpa %s3638, 1
    %3640 = vsyncpa [#allocation5], 1
    %s3641 = scalar_lea.sflag [#allocation5], 1
    %3642 = vsyncpa %s3641, 1

</llo_original>
